<compile_context>
chip_gen: v6e
topology: v6e:2x2x1
jax: 0.10.0
libtpu: 0.0.40
codegen_flags: <defaults>
</compile_context>

<pallas_src>
import jax
import jax.numpy as jnp
from jax.experimental import pallas as pl
from jax.experimental.pallas import tpu as pltpu

KERNEL = 4
STRIDE = 2
PADDING = 1


def _deconv_kernel(xp_ref, w_ref, b_ref, o_ref):
    # xp_ref: (1, H+2, W+2, Cin)   pad-1 NHWC input, one batch element
    # w_ref : (9, Cin, 4*Cout)     per 3x3-offset weights, phase-major columns
    # b_ref : (1, 4*Cout)          bias tiled per phase
    # o_ref : (1, H*W, 4*Cout)     out[m, (ph*2+pw)*Cout + co]
    _, hp, wp, cin = xp_ref.shape
    h, w = hp - 2, wp - 2
    m = o_ref.shape[1]
    ncol = o_ref.shape[2]

    acc = jnp.zeros((m, ncol), jnp.float32)
    for q in range(9):                          # static unrolled 3x3 offsets
        oh, ow = q // 3, q % 3
        # Fused ReLU on the shifted window (pad zeros unaffected by ReLU).
        piece = jnp.maximum(xp_ref[0, oh:oh + h, ow:ow + w, :], 0.0)
        acc = acc + jnp.dot(piece.reshape(m, cin), w_ref[q],
                            preferred_element_type=jnp.float32)
    acc = acc + b_ref[...]                      # broadcast (1, 4*Cout)
    o_ref[0] = acc.astype(o_ref.dtype)


def _build_offset_weights(weight):
    """W_all[q, ci, (ph*2+pw)*Cout + co] for offset q = (ph+dh)*3 + (pw+dw)."""
    cin, cout = weight.shape[0], weight.shape[1]
    wt = jnp.transpose(weight, (2, 3, 0, 1))            # (kh, kw, Cin, Cout)
    w_all = jnp.zeros((9, cin, 4 * cout), weight.dtype)
    for ph in range(2):
        for pw in range(2):
            p = ph * 2 + pw
            for dh in range(2):
                for dw in range(2):
                    q = (ph + dh) * 3 + (pw + dw)
                    blk = wt[3 - ph - 2 * dh, 3 - pw - 2 * dw]   # (Cin, Cout)
                    w_all = w_all.at[q, :, p * cout:(p + 1) * cout].set(blk)
    return w_all


@jax.jit
def deconv_block_forward(x_nchw, weight, bias):
    """ReLU -> ConvTranspose2d(kernel=4, stride=2, padding=1).

    x_nchw : (N, Cin, H, W)      weight : (Cin, Cout, 4, 4)     bias : (Cout,)
    returns: (N, Cout, 2H, 2W)   (PyTorch ConvTranspose2d semantics)
    """
    n, cin, h, w = x_nchw.shape
    cout = weight.shape[1]
    ho, wo = STRIDE * h, STRIDE * w
    m = h * w

    # NCHW -> NHWC + 1-pixel border pad.  No zero-dilated intermediate.
    x = jnp.transpose(x_nchw, (0, 2, 3, 1))
    xp = jnp.pad(x, ((0, 0), (1, 1), (1, 1), (0, 0)))

    w_all = _build_offset_weights(weight)                # (9, Cin, 4*Cout)
    b4 = jnp.tile(bias, 4).reshape(1, 4 * cout)          # phase-major bias

    flops = 2 * n * m * cin * 9 * 4 * cout               # as-executed MACs
    bytes_accessed = 4 * (xp.size + w_all.size + b4.size + n * m * 4 * cout)

    out_flat = pl.pallas_call(
        _deconv_kernel,
        out_shape=jax.ShapeDtypeStruct((n, m, 4 * cout), x.dtype),
        grid_spec=pltpu.PrefetchScalarGridSpec(
            num_scalar_prefetch=0,
            grid=(n,),
            in_specs=[
                pl.BlockSpec((1, h + 2, w + 2, cin), lambda b: (b, 0, 0, 0)),
                pl.BlockSpec((9, cin, 4 * cout), lambda b: (0, 0, 0)),
                pl.BlockSpec((1, 4 * cout), lambda b: (0, 0)),
            ],
            out_specs=pl.BlockSpec((1, m, 4 * cout), lambda b: (b, 0, 0)),
        ),
        compiler_params=pltpu.CompilerParams(
            dimension_semantics=("parallel",),       # batch across TCs on v7x
            vmem_limit_bytes=32 * 1024 * 1024),
        cost_estimate=pl.CostEstimate(flops=flops, transcendentals=0,
                                      bytes_accessed=bytes_accessed),
    )(xp, w_all, b4)

    # Interleave parity classes straight to NCHW:
    #   out[n, co, 2r+ph, 2c+pw] = out_flat[n, r*W + c, (ph*2+pw)*Cout + co]
    out = out_flat.reshape(n, h, w, 2, 2, cout)
    out = jnp.transpose(out, (0, 5, 1, 3, 2, 4)).reshape(n, cout, ho, wo)
    return out


def _reference(x_nchw, weight, bias):
    """Pure-JAX reference: ConvTranspose2d == lhs-dilated conv with flipped kernel."""
    xr = jax.nn.relu(x_nchw)
    w_oihw = jnp.transpose(weight[:, :, ::-1, ::-1], (1, 0, 2, 3))
    out = jax.lax.conv_general_dilated(
        xr, w_oihw,
        window_strides=(1, 1),
        padding=[(KERNEL - 1 - PADDING,) * 2] * 2,
        lhs_dilation=(STRIDE, STRIDE),
        dimension_numbers=('NCHW', 'OIHW', 'NCHW'))
    return out + bias[None, :, None, None]


# TODO(synk): BatchNorm2d / Dropout branches are disabled by the default
# constructor flags (batch_norm=False, dropout=False) and are not implemented.
# TODO(synk): for large decoder images add a row-tile grid axis (1-row halo)
# sized per generation (v7x 64 MiB VMEM vs 128 MiB on v5e/v6e) so the grid has
# >=8 steps and DMA/compute pipelining stays deep; for large Cin a single
# im2col matmul (K=9*Cin) would cut the 9 matmul launches to 1 at the cost of
# 2.25x zero-padded MACs.

if __name__ == "__main__":
    key = jax.random.PRNGKey(0)
    k1, k2, k3 = jax.random.split(key, 3)

    n, cin, cout, h, w = 2, 4, 8, 16, 16
    x = jax.random.normal(k1, (n, cin, h, w), jnp.float32)
    # ConvTranspose2d parameter shapes: weight (Cin, Cout, K, K), bias (Cout,)
    weight = 0.1 * jax.random.normal(k2, (cin, cout, KERNEL, KERNEL), jnp.float32)
    bias = 0.1 * jax.random.normal(k3, (cout,), jnp.float32)

    out = deconv_block_forward(x, weight, bias)
    out = jax.block_until_ready(out)

    assert out.shape == (n, cout, STRIDE * h, STRIDE * w), out.shape
    ref = _reference(x, weight, bias)
    assert jnp.allclose(out, ref, atol=1e-4, rtol=1e-4), "mismatch vs reference"
    print("KERNEL_OK")
</pallas_src>

<mosaic_0001>
module attributes {stable_mosaic.version = 11 : i64} {
  func.func @_deconv_kernel(%arg0: i32, %arg1: memref<1x18x18x4xf32, #tpu.memory_space<vmem>>, %arg2: memref<9x4x32xf32, #tpu.memory_space<vmem>>, %arg3: memref<1x32xf32, #tpu.memory_space<vmem>>, %arg4: memref<1x256x32xf32, #tpu.memory_space<vmem>>) attributes {dimension_semantics = [#tpu.dimension_semantics<parallel>], iteration_bounds = array<i64: 2>, scalar_prefetch = 0 : i64, scratch_operands = 0 : i64, tpu.core_type = #tpu.core_type<tc>, window_params = [{transform_indices = @transform_0, window_bounds = array<i64: 1, 18, 18, 4>}, {pipeline_mode = #tpu.pipeline_mode<synchronous>, transform_indices = @transform_1, window_bounds = array<i64: 9, 4, 32>}, {pipeline_mode = #tpu.pipeline_mode<synchronous>, transform_indices = @transform_2, window_bounds = array<i64: 1, 32>}, {transform_indices = @transform_3, window_bounds = array<i64: 1, 256, 32>}]} {
    %cst = arith.constant 0.000000e+00 : f32
    %0 = vector.broadcast %cst : f32 to vector<256x32xf32>
    %c0 = arith.constant 0 : index
    %c0_0 = arith.constant 0 : index
    %c0_1 = arith.constant 0 : index
    %c0_2 = arith.constant 0 : index
    %1 = vector.load %arg1[%c0, %c0_0, %c0_1, %c0_2] : memref<1x18x18x4xf32, #tpu.memory_space<vmem>>, vector<1x16x16x4xf32>
    %2 = vector.shape_cast %1 : vector<1x16x16x4xf32> to vector<16x16x4xf32>
    %cst_3 = arith.constant 0.000000e+00 : f32
    %3 = vector.broadcast %cst_3 : f32 to vector<16x16x4xf32>
    %4 = arith.maximumf %2, %3 : vector<16x16x4xf32>
    %5 = vector.shape_cast %4 : vector<16x16x4xf32> to vector<256x4xf32>
    %c0_4 = arith.constant 0 : index
    %c0_5 = arith.constant 0 : index
    %c0_6 = arith.constant 0 : index
    %6 = vector.load %arg2[%c0_4, %c0_5, %c0_6] : memref<9x4x32xf32, #tpu.memory_space<vmem>>, vector<1x4x32xf32>
    %7 = vector.shape_cast %6 : vector<1x4x32xf32> to vector<4x32xf32>
    %cst_7 = arith.constant dense<0.000000e+00> : vector<256x32xf32>
    %8 = tpu.matmul %5, %7, %cst_7 {dimension_numbers = #tpu.dot_dimension_numbers<[1], [0], [0], [1], [0, 0, 1, 1], [], []>} : vector<256x4xf32>, vector<4x32xf32>, vector<256x32xf32> -> vector<256x32xf32>
    %9 = arith.addf %0, %8 : vector<256x32xf32>
    %c0_8 = arith.constant 0 : index
    %c0_9 = arith.constant 0 : index
    %c1 = arith.constant 1 : index
    %c0_10 = arith.constant 0 : index
    %10 = vector.load %arg1[%c0_8, %c0_9, %c1, %c0_10] : memref<1x18x18x4xf32, #tpu.memory_space<vmem>>, vector<1x16x16x4xf32>
    %11 = vector.shape_cast %10 : vector<1x16x16x4xf32> to vector<16x16x4xf32>
    %cst_11 = arith.constant 0.000000e+00 : f32
    %12 = vector.broadcast %cst_11 : f32 to vector<16x16x4xf32>
    %13 = arith.maximumf %11, %12 : vector<16x16x4xf32>
    %14 = vector.shape_cast %13 : vector<16x16x4xf32> to vector<256x4xf32>
    %c1_12 = arith.constant 1 : index
    %c0_13 = arith.constant 0 : index
    %c0_14 = arith.constant 0 : index
    %15 = vector.load %arg2[%c1_12, %c0_13, %c0_14] : memref<9x4x32xf32, #tpu.memory_space<vmem>>, vector<1x4x32xf32>
    %16 = vector.shape_cast %15 : vector<1x4x32xf32> to vector<4x32xf32>
    %cst_15 = arith.constant dense<0.000000e+00> : vector<256x32xf32>
    %17 = tpu.matmul %14, %16, %cst_15 {dimension_numbers = #tpu.dot_dimension_numbers<[1], [0], [0], [1], [0, 0, 1, 1], [], []>} : vector<256x4xf32>, vector<4x32xf32>, vector<256x32xf32> -> vector<256x32xf32>
    %18 = arith.addf %9, %17 : vector<256x32xf32>
    %c0_16 = arith.constant 0 : index
    %c0_17 = arith.constant 0 : index
    %c2 = arith.constant 2 : index
    %c0_18 = arith.constant 0 : index
    %19 = vector.load %arg1[%c0_16, %c0_17, %c2, %c0_18] : memref<1x18x18x4xf32, #tpu.memory_space<vmem>>, vector<1x16x16x4xf32>
    %20 = vector.shape_cast %19 : vector<1x16x16x4xf32> to vector<16x16x4xf32>
    %cst_19 = arith.constant 0.000000e+00 : f32
    %21 = vector.broadcast %cst_19 : f32 to vector<16x16x4xf32>
    %22 = arith.maximumf %20, %21 : vector<16x16x4xf32>
    %23 = vector.shape_cast %22 : vector<16x16x4xf32> to vector<256x4xf32>
    %c2_20 = arith.constant 2 : index
    %c0_21 = arith.constant 0 : index
    %c0_22 = arith.constant 0 : index
    %24 = vector.load %arg2[%c2_20, %c0_21, %c0_22] : memref<9x4x32xf32, #tpu.memory_space<vmem>>, vector<1x4x32xf32>
    %25 = vector.shape_cast %24 : vector<1x4x32xf32> to vector<4x32xf32>
    %cst_23 = arith.constant dense<0.000000e+00> : vector<256x32xf32>
    %26 = tpu.matmul %23, %25, %cst_23 {dimension_numbers = #tpu.dot_dimension_numbers<[1], [0], [0], [1], [0, 0, 1, 1], [], []>} : vector<256x4xf32>, vector<4x32xf32>, vector<256x32xf32> -> vector<256x32xf32>
    %27 = arith.addf %18, %26 : vector<256x32xf32>
    %c0_24 = arith.constant 0 : index
    %c1_25 = arith.constant 1 : index
    %c0_26 = arith.constant 0 : index
    %c0_27 = arith.constant 0 : index
    %28 = vector.load %arg1[%c0_24, %c1_25, %c0_26, %c0_27] : memref<1x18x18x4xf32, #tpu.memory_space<vmem>>, vector<1x16x16x4xf32>
    %29 = vector.shape_cast %28 : vector<1x16x16x4xf32> to vector<16x16x4xf32>
    %cst_28 = arith.constant 0.000000e+00 : f32
    %30 = vector.broadcast %cst_28 : f32 to vector<16x16x4xf32>
    %31 = arith.maximumf %29, %30 : vector<16x16x4xf32>
    %32 = vector.shape_cast %31 : vector<16x16x4xf32> to vector<256x4xf32>
    %c3 = arith.constant 3 : index
    %c0_29 = arith.constant 0 : index
    %c0_30 = arith.constant 0 : index
    %33 = vector.load %arg2[%c3, %c0_29, %c0_30] : memref<9x4x32xf32, #tpu.memory_space<vmem>>, vector<1x4x32xf32>
    %34 = vector.shape_cast %33 : vector<1x4x32xf32> to vector<4x32xf32>
    %cst_31 = arith.constant dense<0.000000e+00> : vector<256x32xf32>
    %35 = tpu.matmul %32, %34, %cst_31 {dimension_numbers = #tpu.dot_dimension_numbers<[1], [0], [0], [1], [0, 0, 1, 1], [], []>} : vector<256x4xf32>, vector<4x32xf32>, vector<256x32xf32> -> vector<256x32xf32>
    %36 = arith.addf %27, %35 : vector<256x32xf32>
    %c0_32 = arith.constant 0 : index
    %c1_33 = arith.constant 1 : index
    %c1_34 = arith.constant 1 : index
    %c0_35 = arith.constant 0 : index
    %37 = vector.load %arg1[%c0_32, %c1_33, %c1_34, %c0_35] : memref<1x18x18x4xf32, #tpu.memory_space<vmem>>, vector<1x16x16x4xf32>
    %38 = vector.shape_cast %37 : vector<1x16x16x4xf32> to vector<16x16x4xf32>
    %cst_36 = arith.constant 0.000000e+00 : f32
    %39 = vector.broadcast %cst_36 : f32 to vector<16x16x4xf32>
    %40 = arith.maximumf %38, %39 : vector<16x16x4xf32>
    %41 = vector.shape_cast %40 : vector<16x16x4xf32> to vector<256x4xf32>
    %c4 = arith.constant 4 : index
    %c0_37 = arith.constant 0 : index
    %c0_38 = arith.constant 0 : index
    %42 = vector.load %arg2[%c4, %c0_37, %c0_38] : memref<9x4x32xf32, #tpu.memory_space<vmem>>, vector<1x4x32xf32>
    %43 = vector.shape_cast %42 : vector<1x4x32xf32> to vector<4x32xf32>
    %cst_39 = arith.constant dense<0.000000e+00> : vector<256x32xf32>
    %44 = tpu.matmul %41, %43, %cst_39 {dimension_numbers = #tpu.dot_dimension_numbers<[1], [0], [0], [1], [0, 0, 1, 1], [], []>} : vector<256x4xf32>, vector<4x32xf32>, vector<256x32xf32> -> vector<256x32xf32>
    %45 = arith.addf %36, %44 : vector<256x32xf32>
    %c0_40 = arith.constant 0 : index
    %c1_41 = arith.constant 1 : index
    %c2_42 = arith.constant 2 : index
    %c0_43 = arith.constant 0 : index
    %46 = vector.load %arg1[%c0_40, %c1_41, %c2_42, %c0_43] : memref<1x18x18x4xf32, #tpu.memory_space<vmem>>, vector<1x16x16x4xf32>
    %47 = vector.shape_cast %46 : vector<1x16x16x4xf32> to vector<16x16x4xf32>
    %cst_44 = arith.constant 0.000000e+00 : f32
    %48 = vector.broadcast %cst_44 : f32 to vector<16x16x4xf32>
    %49 = arith.maximumf %47, %48 : vector<16x16x4xf32>
    %50 = vector.shape_cast %49 : vector<16x16x4xf32> to vector<256x4xf32>
    %c5 = arith.constant 5 : index
    %c0_45 = arith.constant 0 : index
    %c0_46 = arith.constant 0 : index
    %51 = vector.load %arg2[%c5, %c0_45, %c0_46] : memref<9x4x32xf32, #tpu.memory_space<vmem>>, vector<1x4x32xf32>
    %52 = vector.shape_cast %51 : vector<1x4x32xf32> to vector<4x32xf32>
    %cst_47 = arith.constant dense<0.000000e+00> : vector<256x32xf32>
    %53 = tpu.matmul %50, %52, %cst_47 {dimension_numbers = #tpu.dot_dimension_numbers<[1], [0], [0], [1], [0, 0, 1, 1], [], []>} : vector<256x4xf32>, vector<4x32xf32>, vector<256x32xf32> -> vector<256x32xf32>
    %54 = arith.addf %45, %53 : vector<256x32xf32>
    %c0_48 = arith.constant 0 : index
    %c2_49 = arith.constant 2 : index
    %c0_50 = arith.constant 0 : index
    %c0_51 = arith.constant 0 : index
    %55 = vector.load %arg1[%c0_48, %c2_49, %c0_50, %c0_51] : memref<1x18x18x4xf32, #tpu.memory_space<vmem>>, vector<1x16x16x4xf32>
    %56 = vector.shape_cast %55 : vector<1x16x16x4xf32> to vector<16x16x4xf32>
    %cst_52 = arith.constant 0.000000e+00 : f32
    %57 = vector.broadcast %cst_52 : f32 to vector<16x16x4xf32>
    %58 = arith.maximumf %56, %57 : vector<16x16x4xf32>
    %59 = vector.shape_cast %58 : vector<16x16x4xf32> to vector<256x4xf32>
    %c6 = arith.constant 6 : index
    %c0_53 = arith.constant 0 : index
    %c0_54 = arith.constant 0 : index
    %60 = vector.load %arg2[%c6, %c0_53, %c0_54] : memref<9x4x32xf32, #tpu.memory_space<vmem>>, vector<1x4x32xf32>
    %61 = vector.shape_cast %60 : vector<1x4x32xf32> to vector<4x32xf32>
    %cst_55 = arith.constant dense<0.000000e+00> : vector<256x32xf32>
    %62 = tpu.matmul %59, %61, %cst_55 {dimension_numbers = #tpu.dot_dimension_numbers<[1], [0], [0], [1], [0, 0, 1, 1], [], []>} : vector<256x4xf32>, vector<4x32xf32>, vector<256x32xf32> -> vector<256x32xf32>
    %63 = arith.addf %54, %62 : vector<256x32xf32>
    %c0_56 = arith.constant 0 : index
    %c2_57 = arith.constant 2 : index
    %c1_58 = arith.constant 1 : index
    %c0_59 = arith.constant 0 : index
    %64 = vector.load %arg1[%c0_56, %c2_57, %c1_58, %c0_59] : memref<1x18x18x4xf32, #tpu.memory_space<vmem>>, vector<1x16x16x4xf32>
    %65 = vector.shape_cast %64 : vector<1x16x16x4xf32> to vector<16x16x4xf32>
    %cst_60 = arith.constant 0.000000e+00 : f32
    %66 = vector.broadcast %cst_60 : f32 to vector<16x16x4xf32>
    %67 = arith.maximumf %65, %66 : vector<16x16x4xf32>
    %68 = vector.shape_cast %67 : vector<16x16x4xf32> to vector<256x4xf32>
    %c7 = arith.constant 7 : index
    %c0_61 = arith.constant 0 : index
    %c0_62 = arith.constant 0 : index
    %69 = vector.load %arg2[%c7, %c0_61, %c0_62] : memref<9x4x32xf32, #tpu.memory_space<vmem>>, vector<1x4x32xf32>
    %70 = vector.shape_cast %69 : vector<1x4x32xf32> to vector<4x32xf32>
    %cst_63 = arith.constant dense<0.000000e+00> : vector<256x32xf32>
    %71 = tpu.matmul %68, %70, %cst_63 {dimension_numbers = #tpu.dot_dimension_numbers<[1], [0], [0], [1], [0, 0, 1, 1], [], []>} : vector<256x4xf32>, vector<4x32xf32>, vector<256x32xf32> -> vector<256x32xf32>
    %72 = arith.addf %63, %71 : vector<256x32xf32>
    %c0_64 = arith.constant 0 : index
    %c2_65 = arith.constant 2 : index
    %c2_66 = arith.constant 2 : index
    %c0_67 = arith.constant 0 : index
    %73 = vector.load %arg1[%c0_64, %c2_65, %c2_66, %c0_67] : memref<1x18x18x4xf32, #tpu.memory_space<vmem>>, vector<1x16x16x4xf32>
    %74 = vector.shape_cast %73 : vector<1x16x16x4xf32> to vector<16x16x4xf32>
    %cst_68 = arith.constant 0.000000e+00 : f32
    %75 = vector.broadcast %cst_68 : f32 to vector<16x16x4xf32>
    %76 = arith.maximumf %74, %75 : vector<16x16x4xf32>
    %77 = vector.shape_cast %76 : vector<16x16x4xf32> to vector<256x4xf32>
    %c8 = arith.constant 8 : index
    %c0_69 = arith.constant 0 : index
    %c0_70 = arith.constant 0 : index
    %78 = vector.load %arg2[%c8, %c0_69, %c0_70] : memref<9x4x32xf32, #tpu.memory_space<vmem>>, vector<1x4x32xf32>
    %79 = vector.shape_cast %78 : vector<1x4x32xf32> to vector<4x32xf32>
    %cst_71 = arith.constant dense<0.000000e+00> : vector<256x32xf32>
    %80 = tpu.matmul %77, %79, %cst_71 {dimension_numbers = #tpu.dot_dimension_numbers<[1], [0], [0], [1], [0, 0, 1, 1], [], []>} : vector<256x4xf32>, vector<4x32xf32>, vector<256x32xf32> -> vector<256x32xf32>
    %81 = arith.addf %72, %80 : vector<256x32xf32>
    %c0_72 = arith.constant 0 : index
    %c0_73 = arith.constant 0 : index
    %82 = vector.load %arg3[%c0_72, %c0_73] : memref<1x32xf32, #tpu.memory_space<vmem>>, vector<1x32xf32>
    %83 = vector.broadcast %82 : vector<1x32xf32> to vector<256x32xf32>
    %84 = arith.addf %81, %83 : vector<256x32xf32>
    %c0_74 = arith.constant 0 : index
    %c0_75 = arith.constant 0 : index
    %c0_76 = arith.constant 0 : index
    %85 = vector.load %arg4[%c0_74, %c0_75, %c0_76] : memref<1x256x32xf32, #tpu.memory_space<vmem>>, vector<1x256x32xf32>
    %86 = vector.shape_cast %85 : vector<1x256x32xf32> to vector<256x32xf32>
    %87 = vector.shape_cast %84 : vector<256x32xf32> to vector<1x256x32xf32>
    tpu.vector_store %arg4[%c0_74, %c0_75, %c0_76], %87 {strides = array<i32>} : memref<1x256x32xf32, #tpu.memory_space<vmem>>, vector<1x256x32xf32>,
    return
  }
  func.func @transform_0(%arg0: i32) -> (i32, i32, i32, i32) {
    %c0_i32 = arith.constant 0 : i32
    %c0_i32_0 = arith.constant 0 : i32
    %c0_i32_1 = arith.constant 0 : i32
    %c0_i32_2 = arith.constant 0 : i32
    return %arg0, %c0_i32, %c0_i32_0, %c0_i32_1 : i32, i32, i32, i32
  }
  func.func @transform_1(%arg0: i32) -> (i32, i32, i32) {
    %c0_i32 = arith.constant 0 : i32
    %c0_i32_0 = arith.constant 0 : i32
    %c0_i32_1 = arith.constant 0 : i32
    %c0_i32_2 = arith.constant 0 : i32
    return %c0_i32, %c0_i32_0, %c0_i32_1 : i32, i32, i32
  }
  func.func @transform_2(%arg0: i32) -> (i32, i32) {
    %c0_i32 = arith.constant 0 : i32
    %c0_i32_0 = arith.constant 0 : i32
    %c0_i32_1 = arith.constant 0 : i32
    return %c0_i32, %c0_i32_0 : i32, i32
  }
  func.func @transform_3(%arg0: i32) -> (i32, i32, i32) {
    %c0_i32 = arith.constant 0 : i32
    %c0_i32_0 = arith.constant 0 : i32
    %c0_i32_1 = arith.constant 0 : i32
    return %arg0, %c0_i32, %c0_i32_0 : i32, i32, i32
  }
}

</mosaic_0001>

<llo_original>
// kernel: tile.8
$region0: #{tile.8}
  #allocation0 [shape = 's32[1]{0}', space=sflag, size = 0x4, scoped, tag = 'scoped memory for tile.8']
  %s0 = inlined_call_operand.vmem [shape: f32[8], index: 0, kind: input, shape index: {}]
  %s1 = inlined_call_operand.vmem [shape: f32[4,8], index: 1, kind: output, shape index: {}]
  // Predicated region
  $region2: #{tile.8} parent=0 // pred_check
    _
  $region3: #{tile.8} parent=0 // pred_check_branch
    %3 = sbr.rel (0) target = $region5
  $region4: #{tile.8} parent=0 // pred_region
    _
  $region5: #{tile.8} parent=0 // pred_fallthru
    _
  %v4 = vld [vmem:[%s0] ss:$0 sm:$0xff]
  %5 = vst [vmem:[%s1] sm:$0xf] %v4

// kernel: tile.9
$region0: #{tile.9}
  %s0 = inlined_call_operand.vmem [shape: f32[4,8], index: 0, kind: input, shape index: {}]
  %s1 = inlined_call_operand.vmem [shape: f32[1,32], index: 1, kind: output, shape index: {}]
  $region1: #{tile.9} parent=0
    #allocation0 [shape = 'u8[4096]{0}', space=vmem, size = 0x1000, scoped, tag = 'scoped mem for output reshape']
    #allocation1 [shape = 'u8[4096]{0}', space=vmem, size = 0x1000, scoped, tag = 'scoped mem for input reshape']
    %s3 = sshll.u32 1, 4
    %s4 = ssub.s32 %s3, 1
    %v5 = vld [vmem:[%s0] sm:%s4]
    %6 = vst [vmem:[#allocation1] sm:%s4] %v5
    %v7 = vld [vmem:[#allocation1] sm:$0x1]
    %vm8 = vcmask 64512
    %9 = vst.msk [vmem:[#allocation0] sm:$0x1] %vm8, %v7
    %s10 = scalar_lea.vmem [#allocation1], 3
    %v11 = vld [vmem:[%s10] sm:$0x1]
    %12 = vrot.lane.b32.xlu0 %v11, 24
    %v13 = vpop.permute.xlu0 %12
    %vm14 = vcmask 261312
    %15 = vst.msk [vmem:[#allocation0] sm:$0x1] %vm14, %v13
    %s16 = scalar_lea.vmem [#allocation1], 2
    %v17 = vld [vmem:[%s16] sm:$0x1]
    %18 = vrot.lane.b32.xlu0 %v17, 16
    %v19 = vpop.permute.xlu0 %18
    %vm20 = vcmask 195712
    %21 = vst.msk [vmem:[#allocation0] sm:$0x1] %vm20, %v19
    %s22 = scalar_lea.vmem [#allocation1], 1
    %v23 = vld [vmem:[%s22] sm:$0x1]
    %24 = vrot.lane.b32.xlu0 %v23, 8
    %v25 = vpop.permute.xlu0 %24
    %vm26 = vcmask 130112
    %27 = vst.msk [vmem:[#allocation0] sm:$0x1] %vm26, %v25
    %s29 = sshll.u32 1, 1
    %s30 = ssub.s32 %s29, 1
    %v32 = vld [vmem:[#allocation0] sm:%s30]
    %s33 = sshll.u32 1, 1
    %s34 = ssub.s32 %s33, 1
    %35 = vst [vmem:[%s1] sm:%s34] %v32

// kernel: deconv_block_forward.1
$region0: #{deconv_block_forward.1}
  #allocation0 [shape = 'u32[]', space=smem, size = 0x4, offset = 0x4, fixed_abs, tag = 'smem constant byte address 0x4 - core index']
  #allocation1 [shape = 'u32[144,128]{1,0:T(1,128)}', space=vmem, size = 0x12000, scoped, tag = 'internal scratch']
  %s0 = inlined_call_operand.vmem [shape: f32[2,18,18,4], index: 0, kind: input, shape index: {}]
  %s1 = inlined_call_operand.vmem [shape: f32[9,4,32], index: 1, kind: input, shape index: {}]
  %s2 = inlined_call_operand.vmem [shape: f32[1,32], index: 2, kind: input, shape index: {}]
  %s3 = inlined_call_operand.vmem [shape: f32[2,256,32], index: 3, kind: output, shape index: {}]
  %s4 = sld [smem:[#allocation0]]
  $region45: #{deconv_block_forward.1} parent=0
    _
  %s6 = ssub.s32 1, %s4
  %s7 = scalar_select 0, %s6, %s4
  loop: start=0, step=1, limit=4
  $region2: #{deconv_block_forward.1} parent=0 // loop_pre_header
    _
  $region3: #{deconv_block_forward.1} parent=0 // loop_header
    %s9 = sphi 0, %s13
    %p10 = scmp.ge.s32.totalorder %s9, 4
    %s19 = sphi 0, %s21
    %s22 = sphi 0, %s19
    %s23 = sphi 0, %s22
    %s39 = sphi 0, %s23
    %s43 = sphi 0, %s43
    %s45 = sphi 0, %s43
    %s46 = sphi 0, %s45
    %s60 = sphi 0, %s46
    %s64 = sphi 0, %s64
    %s66 = sphi 0, %s64
    %s67 = sphi 0, %s66
    %s81 = sphi 0, %s67
    %s87 = sphi 0, %s89
    %s90 = sphi 0, %s87
    %s91 = sphi 0, %s90
    %s107 = sphi 0, %s91
  $region4: #{deconv_block_forward.1} parent=0 // loop_header_branch
    %12 = sbr.rel (%p10) target = $region8
  $region5: #{deconv_block_forward.1} parent=0 // loop_body
    %s14 = ssub.s32 %s9, 1
    %s15 = ssub.s32 %s9, 2
    %s16 = sadd.s32 %s9, 1
    %s17 = ssub.s32 %s9, %s16
    %p18 = scmp.eq.s32.totalorder %s17, 0
    %s20 = sadd.s32 %s19, 1
    %s21 = scalar_select %p18, %s19, %s20
    %p24 = pneg %p18
    %p25 = scmp.eq.s32.totalorder %s9, 1
    %p26 = por %p24, %p25
    %p27 = scmp.ne.s32.totalorder %s19, %s22
    %p28 = scmp.eq.s32.totalorder %s9, 0
    %p29 = por %p27, %p28
    %p30 = scmp.ne.s32.totalorder %s19, %s22
    %p31 = scmp.eq.s32.totalorder %s14, 1
    %p32 = por %p30, %p31
    %p33 = scmp.ne.s32.totalorder %s22, %s23
    %p34 = scmp.eq.s32.totalorder %s14, 0
    %p35 = por %p33, %p34
    %p36 = scmp.ne.s32.totalorder %s22, %s23
    %p37 = scmp.eq.s32.totalorder %s15, 1
    %p38 = por %p36, %p37
    %p40 = scmp.ne.s32.totalorder %s23, %s39
    %p41 = scmp.eq.s32.totalorder %s15, 0
    %p42 = por %p40, %p41
    %s44 = sadd.s32 %s43, 1
    %p47 = scmp.eq.s32.totalorder %s9, 1
    %p48 = scmp.ne.s32.totalorder %s43, %s45
    %p49 = scmp.eq.s32.totalorder %s9, 0
    %p50 = por %p48, %p49
    %p51 = scmp.ne.s32.totalorder %s43, %s45
    %p52 = scmp.eq.s32.totalorder %s14, 1
    %p53 = por %p51, %p52
    %p54 = scmp.ne.s32.totalorder %s45, %s46
    %p55 = scmp.eq.s32.totalorder %s14, 0
    %p56 = por %p54, %p55
    %p57 = scmp.ne.s32.totalorder %s45, %s46
    %p58 = scmp.eq.s32.totalorder %s15, 1
    %p59 = por %p57, %p58
    %p61 = scmp.ne.s32.totalorder %s46, %s60
    %p62 = scmp.eq.s32.totalorder %s15, 0
    %p63 = por %p61, %p62
    %s65 = sadd.s32 %s64, 1
    %p68 = scmp.eq.s32.totalorder %s9, 1
    %p69 = scmp.ne.s32.totalorder %s64, %s66
    %p70 = scmp.eq.s32.totalorder %s9, 0
    %p71 = por %p69, %p70
    %p72 = scmp.ne.s32.totalorder %s64, %s66
    %p73 = scmp.eq.s32.totalorder %s14, 1
    %p74 = por %p72, %p73
    %p75 = scmp.ne.s32.totalorder %s66, %s67
    %p76 = scmp.eq.s32.totalorder %s14, 0
    %p77 = por %p75, %p76
    %p78 = scmp.ne.s32.totalorder %s66, %s67
    %p79 = scmp.eq.s32.totalorder %s15, 1
    %p80 = por %p78, %p79
    %p82 = scmp.ne.s32.totalorder %s67, %s81
    %p83 = scmp.eq.s32.totalorder %s15, 0
    %p84 = por %p82, %p83
    %s85 = ssub.s32 %s9, %s16
    %p86 = scmp.eq.s32.totalorder %s85, 0
    %s88 = sadd.s32 %s87, 1
    %s89 = scalar_select %p86, %s87, %s88
    %p92 = pneg %p86
    %p93 = scmp.eq.s32.totalorder %s9, 1
    %p94 = por %p92, %p93
    %p95 = scmp.ne.s32.totalorder %s87, %s90
    %p96 = scmp.eq.s32.totalorder %s9, 0
    %p97 = por %p95, %p96
    %p98 = scmp.ne.s32.totalorder %s87, %s90
    %p99 = scmp.eq.s32.totalorder %s14, 1
    %p100 = por %p98, %p99
    %p101 = scmp.ne.s32.totalorder %s90, %s91
    %p102 = scmp.eq.s32.totalorder %s14, 0
    %p103 = por %p101, %p102
    %p104 = scmp.ne.s32.totalorder %s90, %s91
    %p105 = scmp.eq.s32.totalorder %s15, 1
    %p106 = por %p104, %p105
    %p108 = scmp.ne.s32.totalorder %s91, %s107
    %p109 = scmp.eq.s32.totalorder %s15, 0
    %p110 = por %p108, %p109
    %p111 = scmp.le.s32.totalorder 1, %s9
    %p112 = scmp.lt.s32.totalorder %s9, 3
    %p113 = pnand %p111, %p112
    %p114 = pneg %p113
    // Predicated region
    $region9: #{deconv_block_forward.1} parent=5 // pred_check
      _
    $region10: #{deconv_block_forward.1} parent=5 // pred_check_branch
      %116 = sbr.rel (%p113) target = $region12
    $region11: #{deconv_block_forward.1} parent=5 // pred_region
      %s117 = ssub.s32 %s9, 1
      // Predicated region
      $region13: #{deconv_block_forward.1} parent=11 // pred_check
        %p118 = pneg %p56
      $region14: #{deconv_block_forward.1} parent=11 // pred_check_branch
        %120 = sbr.rel (%p118) target = $region16
      $region15: #{deconv_block_forward.1} parent=11 // pred_region
        _
      $region16: #{deconv_block_forward.1} parent=11 // pred_fallthru
        _
      // Predicated region
      $region17: #{deconv_block_forward.1} parent=11 // pred_check
        %p121 = pneg %p77
      $region18: #{deconv_block_forward.1} parent=11 // pred_check_branch
        %123 = sbr.rel (%p121) target = $region20
      $region19: #{deconv_block_forward.1} parent=11 // pred_region
        _
      $region20: #{deconv_block_forward.1} parent=11 // pred_fallthru
        _
    $region12: #{deconv_block_forward.1} parent=5 // pred_fallthru
      _
    %p124 = scmp.lt.s32.totalorder %s9, 2
    // Predicated region
    $region21: #{deconv_block_forward.1} parent=5 // pred_check
      %p125 = pneg %p124
    $region22: #{deconv_block_forward.1} parent=5 // pred_check_branch
      %127 = sbr.rel (%p125) target = $region24
    $region23: #{deconv_block_forward.1} parent=5 // pred_region
      // Predicated region
      $region25: #{deconv_block_forward.1} parent=23 // pred_check
        %p128 = pneg %p29
      $region26: #{deconv_block_forward.1} parent=23 // pred_check_branch
        %130 = sbr.rel (%p128) target = $region28
      $region27: #{deconv_block_forward.1} parent=23 // pred_region
        %p131 = scmp.lt.s32.totalorder %s9, 1
        %s132 = scalar_select %p131, %s9, 1
        %s133 = smul.addr %s132, 54
        %s134 = smul.addr %s133, 8
        %s135 = scalar_lea.vmem %s0, %s134
      $region28: #{deconv_block_forward.1} parent=23 // pred_fallthru
        _
    $region24: #{deconv_block_forward.1} parent=5 // pred_fallthru
      _
    %p136 = scmp.le.s32.totalorder 1, %s9
    %p137 = scmp.lt.s32.totalorder %s9, 3
    %p138 = pnand %p136, %p137
    %p139 = pneg %p138
    // Predicated region
    $region29: #{deconv_block_forward.1} parent=5 // pred_check
      _
    $region30: #{deconv_block_forward.1} parent=5 // pred_check_branch
      %141 = sbr.rel (%p138) target = $region32
    $region31: #{deconv_block_forward.1} parent=5 // pred_region
      %s142 = ssub.s32 %s9, 1
      %p143 = scmp.lt.s32.totalorder %s14, 1
      %s144 = scalar_select %p143, %s14, 1
      %s145 = smul.addr %s144, 54
      %s146 = smul.addr %s145, 8
      %s147 = scalar_lea.vmem %s0, %s146
      %p148 = pneg %p35
      %p149 = pneg %p32
      %p150 = pneg %p56
      %p151 = pneg %p53
      %p152 = pneg %p77
      %p153 = pneg %p74
      %p154 = pneg %p103
      %p155 = pneg %p100
      %p156 = scmp.lt.s32.totalorder %s14, 1
      %s157 = scalar_select %p156, %s14, 1
      %s158 = smul.addr %s157, 32
      %s159 = smul.addr %s158, 8
      %s160 = scalar_lea.vmem %s3, %s159
      %p161 = scmp.lt.s32.totalorder %s14, 1
      %s162 = scalar_select %p161, %s14, 1
      %s163 = smul.addr %s162, 54
      %s164 = smul.addr %s163, 8
      %s165 = scalar_lea.vmem %s0, %s164
      %p166 = scmp.lt.s32.totalorder %s14, 1
      %s167 = scalar_select %p166, %s14, 1
      %s168 = smul.addr %s167, 32
      %s169 = smul.addr %s168, 8
      %s170 = scalar_lea.vmem %s3, %s169
      %v171 = vld [vmem:[%s165] sm:$0xff]
      %v172 = vld [vmem:[%s165 + $0x8] sm:$0xff]
      %v173 = vld [vmem:[%s165 + $0x18] sm:$0xff]
      %v174 = vld [vmem:[%s165 + $0x20] sm:$0xff]
      %v175 = vld [vmem:[%s165 + $0x30] sm:$0xff]
      %v176 = vld [vmem:[%s165 + $0x38] sm:$0xff]
      %v177 = vld [vmem:[%s165 + $0x48] sm:$0xff]
      %v178 = vld [vmem:[%s165 + $0x50] sm:$0xff]
      %v179 = vld [vmem:[%s165 + $0x60] sm:$0xff]
      %v180 = vld [vmem:[%s165 + $0x68] sm:$0xff]
      %v181 = vld [vmem:[%s165 + $0x78] sm:$0xff]
      %v182 = vld [vmem:[%s165 + $0x80] sm:$0xff]
      %v183 = vld [vmem:[%s165 + $0x90] sm:$0xff]
      %v184 = vld [vmem:[%s165 + $0x98] sm:$0xff]
      %v185 = vld [vmem:[%s165 + $0xa8] sm:$0xff]
      %v186 = vld [vmem:[%s165 + $0xb0] sm:$0xff]
      %v187 = vld [vmem:[%s165 + $0xc0] sm:$0xff]
      %v188 = vld [vmem:[%s165 + $0xc8] sm:$0xff]
      %v189 = vld [vmem:[%s165 + $0xd8] sm:$0xff]
      %v190 = vld [vmem:[%s165 + $0xe0] sm:$0xff]
      %v191 = vld [vmem:[%s165 + $0xf0] sm:$0xff]
      %v192 = vld [vmem:[%s165 + $0xf8] sm:$0xff]
      %v193 = vld [vmem:[%s165 + $0x108] sm:$0xff]
      %v194 = vld [vmem:[%s165 + $0x110] sm:$0xff]
      %v195 = vld [vmem:[%s165 + $0x120] sm:$0xff]
      %v196 = vld [vmem:[%s165 + $0x128] sm:$0xff]
      %v197 = vld [vmem:[%s165 + $0x138] sm:$0xff]
      %v198 = vld [vmem:[%s165 + $0x140] sm:$0xff]
      %v199 = vld [vmem:[%s165 + $0x150] sm:$0xff]
      %v200 = vld [vmem:[%s165 + $0x158] sm:$0xff]
      %v201 = vld [vmem:[%s165 + $0x168] sm:$0xff]
      %v202 = vld [vmem:[%s165 + $0x170] sm:$0xff]
      %v203 = vmax.f32 %v171, 0.0
      %v204 = vmax.f32 %v172, 0.0
      %v205 = vmax.f32 %v173, 0.0
      %v206 = vmax.f32 %v174, 0.0
      %v207 = vmax.f32 %v175, 0.0
      %v208 = vmax.f32 %v176, 0.0
      %v209 = vmax.f32 %v177, 0.0
      %v210 = vmax.f32 %v178, 0.0
      %v211 = vmax.f32 %v179, 0.0
      %v212 = vmax.f32 %v180, 0.0
      %v213 = vmax.f32 %v181, 0.0
      %v214 = vmax.f32 %v182, 0.0
      %v215 = vmax.f32 %v183, 0.0
      %v216 = vmax.f32 %v184, 0.0
      %v217 = vmax.f32 %v185, 0.0
      %v218 = vmax.f32 %v186, 0.0
      %v219 = vmax.f32 %v187, 0.0
      %v220 = vmax.f32 %v188, 0.0
      %v221 = vmax.f32 %v189, 0.0
      %v222 = vmax.f32 %v190, 0.0
      %v223 = vmax.f32 %v191, 0.0
      %v224 = vmax.f32 %v192, 0.0
      %v225 = vmax.f32 %v193, 0.0
      %v226 = vmax.f32 %v194, 0.0
      %v227 = vmax.f32 %v195, 0.0
      %v228 = vmax.f32 %v196, 0.0
      %v229 = vmax.f32 %v197, 0.0
      %v230 = vmax.f32 %v198, 0.0
      %v231 = vmax.f32 %v199, 0.0
      %v232 = vmax.f32 %v200, 0.0
      %v233 = vmax.f32 %v201, 0.0
      %v234 = vmax.f32 %v202, 0.0
      %v235 = vld [vmem:[%s1] sm:$0xf]
      %v236 = vld [vmem:[%s165 + $0x1] sm:$0xff]
      %v237 = vld [vmem:[%s165 + $0x9] sm:$0xff]
      %v238 = vld [vmem:[%s165 + $0x19] sm:$0xff]
      %v239 = vld [vmem:[%s165 + $0x21] sm:$0xff]
      %v240 = vld [vmem:[%s165 + $0x31] sm:$0xff]
      %v241 = vld [vmem:[%s165 + $0x39] sm:$0xff]
      %v242 = vld [vmem:[%s165 + $0x49] sm:$0xff]
      %v243 = vld [vmem:[%s165 + $0x51] sm:$0xff]
      %v244 = vld [vmem:[%s165 + $0x61] sm:$0xff]
      %v245 = vld [vmem:[%s165 + $0x69] sm:$0xff]
      %v246 = vld [vmem:[%s165 + $0x79] sm:$0xff]
      %v247 = vld [vmem:[%s165 + $0x81] sm:$0xff]
      %v248 = vld [vmem:[%s165 + $0x91] sm:$0xff]
      %v249 = vld [vmem:[%s165 + $0x99] sm:$0xff]
      %v250 = vld [vmem:[%s165 + $0xa9] sm:$0xff]
      %v251 = vld [vmem:[%s165 + $0xb1] sm:$0xff]
      %v252 = vld [vmem:[%s165 + $0xc1] sm:$0xff]
      %v253 = vld [vmem:[%s165 + $0xc9] sm:$0xff]
      %v254 = vld [vmem:[%s165 + $0xd9] sm:$0xff]
      %v255 = vld [vmem:[%s165 + $0xe1] sm:$0xff]
      %v256 = vld [vmem:[%s165 + $0xf1] sm:$0xff]
      %v257 = vld [vmem:[%s165 + $0xf9] sm:$0xff]
      %v258 = vld [vmem:[%s165 + $0x109] sm:$0xff]
      %v259 = vld [vmem:[%s165 + $0x111] sm:$0xff]
      %v260 = vld [vmem:[%s165 + $0x121] sm:$0xff]
      %v261 = vld [vmem:[%s165 + $0x129] sm:$0xff]
      %v262 = vld [vmem:[%s165 + $0x139] sm:$0xff]
      %v263 = vld [vmem:[%s165 + $0x141] sm:$0xff]
      %v264 = vld [vmem:[%s165 + $0x151] sm:$0xff]
      %v265 = vld [vmem:[%s165 + $0x159] sm:$0xff]
      %v266 = vld [vmem:[%s165 + $0x169] sm:$0xff]
      %v267 = vld [vmem:[%s165 + $0x171] sm:$0xff]
      %v268 = vmax.f32 %v236, 0.0
      %v269 = vmax.f32 %v237, 0.0
      %v270 = vmax.f32 %v238, 0.0
      %v271 = vmax.f32 %v239, 0.0
      %v272 = vmax.f32 %v240, 0.0
      %v273 = vmax.f32 %v241, 0.0
      %v274 = vmax.f32 %v242, 0.0
      %v275 = vmax.f32 %v243, 0.0
      %v276 = vmax.f32 %v244, 0.0
      %v277 = vmax.f32 %v245, 0.0
      %v278 = vmax.f32 %v246, 0.0
      %v279 = vmax.f32 %v247, 0.0
      %v280 = vmax.f32 %v248, 0.0
      %v281 = vmax.f32 %v249, 0.0
      %v282 = vmax.f32 %v250, 0.0
      %v283 = vmax.f32 %v251, 0.0
      %v284 = vmax.f32 %v252, 0.0
      %v285 = vmax.f32 %v253, 0.0
      %v286 = vmax.f32 %v254, 0.0
      %v287 = vmax.f32 %v255, 0.0
      %v288 = vmax.f32 %v256, 0.0
      %v289 = vmax.f32 %v257, 0.0
      %v290 = vmax.f32 %v258, 0.0
      %v291 = vmax.f32 %v259, 0.0
      %v292 = vmax.f32 %v260, 0.0
      %v293 = vmax.f32 %v261, 0.0
      %v294 = vmax.f32 %v262, 0.0
      %v295 = vmax.f32 %v263, 0.0
      %v296 = vmax.f32 %v264, 0.0
      %v297 = vmax.f32 %v265, 0.0
      %v298 = vmax.f32 %v266, 0.0
      %v299 = vmax.f32 %v267, 0.0
      %s300 = scalar_lea.vmem %s1, 4
      %v301 = vld [vmem:[%s300] sm:$0xf]
      %vm302 = vcmask 31744
      %v304 = vsel %vm302, %v268, 0
      %v307 = vsel %vm302, %v269, 0
      %v310 = vsel %vm302, %v270, 0
      %v313 = vsel %vm302, %v271, 0
      %v316 = vsel %vm302, %v272, 0
      %v319 = vsel %vm302, %v273, 0
      %v322 = vsel %vm302, %v274, 0
      %v325 = vsel %vm302, %v275, 0
      %v328 = vsel %vm302, %v276, 0
      %v331 = vsel %vm302, %v277, 0
      %v334 = vsel %vm302, %v278, 0
      %v337 = vsel %vm302, %v279, 0
      %v340 = vsel %vm302, %v280, 0
      %v343 = vsel %vm302, %v281, 0
      %v346 = vsel %vm302, %v282, 0
      %v349 = vsel %vm302, %v283, 0
      %v352 = vsel %vm302, %v284, 0
      %v355 = vsel %vm302, %v285, 0
      %v358 = vsel %vm302, %v286, 0
      %v361 = vsel %vm302, %v287, 0
      %v364 = vsel %vm302, %v288, 0
      %v367 = vsel %vm302, %v289, 0
      %v370 = vsel %vm302, %v290, 0
      %v373 = vsel %vm302, %v291, 0
      %v376 = vsel %vm302, %v292, 0
      %v379 = vsel %vm302, %v293, 0
      %v382 = vsel %vm302, %v294, 0
      %v385 = vsel %vm302, %v295, 0
      %v388 = vsel %vm302, %v296, 0
      %v391 = vsel %vm302, %v297, 0
      %v394 = vsel %vm302, %v298, 0
      %v397 = vsel %vm302, %v299, 0
      %vm399 = vcmask 1043456
      %v401 = vsel %vm399, %v301, 0
      %403 = vmatprep.subr.mxu0 0.0
      %404 = vmatpush1.msra.mxu0 0.0
      %405 = vmatprep.subr.mxu0 0.0
      %406 = vmatpush1.msra.mxu0 0.0
      %407 = vmatprep.subr.mxu0 0.0
      %408 = vmatpush1.msra.mxu0 0.0
      %409 = vmatprep.subr.mxu0 0.0
      %410 = vmatpush1.msra.mxu0 0.0
      %411 = vmatprep.subr.mxu0 0.0
      %412 = vmatpush1.msra.mxu0 0.0
      %413 = vmatprep.subr.mxu0 0.0
      %414 = vmatpush1.msra.mxu0 0.0
      %415 = vmatprep.subr.mxu0 0.0
      %416 = vmatpush1.msra.mxu0 0.0
      %417 = vmatprep.subr.mxu0 0.0
      %418 = vmatpush1.msra.mxu0 0.0
      %419 = vmatprep.subr.mxu0 0.0
      %420 = vmatpush1.msra.mxu0 0.0
      %421 = vmatprep.subr.mxu0 0.0
      %422 = vmatpush1.msra.mxu0 0.0
      %423 = vmatprep.subr.mxu0 0.0
      %424 = vmatpush1.msra.mxu0 0.0
      %425 = vmatprep.subr.mxu0 0.0
      %426 = vmatpush1.msra.mxu0 0.0
      %427 = vmatprep.subr.mxu0 0.0
      %428 = vmatpush1.msra.mxu0 0.0
      %429 = vmatprep.subr.mxu0 0.0
      %430 = vmatpush1.msra.mxu0 0.0
      %431 = vmatprep.subr.mxu0 0.0
      %432 = vmatpush1.msra.mxu0 0.0
      %433 = vmatprep.subr.mxu0 0.0
      %434 = vmatpush1.msra.mxu0 %v401
      %435 = vmatprep.subr.mxu0 0.0
      %436 = vmatpush2.msra.mxu0 0.0
      %437 = vmatprep.subr.mxu0 0.0
      %438 = vmatpush2.msra.mxu0 0.0
      %439 = vmatprep.subr.mxu0 0.0
      %440 = vmatpush2.msra.mxu0 0.0
      %441 = vmatprep.subr.mxu0 0.0
      %442 = vmatpush2.msra.mxu0 0.0
      %443 = vmatprep.subr.mxu0 0.0
      %444 = vmatpush2.msra.mxu0 0.0
      %445 = vmatprep.subr.mxu0 0.0
      %446 = vmatpush2.msra.mxu0 0.0
      %447 = vmatprep.subr.mxu0 0.0
      %448 = vmatpush2.msra.mxu0 0.0
      %449 = vmatprep.subr.mxu0 0.0
      %450 = vmatpush2.msra.mxu0 0.0
      %451 = vmatprep.subr.mxu0 0.0
      %452 = vmatpush2.msra.mxu0 0.0
      %453 = vmatprep.subr.mxu0 0.0
      %454 = vmatpush2.msra.mxu0 0.0
      %455 = vmatprep.subr.mxu0 0.0
      %456 = vmatpush2.msra.mxu0 0.0
      %457 = vmatprep.subr.mxu0 0.0
      %458 = vmatpush2.msra.mxu0 0.0
      %459 = vmatprep.subr.mxu0 0.0
      %460 = vmatpush2.msra.mxu0 0.0
      %461 = vmatprep.subr.mxu0 0.0
      %462 = vmatpush2.msra.mxu0 0.0
      %463 = vmatprep.subr.mxu0 0.0
      %464 = vmatpush2.msra.mxu0 0.0
      %465 = vmatprep.subr.mxu0 0.0
      %466 = vmatpush2.msra.mxu0 0.0
      %467 = vmatprep.mubr.f32.mxu0 0.0
      %468 = vmatmul.mubr.f32.gmra.mxu0 %v304
      %v469 = vpop.f32.mrf.mxu0
      %v470 = vadd.f32 0.0, %v469
      %v471 = vpop.f32.mrf.mxu0
      %472 = vmatprep.mubr.f32.mxu0 0.0
      %473 = vmatmul.mubr.f32.gmra.mxu0 %v307
      %v474 = vpop.f32.mrf.mxu0
      %v475 = vadd.f32 0.0, %v474
      %v476 = vpop.f32.mrf.mxu0
      %477 = vmatprep.mubr.f32.mxu0 0.0
      %478 = vmatmul.mubr.f32.gmra.mxu0 %v310
      %v479 = vpop.f32.mrf.mxu0
      %v480 = vadd.f32 0.0, %v479
      %v481 = vpop.f32.mrf.mxu0
      %482 = vmatprep.mubr.f32.mxu0 0.0
      %483 = vmatmul.mubr.f32.gmra.mxu0 %v313
      %v484 = vpop.f32.mrf.mxu0
      %v485 = vadd.f32 0.0, %v484
      %v486 = vpop.f32.mrf.mxu0
      %487 = vmatprep.mubr.f32.mxu0 0.0
      %488 = vmatmul.mubr.f32.gmra.mxu0 %v316
      %v489 = vpop.f32.mrf.mxu0
      %v490 = vadd.f32 0.0, %v489
      %v491 = vpop.f32.mrf.mxu0
      %492 = vmatprep.mubr.f32.mxu0 0.0
      %493 = vmatmul.mubr.f32.gmra.mxu0 %v319
      %v494 = vpop.f32.mrf.mxu0
      %v495 = vadd.f32 0.0, %v494
      %v496 = vpop.f32.mrf.mxu0
      %497 = vmatprep.mubr.f32.mxu0 0.0
      %498 = vmatmul.mubr.f32.gmra.mxu0 %v322
      %v499 = vpop.f32.mrf.mxu0
      %v500 = vadd.f32 0.0, %v499
      %v501 = vpop.f32.mrf.mxu0
      %502 = vmatprep.mubr.f32.mxu0 0.0
      %503 = vmatmul.mubr.f32.gmra.mxu0 %v325
      %v504 = vpop.f32.mrf.mxu0
      %v505 = vadd.f32 0.0, %v504
      %v506 = vpop.f32.mrf.mxu0
      %507 = vmatprep.mubr.f32.mxu0 0.0
      %508 = vmatmul.mubr.f32.gmra.mxu0 %v328
      %v509 = vpop.f32.mrf.mxu0
      %v510 = vadd.f32 0.0, %v509
      %v511 = vpop.f32.mrf.mxu0
      %512 = vmatprep.mubr.f32.mxu0 0.0
      %513 = vmatmul.mubr.f32.gmra.mxu0 %v331
      %v514 = vpop.f32.mrf.mxu0
      %v515 = vadd.f32 0.0, %v514
      %v516 = vpop.f32.mrf.mxu0
      %517 = vmatprep.mubr.f32.mxu0 0.0
      %518 = vmatmul.mubr.f32.gmra.mxu0 %v334
      %v519 = vpop.f32.mrf.mxu0
      %v520 = vadd.f32 0.0, %v519
      %v521 = vpop.f32.mrf.mxu0
      %522 = vmatprep.mubr.f32.mxu0 0.0
      %523 = vmatmul.mubr.f32.gmra.mxu0 %v337
      %v524 = vpop.f32.mrf.mxu0
      %v525 = vadd.f32 0.0, %v524
      %v526 = vpop.f32.mrf.mxu0
      %527 = vmatprep.mubr.f32.mxu0 0.0
      %528 = vmatmul.mubr.f32.gmra.mxu0 %v340
      %v529 = vpop.f32.mrf.mxu0
      %v530 = vadd.f32 0.0, %v529
      %v531 = vpop.f32.mrf.mxu0
      %532 = vmatprep.mubr.f32.mxu0 0.0
      %533 = vmatmul.mubr.f32.gmra.mxu0 %v343
      %v534 = vpop.f32.mrf.mxu0
      %v535 = vadd.f32 0.0, %v534
      %v536 = vpop.f32.mrf.mxu0
      %537 = vmatprep.mubr.f32.mxu0 0.0
      %538 = vmatmul.mubr.f32.gmra.mxu0 %v346
      %v539 = vpop.f32.mrf.mxu0
      %v540 = vadd.f32 0.0, %v539
      %v541 = vpop.f32.mrf.mxu0
      %542 = vmatprep.mubr.f32.mxu0 0.0
      %543 = vmatmul.mubr.f32.gmra.mxu0 %v349
      %v544 = vpop.f32.mrf.mxu0
      %v545 = vadd.f32 0.0, %v544
      %v546 = vpop.f32.mrf.mxu0
      %547 = vmatprep.mubr.f32.mxu0 0.0
      %548 = vmatmul.mubr.f32.gmra.mxu0 %v352
      %v549 = vpop.f32.mrf.mxu0
      %v550 = vadd.f32 0.0, %v549
      %v551 = vpop.f32.mrf.mxu0
      %552 = vmatprep.mubr.f32.mxu0 0.0
      %553 = vmatmul.mubr.f32.gmra.mxu0 %v355
      %v554 = vpop.f32.mrf.mxu0
      %v555 = vadd.f32 0.0, %v554
      %v556 = vpop.f32.mrf.mxu0
      %557 = vmatprep.mubr.f32.mxu0 0.0
      %558 = vmatmul.mubr.f32.gmra.mxu0 %v358
      %v559 = vpop.f32.mrf.mxu0
      %v560 = vadd.f32 0.0, %v559
      %v561 = vpop.f32.mrf.mxu0
      %562 = vmatprep.mubr.f32.mxu0 0.0
      %563 = vmatmul.mubr.f32.gmra.mxu0 %v361
      %v564 = vpop.f32.mrf.mxu0
      %v565 = vadd.f32 0.0, %v564
      %v566 = vpop.f32.mrf.mxu0
      %567 = vmatprep.mubr.f32.mxu0 0.0
      %568 = vmatmul.mubr.f32.gmra.mxu0 %v364
      %v569 = vpop.f32.mrf.mxu0
      %v570 = vadd.f32 0.0, %v569
      %v571 = vpop.f32.mrf.mxu0
      %572 = vmatprep.mubr.f32.mxu0 0.0
      %573 = vmatmul.mubr.f32.gmra.mxu0 %v367
      %v574 = vpop.f32.mrf.mxu0
      %v575 = vadd.f32 0.0, %v574
      %v576 = vpop.f32.mrf.mxu0
      %577 = vmatprep.mubr.f32.mxu0 0.0
      %578 = vmatmul.mubr.f32.gmra.mxu0 %v370
      %v579 = vpop.f32.mrf.mxu0
      %v580 = vadd.f32 0.0, %v579
      %v581 = vpop.f32.mrf.mxu0
      %582 = vmatprep.mubr.f32.mxu0 0.0
      %583 = vmatmul.mubr.f32.gmra.mxu0 %v373
      %v584 = vpop.f32.mrf.mxu0
      %v585 = vadd.f32 0.0, %v584
      %v586 = vpop.f32.mrf.mxu0
      %587 = vmatprep.mubr.f32.mxu0 0.0
      %588 = vmatmul.mubr.f32.gmra.mxu0 %v376
      %v589 = vpop.f32.mrf.mxu0
      %v590 = vadd.f32 0.0, %v589
      %v591 = vpop.f32.mrf.mxu0
      %592 = vmatprep.mubr.f32.mxu0 0.0
      %593 = vmatmul.mubr.f32.gmra.mxu0 %v379
      %v594 = vpop.f32.mrf.mxu0
      %v595 = vadd.f32 0.0, %v594
      %v596 = vpop.f32.mrf.mxu0
      %597 = vmatprep.mubr.f32.mxu0 0.0
      %598 = vmatmul.mubr.f32.gmra.mxu0 %v382
      %v599 = vpop.f32.mrf.mxu0
      %v600 = vadd.f32 0.0, %v599
      %v601 = vpop.f32.mrf.mxu0
      %602 = vmatprep.mubr.f32.mxu0 0.0
      %603 = vmatmul.mubr.f32.gmra.mxu0 %v385
      %v604 = vpop.f32.mrf.mxu0
      %v605 = vadd.f32 0.0, %v604
      %v606 = vpop.f32.mrf.mxu0
      %607 = vmatprep.mubr.f32.mxu0 0.0
      %608 = vmatmul.mubr.f32.gmra.mxu0 %v388
      %v609 = vpop.f32.mrf.mxu0
      %v610 = vadd.f32 0.0, %v609
      %v611 = vpop.f32.mrf.mxu0
      %612 = vmatprep.mubr.f32.mxu0 0.0
      %613 = vmatmul.mubr.f32.gmra.mxu0 %v391
      %v614 = vpop.f32.mrf.mxu0
      %v615 = vadd.f32 0.0, %v614
      %v616 = vpop.f32.mrf.mxu0
      %617 = vmatprep.mubr.f32.mxu0 0.0
      %618 = vmatmul.mubr.f32.gmra.mxu0 %v394
      %v619 = vpop.f32.mrf.mxu0
      %v620 = vadd.f32 0.0, %v619
      %v621 = vpop.f32.mrf.mxu0
      %622 = vmatprep.mubr.f32.mxu0 0.0
      %623 = vmatmul.mubr.f32.gmra.mxu0 %v397
      %v624 = vpop.f32.mrf.mxu0
      %v625 = vadd.f32 0.0, %v624
      %v626 = vpop.f32.mrf.mxu0
      %627 = vdwg.mxu0
      %v629 = vsel %vm302, %v203, 0
      %v632 = vsel %vm302, %v204, 0
      %v635 = vsel %vm302, %v205, 0
      %v638 = vsel %vm302, %v206, 0
      %v641 = vsel %vm302, %v207, 0
      %v644 = vsel %vm302, %v208, 0
      %v647 = vsel %vm302, %v209, 0
      %v650 = vsel %vm302, %v210, 0
      %v653 = vsel %vm302, %v211, 0
      %v656 = vsel %vm302, %v212, 0
      %v659 = vsel %vm302, %v213, 0
      %v662 = vsel %vm302, %v214, 0
      %v665 = vsel %vm302, %v215, 0
      %v668 = vsel %vm302, %v216, 0
      %v671 = vsel %vm302, %v217, 0
      %v674 = vsel %vm302, %v218, 0
      %v677 = vsel %vm302, %v219, 0
      %v680 = vsel %vm302, %v220, 0
      %v683 = vsel %vm302, %v221, 0
      %v686 = vsel %vm302, %v222, 0
      %v689 = vsel %vm302, %v223, 0
      %v692 = vsel %vm302, %v224, 0
      %v695 = vsel %vm302, %v225, 0
      %v698 = vsel %vm302, %v226, 0
      %v701 = vsel %vm302, %v227, 0
      %v704 = vsel %vm302, %v228, 0
      %v707 = vsel %vm302, %v229, 0
      %v710 = vsel %vm302, %v230, 0
      %v713 = vsel %vm302, %v231, 0
      %v716 = vsel %vm302, %v232, 0
      %v719 = vsel %vm302, %v233, 0
      %v722 = vsel %vm302, %v234, 0
      %v725 = vsel %vm399, %v235, 0
      %727 = vmatprep.subr.mxu0 0.0
      %728 = vmatpush1.msra.mxu0 0.0
      %729 = vmatprep.subr.mxu0 0.0
      %730 = vmatpush1.msra.mxu0 0.0
      %731 = vmatprep.subr.mxu0 0.0
      %732 = vmatpush1.msra.mxu0 0.0
      %733 = vmatprep.subr.mxu0 0.0
      %734 = vmatpush1.msra.mxu0 0.0
      %735 = vmatprep.subr.mxu0 0.0
      %736 = vmatpush1.msra.mxu0 0.0
      %737 = vmatprep.subr.mxu0 0.0
      %738 = vmatpush1.msra.mxu0 0.0
      %739 = vmatprep.subr.mxu0 0.0
      %740 = vmatpush1.msra.mxu0 0.0
      %741 = vmatprep.subr.mxu0 0.0
      %742 = vmatpush1.msra.mxu0 0.0
      %743 = vmatprep.subr.mxu0 0.0
      %744 = vmatpush1.msra.mxu0 0.0
      %745 = vmatprep.subr.mxu0 0.0
      %746 = vmatpush1.msra.mxu0 0.0
      %747 = vmatprep.subr.mxu0 0.0
      %748 = vmatpush1.msra.mxu0 0.0
      %749 = vmatprep.subr.mxu0 0.0
      %750 = vmatpush1.msra.mxu0 0.0
      %751 = vmatprep.subr.mxu0 0.0
      %752 = vmatpush1.msra.mxu0 0.0
      %753 = vmatprep.subr.mxu0 0.0
      %754 = vmatpush1.msra.mxu0 0.0
      %755 = vmatprep.subr.mxu0 0.0
      %756 = vmatpush1.msra.mxu0 0.0
      %757 = vmatprep.subr.mxu0 0.0
      %758 = vmatpush1.msra.mxu0 %v725
      %759 = vmatprep.subr.mxu0 0.0
      %760 = vmatpush2.msra.mxu0 0.0
      %761 = vmatprep.subr.mxu0 0.0
      %762 = vmatpush2.msra.mxu0 0.0
      %763 = vmatprep.subr.mxu0 0.0
      %764 = vmatpush2.msra.mxu0 0.0
      %765 = vmatprep.subr.mxu0 0.0
      %766 = vmatpush2.msra.mxu0 0.0
      %767 = vmatprep.subr.mxu0 0.0
      %768 = vmatpush2.msra.mxu0 0.0
      %769 = vmatprep.subr.mxu0 0.0
      %770 = vmatpush2.msra.mxu0 0.0
      %771 = vmatprep.subr.mxu0 0.0
      %772 = vmatpush2.msra.mxu0 0.0
      %773 = vmatprep.subr.mxu0 0.0
      %774 = vmatpush2.msra.mxu0 0.0
      %775 = vmatprep.subr.mxu0 0.0
      %776 = vmatpush2.msra.mxu0 0.0
      %777 = vmatprep.subr.mxu0 0.0
      %778 = vmatpush2.msra.mxu0 0.0
      %779 = vmatprep.subr.mxu0 0.0
      %780 = vmatpush2.msra.mxu0 0.0
      %781 = vmatprep.subr.mxu0 0.0
      %782 = vmatpush2.msra.mxu0 0.0
      %783 = vmatprep.subr.mxu0 0.0
      %784 = vmatpush2.msra.mxu0 0.0
      %785 = vmatprep.subr.mxu0 0.0
      %786 = vmatpush2.msra.mxu0 0.0
      %787 = vmatprep.subr.mxu0 0.0
      %788 = vmatpush2.msra.mxu0 0.0
      %789 = vmatprep.subr.mxu0 0.0
      %790 = vmatpush2.msra.mxu0 0.0
      %791 = vmatprep.mubr.f32.mxu0 0.0
      %792 = vmatmul.mubr.f32.gmra.mxu0 %v629
      %v793 = vpop.f32.mrf.mxu0
      %v794 = vadd.f32 %v470, %v793
      %v795 = vpop.f32.mrf.mxu0
      %796 = vmatprep.mubr.f32.mxu0 0.0
      %797 = vmatmul.mubr.f32.gmra.mxu0 %v632
      %v798 = vpop.f32.mrf.mxu0
      %v799 = vadd.f32 %v475, %v798
      %v800 = vpop.f32.mrf.mxu0
      %801 = vmatprep.mubr.f32.mxu0 0.0
      %802 = vmatmul.mubr.f32.gmra.mxu0 %v635
      %v803 = vpop.f32.mrf.mxu0
      %v804 = vadd.f32 %v480, %v803
      %v805 = vpop.f32.mrf.mxu0
      %806 = vmatprep.mubr.f32.mxu0 0.0
      %807 = vmatmul.mubr.f32.gmra.mxu0 %v638
      %v808 = vpop.f32.mrf.mxu0
      %v809 = vadd.f32 %v485, %v808
      %v810 = vpop.f32.mrf.mxu0
      %811 = vmatprep.mubr.f32.mxu0 0.0
      %812 = vmatmul.mubr.f32.gmra.mxu0 %v641
      %v813 = vpop.f32.mrf.mxu0
      %v814 = vadd.f32 %v490, %v813
      %v815 = vpop.f32.mrf.mxu0
      %816 = vmatprep.mubr.f32.mxu0 0.0
      %817 = vmatmul.mubr.f32.gmra.mxu0 %v644
      %v818 = vpop.f32.mrf.mxu0
      %v819 = vadd.f32 %v495, %v818
      %v820 = vpop.f32.mrf.mxu0
      %821 = vmatprep.mubr.f32.mxu0 0.0
      %822 = vmatmul.mubr.f32.gmra.mxu0 %v647
      %v823 = vpop.f32.mrf.mxu0
      %v824 = vadd.f32 %v500, %v823
      %v825 = vpop.f32.mrf.mxu0
      %826 = vmatprep.mubr.f32.mxu0 0.0
      %827 = vmatmul.mubr.f32.gmra.mxu0 %v650
      %v828 = vpop.f32.mrf.mxu0
      %v829 = vadd.f32 %v505, %v828
      %v830 = vpop.f32.mrf.mxu0
      %831 = vmatprep.mubr.f32.mxu0 0.0
      %832 = vmatmul.mubr.f32.gmra.mxu0 %v653
      %v833 = vpop.f32.mrf.mxu0
      %v834 = vadd.f32 %v510, %v833
      %v835 = vpop.f32.mrf.mxu0
      %836 = vmatprep.mubr.f32.mxu0 0.0
      %837 = vmatmul.mubr.f32.gmra.mxu0 %v656
      %v838 = vpop.f32.mrf.mxu0
      %v839 = vadd.f32 %v515, %v838
      %v840 = vpop.f32.mrf.mxu0
      %841 = vmatprep.mubr.f32.mxu0 0.0
      %842 = vmatmul.mubr.f32.gmra.mxu0 %v659
      %v843 = vpop.f32.mrf.mxu0
      %v844 = vadd.f32 %v520, %v843
      %v845 = vpop.f32.mrf.mxu0
      %846 = vmatprep.mubr.f32.mxu0 0.0
      %847 = vmatmul.mubr.f32.gmra.mxu0 %v662
      %v848 = vpop.f32.mrf.mxu0
      %v849 = vadd.f32 %v525, %v848
      %v850 = vpop.f32.mrf.mxu0
      %851 = vmatprep.mubr.f32.mxu0 0.0
      %852 = vmatmul.mubr.f32.gmra.mxu0 %v665
      %v853 = vpop.f32.mrf.mxu0
      %v854 = vadd.f32 %v530, %v853
      %v855 = vpop.f32.mrf.mxu0
      %856 = vmatprep.mubr.f32.mxu0 0.0
      %857 = vmatmul.mubr.f32.gmra.mxu0 %v668
      %v858 = vpop.f32.mrf.mxu0
      %v859 = vadd.f32 %v535, %v858
      %v860 = vpop.f32.mrf.mxu0
      %861 = vmatprep.mubr.f32.mxu0 0.0
      %862 = vmatmul.mubr.f32.gmra.mxu0 %v671
      %v863 = vpop.f32.mrf.mxu0
      %v864 = vadd.f32 %v540, %v863
      %v865 = vpop.f32.mrf.mxu0
      %866 = vmatprep.mubr.f32.mxu0 0.0
      %867 = vmatmul.mubr.f32.gmra.mxu0 %v674
      %v868 = vpop.f32.mrf.mxu0
      %v869 = vadd.f32 %v545, %v868
      %v870 = vpop.f32.mrf.mxu0
      %871 = vmatprep.mubr.f32.mxu0 0.0
      %872 = vmatmul.mubr.f32.gmra.mxu0 %v677
      %v873 = vpop.f32.mrf.mxu0
      %v874 = vadd.f32 %v550, %v873
      %v875 = vpop.f32.mrf.mxu0
      %876 = vmatprep.mubr.f32.mxu0 0.0
      %877 = vmatmul.mubr.f32.gmra.mxu0 %v680
      %v878 = vpop.f32.mrf.mxu0
      %v879 = vadd.f32 %v555, %v878
      %v880 = vpop.f32.mrf.mxu0
      %881 = vmatprep.mubr.f32.mxu0 0.0
      %882 = vmatmul.mubr.f32.gmra.mxu0 %v683
      %v883 = vpop.f32.mrf.mxu0
      %v884 = vadd.f32 %v560, %v883
      %v885 = vpop.f32.mrf.mxu0
      %886 = vmatprep.mubr.f32.mxu0 0.0
      %887 = vmatmul.mubr.f32.gmra.mxu0 %v686
      %v888 = vpop.f32.mrf.mxu0
      %v889 = vadd.f32 %v565, %v888
      %v890 = vpop.f32.mrf.mxu0
      %891 = vmatprep.mubr.f32.mxu0 0.0
      %892 = vmatmul.mubr.f32.gmra.mxu0 %v689
      %v893 = vpop.f32.mrf.mxu0
      %v894 = vadd.f32 %v570, %v893
      %v895 = vpop.f32.mrf.mxu0
      %896 = vmatprep.mubr.f32.mxu0 0.0
      %897 = vmatmul.mubr.f32.gmra.mxu0 %v692
      %v898 = vpop.f32.mrf.mxu0
      %v899 = vadd.f32 %v575, %v898
      %v900 = vpop.f32.mrf.mxu0
      %901 = vmatprep.mubr.f32.mxu0 0.0
      %902 = vmatmul.mubr.f32.gmra.mxu0 %v695
      %v903 = vpop.f32.mrf.mxu0
      %v904 = vadd.f32 %v580, %v903
      %v905 = vpop.f32.mrf.mxu0
      %906 = vmatprep.mubr.f32.mxu0 0.0
      %907 = vmatmul.mubr.f32.gmra.mxu0 %v698
      %v908 = vpop.f32.mrf.mxu0
      %v909 = vadd.f32 %v585, %v908
      %v910 = vpop.f32.mrf.mxu0
      %911 = vmatprep.mubr.f32.mxu0 0.0
      %912 = vmatmul.mubr.f32.gmra.mxu0 %v701
      %v913 = vpop.f32.mrf.mxu0
      %v914 = vadd.f32 %v590, %v913
      %v915 = vpop.f32.mrf.mxu0
      %916 = vmatprep.mubr.f32.mxu0 0.0
      %917 = vmatmul.mubr.f32.gmra.mxu0 %v704
      %v918 = vpop.f32.mrf.mxu0
      %v919 = vadd.f32 %v595, %v918
      %v920 = vpop.f32.mrf.mxu0
      %921 = vmatprep.mubr.f32.mxu0 0.0
      %922 = vmatmul.mubr.f32.gmra.mxu0 %v707
      %v923 = vpop.f32.mrf.mxu0
      %v924 = vadd.f32 %v600, %v923
      %v925 = vpop.f32.mrf.mxu0
      %926 = vmatprep.mubr.f32.mxu0 0.0
      %927 = vmatmul.mubr.f32.gmra.mxu0 %v710
      %v928 = vpop.f32.mrf.mxu0
      %v929 = vadd.f32 %v605, %v928
      %v930 = vpop.f32.mrf.mxu0
      %931 = vmatprep.mubr.f32.mxu0 0.0
      %932 = vmatmul.mubr.f32.gmra.mxu0 %v713
      %v933 = vpop.f32.mrf.mxu0
      %v934 = vadd.f32 %v610, %v933
      %v935 = vpop.f32.mrf.mxu0
      %936 = vmatprep.mubr.f32.mxu0 0.0
      %937 = vmatmul.mubr.f32.gmra.mxu0 %v716
      %v938 = vpop.f32.mrf.mxu0
      %v939 = vadd.f32 %v615, %v938
      %v940 = vpop.f32.mrf.mxu0
      %941 = vmatprep.mubr.f32.mxu0 0.0
      %942 = vmatmul.mubr.f32.gmra.mxu0 %v719
      %v943 = vpop.f32.mrf.mxu0
      %v944 = vadd.f32 %v620, %v943
      %v945 = vpop.f32.mrf.mxu0
      %946 = vmatprep.mubr.f32.mxu0 0.0
      %947 = vmatmul.mubr.f32.gmra.mxu0 %v722
      %v948 = vpop.f32.mrf.mxu0
      %v949 = vadd.f32 %v625, %v948
      %v950 = vpop.f32.mrf.mxu0
      %951 = vdwg.mxu0
      %v952 = vld [vmem:[%s165 + $0x2] sm:$0xff]
      %v953 = vld [vmem:[%s165 + $0xa] sm:$0xff]
      %v954 = vld [vmem:[%s165 + $0x1a] sm:$0xff]
      %v955 = vld [vmem:[%s165 + $0x22] sm:$0xff]
      %v956 = vld [vmem:[%s165 + $0x32] sm:$0xff]
      %v957 = vld [vmem:[%s165 + $0x3a] sm:$0xff]
      %v958 = vld [vmem:[%s165 + $0x4a] sm:$0xff]
      %v959 = vld [vmem:[%s165 + $0x52] sm:$0xff]
      %v960 = vld [vmem:[%s165 + $0x62] sm:$0xff]
      %v961 = vld [vmem:[%s165 + $0x6a] sm:$0xff]
      %v962 = vld [vmem:[%s165 + $0x7a] sm:$0xff]
      %v963 = vld [vmem:[%s165 + $0x82] sm:$0xff]
      %v964 = vld [vmem:[%s165 + $0x92] sm:$0xff]
      %v965 = vld [vmem:[%s165 + $0x9a] sm:$0xff]
      %v966 = vld [vmem:[%s165 + $0xaa] sm:$0xff]
      %v967 = vld [vmem:[%s165 + $0xb2] sm:$0xff]
      %v968 = vld [vmem:[%s165 + $0xc2] sm:$0xff]
      %v969 = vld [vmem:[%s165 + $0xca] sm:$0xff]
      %v970 = vld [vmem:[%s165 + $0xda] sm:$0xff]
      %v971 = vld [vmem:[%s165 + $0xe2] sm:$0xff]
      %v972 = vld [vmem:[%s165 + $0xf2] sm:$0xff]
      %v973 = vld [vmem:[%s165 + $0xfa] sm:$0xff]
      %v974 = vld [vmem:[%s165 + $0x10a] sm:$0xff]
      %v975 = vld [vmem:[%s165 + $0x112] sm:$0xff]
      %v976 = vld [vmem:[%s165 + $0x122] sm:$0xff]
      %v977 = vld [vmem:[%s165 + $0x12a] sm:$0xff]
      %v978 = vld [vmem:[%s165 + $0x13a] sm:$0xff]
      %v979 = vld [vmem:[%s165 + $0x142] sm:$0xff]
      %v980 = vld [vmem:[%s165 + $0x152] sm:$0xff]
      %v981 = vld [vmem:[%s165 + $0x15a] sm:$0xff]
      %v982 = vld [vmem:[%s165 + $0x16a] sm:$0xff]
      %v983 = vld [vmem:[%s165 + $0x172] sm:$0xff]
      %v984 = vmax.f32 %v952, 0.0
      %v985 = vmax.f32 %v953, 0.0
      %v986 = vmax.f32 %v954, 0.0
      %v987 = vmax.f32 %v955, 0.0
      %v988 = vmax.f32 %v956, 0.0
      %v989 = vmax.f32 %v957, 0.0
      %v990 = vmax.f32 %v958, 0.0
      %v991 = vmax.f32 %v959, 0.0
      %v992 = vmax.f32 %v960, 0.0
      %v993 = vmax.f32 %v961, 0.0
      %v994 = vmax.f32 %v962, 0.0
      %v995 = vmax.f32 %v963, 0.0
      %v996 = vmax.f32 %v964, 0.0
      %v997 = vmax.f32 %v965, 0.0
      %v998 = vmax.f32 %v966, 0.0
      %v999 = vmax.f32 %v967, 0.0
      %v1000 = vmax.f32 %v968, 0.0
      %v1001 = vmax.f32 %v969, 0.0
      %v1002 = vmax.f32 %v970, 0.0
      %v1003 = vmax.f32 %v971, 0.0
      %v1004 = vmax.f32 %v972, 0.0
      %v1005 = vmax.f32 %v973, 0.0
      %v1006 = vmax.f32 %v974, 0.0
      %v1007 = vmax.f32 %v975, 0.0
      %v1008 = vmax.f32 %v976, 0.0
      %v1009 = vmax.f32 %v977, 0.0
      %v1010 = vmax.f32 %v978, 0.0
      %v1011 = vmax.f32 %v979, 0.0
      %v1012 = vmax.f32 %v980, 0.0
      %v1013 = vmax.f32 %v981, 0.0
      %v1014 = vmax.f32 %v982, 0.0
      %v1015 = vmax.f32 %v983, 0.0
      %s1016 = scalar_lea.vmem %s1, 8
      %v1017 = vld [vmem:[%s1016] sm:$0xf]
      %v1019 = vsel %vm302, %v984, 0
      %v1022 = vsel %vm302, %v985, 0
      %v1025 = vsel %vm302, %v986, 0
      %v1028 = vsel %vm302, %v987, 0
      %v1031 = vsel %vm302, %v988, 0
      %v1034 = vsel %vm302, %v989, 0
      %v1037 = vsel %vm302, %v990, 0
      %v1040 = vsel %vm302, %v991, 0
      %v1043 = vsel %vm302, %v992, 0
      %v1046 = vsel %vm302, %v993, 0
      %v1049 = vsel %vm302, %v994, 0
      %v1052 = vsel %vm302, %v995, 0
      %v1055 = vsel %vm302, %v996, 0
      %v1058 = vsel %vm302, %v997, 0
      %v1061 = vsel %vm302, %v998, 0
      %v1064 = vsel %vm302, %v999, 0
      %v1067 = vsel %vm302, %v1000, 0
      %v1070 = vsel %vm302, %v1001, 0
      %v1073 = vsel %vm302, %v1002, 0
      %v1076 = vsel %vm302, %v1003, 0
      %v1079 = vsel %vm302, %v1004, 0
      %v1082 = vsel %vm302, %v1005, 0
      %v1085 = vsel %vm302, %v1006, 0
      %v1088 = vsel %vm302, %v1007, 0
      %v1091 = vsel %vm302, %v1008, 0
      %v1094 = vsel %vm302, %v1009, 0
      %v1097 = vsel %vm302, %v1010, 0
      %v1100 = vsel %vm302, %v1011, 0
      %v1103 = vsel %vm302, %v1012, 0
      %v1106 = vsel %vm302, %v1013, 0
      %v1109 = vsel %vm302, %v1014, 0
      %v1112 = vsel %vm302, %v1015, 0
      %v1115 = vsel %vm399, %v1017, 0
      %1117 = vmatprep.subr.mxu0 0.0
      %1118 = vmatpush1.msra.mxu0 0.0
      %1119 = vmatprep.subr.mxu0 0.0
      %1120 = vmatpush1.msra.mxu0 0.0
      %1121 = vmatprep.subr.mxu0 0.0
      %1122 = vmatpush1.msra.mxu0 0.0
      %1123 = vmatprep.subr.mxu0 0.0
      %1124 = vmatpush1.msra.mxu0 0.0
      %1125 = vmatprep.subr.mxu0 0.0
      %1126 = vmatpush1.msra.mxu0 0.0
      %1127 = vmatprep.subr.mxu0 0.0
      %1128 = vmatpush1.msra.mxu0 0.0
      %1129 = vmatprep.subr.mxu0 0.0
      %1130 = vmatpush1.msra.mxu0 0.0
      %1131 = vmatprep.subr.mxu0 0.0
      %1132 = vmatpush1.msra.mxu0 0.0
      %1133 = vmatprep.subr.mxu0 0.0
      %1134 = vmatpush1.msra.mxu0 0.0
      %1135 = vmatprep.subr.mxu0 0.0
      %1136 = vmatpush1.msra.mxu0 0.0
      %1137 = vmatprep.subr.mxu0 0.0
      %1138 = vmatpush1.msra.mxu0 0.0
      %1139 = vmatprep.subr.mxu0 0.0
      %1140 = vmatpush1.msra.mxu0 0.0
      %1141 = vmatprep.subr.mxu0 0.0
      %1142 = vmatpush1.msra.mxu0 0.0
      %1143 = vmatprep.subr.mxu0 0.0
      %1144 = vmatpush1.msra.mxu0 0.0
      %1145 = vmatprep.subr.mxu0 0.0
      %1146 = vmatpush1.msra.mxu0 0.0
      %1147 = vmatprep.subr.mxu0 0.0
      %1148 = vmatpush1.msra.mxu0 %v1115
      %1149 = vmatprep.subr.mxu0 0.0
      %1150 = vmatpush2.msra.mxu0 0.0
      %1151 = vmatprep.subr.mxu0 0.0
      %1152 = vmatpush2.msra.mxu0 0.0
      %1153 = vmatprep.subr.mxu0 0.0
      %1154 = vmatpush2.msra.mxu0 0.0
      %1155 = vmatprep.subr.mxu0 0.0
      %1156 = vmatpush2.msra.mxu0 0.0
      %1157 = vmatprep.subr.mxu0 0.0
      %1158 = vmatpush2.msra.mxu0 0.0
      %1159 = vmatprep.subr.mxu0 0.0
      %1160 = vmatpush2.msra.mxu0 0.0
      %1161 = vmatprep.subr.mxu0 0.0
      %1162 = vmatpush2.msra.mxu0 0.0
      %1163 = vmatprep.subr.mxu0 0.0
      %1164 = vmatpush2.msra.mxu0 0.0
      %1165 = vmatprep.subr.mxu0 0.0
      %1166 = vmatpush2.msra.mxu0 0.0
      %1167 = vmatprep.subr.mxu0 0.0
      %1168 = vmatpush2.msra.mxu0 0.0
      %1169 = vmatprep.subr.mxu0 0.0
      %1170 = vmatpush2.msra.mxu0 0.0
      %1171 = vmatprep.subr.mxu0 0.0
      %1172 = vmatpush2.msra.mxu0 0.0
      %1173 = vmatprep.subr.mxu0 0.0
      %1174 = vmatpush2.msra.mxu0 0.0
      %1175 = vmatprep.subr.mxu0 0.0
      %1176 = vmatpush2.msra.mxu0 0.0
      %1177 = vmatprep.subr.mxu0 0.0
      %1178 = vmatpush2.msra.mxu0 0.0
      %1179 = vmatprep.subr.mxu0 0.0
      %1180 = vmatpush2.msra.mxu0 0.0
      %1181 = vmatprep.mubr.f32.mxu0 0.0
      %1182 = vmatmul.mubr.f32.gmra.mxu0 %v1019
      %v1183 = vpop.f32.mrf.mxu0
      %v1184 = vadd.f32 0.0, %v1183
      %v1185 = vpop.f32.mrf.mxu0
      %1186 = vmatprep.mubr.f32.mxu0 0.0
      %1187 = vmatmul.mubr.f32.gmra.mxu0 %v1022
      %v1188 = vpop.f32.mrf.mxu0
      %v1189 = vadd.f32 0.0, %v1188
      %v1190 = vpop.f32.mrf.mxu0
      %1191 = vmatprep.mubr.f32.mxu0 0.0
      %1192 = vmatmul.mubr.f32.gmra.mxu0 %v1025
      %v1193 = vpop.f32.mrf.mxu0
      %v1194 = vadd.f32 0.0, %v1193
      %v1195 = vpop.f32.mrf.mxu0
      %1196 = vmatprep.mubr.f32.mxu0 0.0
      %1197 = vmatmul.mubr.f32.gmra.mxu0 %v1028
      %v1198 = vpop.f32.mrf.mxu0
      %v1199 = vadd.f32 0.0, %v1198
      %v1200 = vpop.f32.mrf.mxu0
      %1201 = vmatprep.mubr.f32.mxu0 0.0
      %1202 = vmatmul.mubr.f32.gmra.mxu0 %v1031
      %v1203 = vpop.f32.mrf.mxu0
      %v1204 = vadd.f32 0.0, %v1203
      %v1205 = vpop.f32.mrf.mxu0
      %1206 = vmatprep.mubr.f32.mxu0 0.0
      %1207 = vmatmul.mubr.f32.gmra.mxu0 %v1034
      %v1208 = vpop.f32.mrf.mxu0
      %v1209 = vadd.f32 0.0, %v1208
      %v1210 = vpop.f32.mrf.mxu0
      %1211 = vmatprep.mubr.f32.mxu0 0.0
      %1212 = vmatmul.mubr.f32.gmra.mxu0 %v1037
      %v1213 = vpop.f32.mrf.mxu0
      %v1214 = vadd.f32 0.0, %v1213
      %v1215 = vpop.f32.mrf.mxu0
      %1216 = vmatprep.mubr.f32.mxu0 0.0
      %1217 = vmatmul.mubr.f32.gmra.mxu0 %v1040
      %v1218 = vpop.f32.mrf.mxu0
      %v1219 = vadd.f32 0.0, %v1218
      %v1220 = vpop.f32.mrf.mxu0
      %1221 = vmatprep.mubr.f32.mxu0 0.0
      %1222 = vmatmul.mubr.f32.gmra.mxu0 %v1043
      %v1223 = vpop.f32.mrf.mxu0
      %v1224 = vadd.f32 0.0, %v1223
      %v1225 = vpop.f32.mrf.mxu0
      %1226 = vmatprep.mubr.f32.mxu0 0.0
      %1227 = vmatmul.mubr.f32.gmra.mxu0 %v1046
      %v1228 = vpop.f32.mrf.mxu0
      %v1229 = vadd.f32 0.0, %v1228
      %v1230 = vpop.f32.mrf.mxu0
      %1231 = vmatprep.mubr.f32.mxu0 0.0
      %1232 = vmatmul.mubr.f32.gmra.mxu0 %v1049
      %v1233 = vpop.f32.mrf.mxu0
      %v1234 = vadd.f32 0.0, %v1233
      %v1235 = vpop.f32.mrf.mxu0
      %1236 = vmatprep.mubr.f32.mxu0 0.0
      %1237 = vmatmul.mubr.f32.gmra.mxu0 %v1052
      %v1238 = vpop.f32.mrf.mxu0
      %v1239 = vadd.f32 0.0, %v1238
      %v1240 = vpop.f32.mrf.mxu0
      %1241 = vmatprep.mubr.f32.mxu0 0.0
      %1242 = vmatmul.mubr.f32.gmra.mxu0 %v1055
      %v1243 = vpop.f32.mrf.mxu0
      %v1244 = vadd.f32 0.0, %v1243
      %v1245 = vpop.f32.mrf.mxu0
      %1246 = vmatprep.mubr.f32.mxu0 0.0
      %1247 = vmatmul.mubr.f32.gmra.mxu0 %v1058
      %v1248 = vpop.f32.mrf.mxu0
      %v1249 = vadd.f32 0.0, %v1248
      %v1250 = vpop.f32.mrf.mxu0
      %1251 = vmatprep.mubr.f32.mxu0 0.0
      %1252 = vmatmul.mubr.f32.gmra.mxu0 %v1061
      %v1253 = vpop.f32.mrf.mxu0
      %v1254 = vadd.f32 0.0, %v1253
      %v1255 = vpop.f32.mrf.mxu0
      %1256 = vmatprep.mubr.f32.mxu0 0.0
      %1257 = vmatmul.mubr.f32.gmra.mxu0 %v1064
      %v1258 = vpop.f32.mrf.mxu0
      %v1259 = vadd.f32 0.0, %v1258
      %v1260 = vpop.f32.mrf.mxu0
      %1261 = vmatprep.mubr.f32.mxu0 0.0
      %1262 = vmatmul.mubr.f32.gmra.mxu0 %v1067
      %v1263 = vpop.f32.mrf.mxu0
      %v1264 = vadd.f32 0.0, %v1263
      %v1265 = vpop.f32.mrf.mxu0
      %1266 = vmatprep.mubr.f32.mxu0 0.0
      %1267 = vmatmul.mubr.f32.gmra.mxu0 %v1070
      %v1268 = vpop.f32.mrf.mxu0
      %v1269 = vadd.f32 0.0, %v1268
      %v1270 = vpop.f32.mrf.mxu0
      %1271 = vmatprep.mubr.f32.mxu0 0.0
      %1272 = vmatmul.mubr.f32.gmra.mxu0 %v1073
      %v1273 = vpop.f32.mrf.mxu0
      %v1274 = vadd.f32 0.0, %v1273
      %v1275 = vpop.f32.mrf.mxu0
      %1276 = vmatprep.mubr.f32.mxu0 0.0
      %1277 = vmatmul.mubr.f32.gmra.mxu0 %v1076
      %v1278 = vpop.f32.mrf.mxu0
      %v1279 = vadd.f32 0.0, %v1278
      %v1280 = vpop.f32.mrf.mxu0
      %1281 = vmatprep.mubr.f32.mxu0 0.0
      %1282 = vmatmul.mubr.f32.gmra.mxu0 %v1079
      %v1283 = vpop.f32.mrf.mxu0
      %v1284 = vadd.f32 0.0, %v1283
      %v1285 = vpop.f32.mrf.mxu0
      %1286 = vmatprep.mubr.f32.mxu0 0.0
      %1287 = vmatmul.mubr.f32.gmra.mxu0 %v1082
      %v1288 = vpop.f32.mrf.mxu0
      %v1289 = vadd.f32 0.0, %v1288
      %v1290 = vpop.f32.mrf.mxu0
      %1291 = vmatprep.mubr.f32.mxu0 0.0
      %1292 = vmatmul.mubr.f32.gmra.mxu0 %v1085
      %v1293 = vpop.f32.mrf.mxu0
      %v1294 = vadd.f32 0.0, %v1293
      %v1295 = vpop.f32.mrf.mxu0
      %1296 = vmatprep.mubr.f32.mxu0 0.0
      %1297 = vmatmul.mubr.f32.gmra.mxu0 %v1088
      %v1298 = vpop.f32.mrf.mxu0
      %v1299 = vadd.f32 0.0, %v1298
      %v1300 = vpop.f32.mrf.mxu0
      %1301 = vmatprep.mubr.f32.mxu0 0.0
      %1302 = vmatmul.mubr.f32.gmra.mxu0 %v1091
      %v1303 = vpop.f32.mrf.mxu0
      %v1304 = vadd.f32 0.0, %v1303
      %v1305 = vpop.f32.mrf.mxu0
      %1306 = vmatprep.mubr.f32.mxu0 0.0
      %1307 = vmatmul.mubr.f32.gmra.mxu0 %v1094
      %v1308 = vpop.f32.mrf.mxu0
      %v1309 = vadd.f32 0.0, %v1308
      %v1310 = vpop.f32.mrf.mxu0
      %1311 = vmatprep.mubr.f32.mxu0 0.0
      %1312 = vmatmul.mubr.f32.gmra.mxu0 %v1097
      %v1313 = vpop.f32.mrf.mxu0
      %v1314 = vadd.f32 0.0, %v1313
      %v1315 = vpop.f32.mrf.mxu0
      %1316 = vmatprep.mubr.f32.mxu0 0.0
      %1317 = vmatmul.mubr.f32.gmra.mxu0 %v1100
      %v1318 = vpop.f32.mrf.mxu0
      %v1319 = vadd.f32 0.0, %v1318
      %v1320 = vpop.f32.mrf.mxu0
      %1321 = vmatprep.mubr.f32.mxu0 0.0
      %1322 = vmatmul.mubr.f32.gmra.mxu0 %v1103
      %v1323 = vpop.f32.mrf.mxu0
      %v1324 = vadd.f32 0.0, %v1323
      %v1325 = vpop.f32.mrf.mxu0
      %1326 = vmatprep.mubr.f32.mxu0 0.0
      %1327 = vmatmul.mubr.f32.gmra.mxu0 %v1106
      %v1328 = vpop.f32.mrf.mxu0
      %v1329 = vadd.f32 0.0, %v1328
      %v1330 = vpop.f32.mrf.mxu0
      %1331 = vmatprep.mubr.f32.mxu0 0.0
      %1332 = vmatmul.mubr.f32.gmra.mxu0 %v1109
      %v1333 = vpop.f32.mrf.mxu0
      %v1334 = vadd.f32 0.0, %v1333
      %v1335 = vpop.f32.mrf.mxu0
      %1336 = vmatprep.mubr.f32.mxu0 0.0
      %1337 = vmatmul.mubr.f32.gmra.mxu0 %v1112
      %v1338 = vpop.f32.mrf.mxu0
      %v1339 = vadd.f32 0.0, %v1338
      %v1340 = vpop.f32.mrf.mxu0
      %1341 = vdwg.mxu0
      %v1342 = vadd.f32 %v794, %v1184
      %v1343 = vadd.f32 %v799, %v1189
      %v1344 = vadd.f32 %v804, %v1194
      %v1345 = vadd.f32 %v809, %v1199
      %v1346 = vadd.f32 %v814, %v1204
      %v1347 = vadd.f32 %v819, %v1209
      %v1348 = vadd.f32 %v824, %v1214
      %v1349 = vadd.f32 %v829, %v1219
      %v1350 = vadd.f32 %v834, %v1224
      %v1351 = vadd.f32 %v839, %v1229
      %v1352 = vadd.f32 %v844, %v1234
      %v1353 = vadd.f32 %v849, %v1239
      %v1354 = vadd.f32 %v854, %v1244
      %v1355 = vadd.f32 %v859, %v1249
      %v1356 = vadd.f32 %v864, %v1254
      %v1357 = vadd.f32 %v869, %v1259
      %v1358 = vadd.f32 %v874, %v1264
      %v1359 = vadd.f32 %v879, %v1269
      %v1360 = vadd.f32 %v884, %v1274
      %v1361 = vadd.f32 %v889, %v1279
      %v1362 = vadd.f32 %v894, %v1284
      %v1363 = vadd.f32 %v899, %v1289
      %v1364 = vadd.f32 %v904, %v1294
      %v1365 = vadd.f32 %v909, %v1299
      %v1366 = vadd.f32 %v914, %v1304
      %v1367 = vadd.f32 %v919, %v1309
      %v1368 = vadd.f32 %v924, %v1314
      %v1369 = vadd.f32 %v929, %v1319
      %v1370 = vadd.f32 %v934, %v1324
      %v1371 = vadd.f32 %v939, %v1329
      %v1372 = vadd.f32 %v944, %v1334
      %v1373 = vadd.f32 %v949, %v1339
      %s1374 = scalar_lea.vmem %s165, 24
      %v1375 = vld [vmem:[%s1374] sm:$0xff]
      %v1376 = vld [vmem:[%s1374 + $0x8] sm:$0xff]
      %v1377 = vld [vmem:[%s1374 + $0x18] sm:$0xff]
      %v1378 = vld [vmem:[%s1374 + $0x20] sm:$0xff]
      %v1379 = vld [vmem:[%s1374 + $0x30] sm:$0xff]
      %v1380 = vld [vmem:[%s1374 + $0x38] sm:$0xff]
      %v1381 = vld [vmem:[%s1374 + $0x48] sm:$0xff]
      %v1382 = vld [vmem:[%s1374 + $0x50] sm:$0xff]
      %v1383 = vld [vmem:[%s1374 + $0x60] sm:$0xff]
      %v1384 = vld [vmem:[%s1374 + $0x68] sm:$0xff]
      %v1385 = vld [vmem:[%s1374 + $0x78] sm:$0xff]
      %v1386 = vld [vmem:[%s1374 + $0x80] sm:$0xff]
      %v1387 = vld [vmem:[%s1374 + $0x90] sm:$0xff]
      %v1388 = vld [vmem:[%s1374 + $0x98] sm:$0xff]
      %v1389 = vld [vmem:[%s1374 + $0xa8] sm:$0xff]
      %v1390 = vld [vmem:[%s1374 + $0xb0] sm:$0xff]
      %v1391 = vld [vmem:[%s1374 + $0xc0] sm:$0xff]
      %v1392 = vld [vmem:[%s1374 + $0xc8] sm:$0xff]
      %v1393 = vld [vmem:[%s1374 + $0xd8] sm:$0xff]
      %v1394 = vld [vmem:[%s1374 + $0xe0] sm:$0xff]
      %v1395 = vld [vmem:[%s1374 + $0xf0] sm:$0xff]
      %v1396 = vld [vmem:[%s1374 + $0xf8] sm:$0xff]
      %v1397 = vld [vmem:[%s1374 + $0x108] sm:$0xff]
      %v1398 = vld [vmem:[%s1374 + $0x110] sm:$0xff]
      %v1399 = vld [vmem:[%s1374 + $0x120] sm:$0xff]
      %v1400 = vld [vmem:[%s1374 + $0x128] sm:$0xff]
      %v1401 = vld [vmem:[%s1374 + $0x138] sm:$0xff]
      %v1402 = vld [vmem:[%s1374 + $0x140] sm:$0xff]
      %v1403 = vld [vmem:[%s1374 + $0x150] sm:$0xff]
      %v1404 = vld [vmem:[%s1374 + $0x158] sm:$0xff]
      %v1405 = vld [vmem:[%s1374 + $0x168] sm:$0xff]
      %v1406 = vld [vmem:[%s1374 + $0x170] sm:$0xff]
      %v1407 = vmax.f32 %v1375, 0.0
      %v1408 = vmax.f32 %v1376, 0.0
      %v1409 = vmax.f32 %v1377, 0.0
      %v1410 = vmax.f32 %v1378, 0.0
      %v1411 = vmax.f32 %v1379, 0.0
      %v1412 = vmax.f32 %v1380, 0.0
      %v1413 = vmax.f32 %v1381, 0.0
      %v1414 = vmax.f32 %v1382, 0.0
      %v1415 = vmax.f32 %v1383, 0.0
      %v1416 = vmax.f32 %v1384, 0.0
      %v1417 = vmax.f32 %v1385, 0.0
      %v1418 = vmax.f32 %v1386, 0.0
      %v1419 = vmax.f32 %v1387, 0.0
      %v1420 = vmax.f32 %v1388, 0.0
      %v1421 = vmax.f32 %v1389, 0.0
      %v1422 = vmax.f32 %v1390, 0.0
      %v1423 = vmax.f32 %v1391, 0.0
      %v1424 = vmax.f32 %v1392, 0.0
      %v1425 = vmax.f32 %v1393, 0.0
      %v1426 = vmax.f32 %v1394, 0.0
      %v1427 = vmax.f32 %v1395, 0.0
      %v1428 = vmax.f32 %v1396, 0.0
      %v1429 = vmax.f32 %v1397, 0.0
      %v1430 = vmax.f32 %v1398, 0.0
      %v1431 = vmax.f32 %v1399, 0.0
      %v1432 = vmax.f32 %v1400, 0.0
      %v1433 = vmax.f32 %v1401, 0.0
      %v1434 = vmax.f32 %v1402, 0.0
      %v1435 = vmax.f32 %v1403, 0.0
      %v1436 = vmax.f32 %v1404, 0.0
      %v1437 = vmax.f32 %v1405, 0.0
      %v1438 = vmax.f32 %v1406, 0.0
      %s1439 = scalar_lea.vmem %s1, 12
      %v1440 = vld [vmem:[%s1439] sm:$0xf]
      %v1442 = vsel %vm302, %v1407, 0
      %v1445 = vsel %vm302, %v1408, 0
      %v1448 = vsel %vm302, %v1409, 0
      %v1451 = vsel %vm302, %v1410, 0
      %v1454 = vsel %vm302, %v1411, 0
      %v1457 = vsel %vm302, %v1412, 0
      %v1460 = vsel %vm302, %v1413, 0
      %v1463 = vsel %vm302, %v1414, 0
      %v1466 = vsel %vm302, %v1415, 0
      %v1469 = vsel %vm302, %v1416, 0
      %v1472 = vsel %vm302, %v1417, 0
      %v1475 = vsel %vm302, %v1418, 0
      %v1478 = vsel %vm302, %v1419, 0
      %v1481 = vsel %vm302, %v1420, 0
      %v1484 = vsel %vm302, %v1421, 0
      %v1487 = vsel %vm302, %v1422, 0
      %v1490 = vsel %vm302, %v1423, 0
      %v1493 = vsel %vm302, %v1424, 0
      %v1496 = vsel %vm302, %v1425, 0
      %v1499 = vsel %vm302, %v1426, 0
      %v1502 = vsel %vm302, %v1427, 0
      %v1505 = vsel %vm302, %v1428, 0
      %v1508 = vsel %vm302, %v1429, 0
      %v1511 = vsel %vm302, %v1430, 0
      %v1514 = vsel %vm302, %v1431, 0
      %v1517 = vsel %vm302, %v1432, 0
      %v1520 = vsel %vm302, %v1433, 0
      %v1523 = vsel %vm302, %v1434, 0
      %v1526 = vsel %vm302, %v1435, 0
      %v1529 = vsel %vm302, %v1436, 0
      %v1532 = vsel %vm302, %v1437, 0
      %v1535 = vsel %vm302, %v1438, 0
      %v1538 = vsel %vm399, %v1440, 0
      %1540 = vmatprep.subr.mxu0 0.0
      %1541 = vmatpush1.msra.mxu0 0.0
      %1542 = vmatprep.subr.mxu0 0.0
      %1543 = vmatpush1.msra.mxu0 0.0
      %1544 = vmatprep.subr.mxu0 0.0
      %1545 = vmatpush1.msra.mxu0 0.0
      %1546 = vmatprep.subr.mxu0 0.0
      %1547 = vmatpush1.msra.mxu0 0.0
      %1548 = vmatprep.subr.mxu0 0.0
      %1549 = vmatpush1.msra.mxu0 0.0
      %1550 = vmatprep.subr.mxu0 0.0
      %1551 = vmatpush1.msra.mxu0 0.0
      %1552 = vmatprep.subr.mxu0 0.0
      %1553 = vmatpush1.msra.mxu0 0.0
      %1554 = vmatprep.subr.mxu0 0.0
      %1555 = vmatpush1.msra.mxu0 0.0
      %1556 = vmatprep.subr.mxu0 0.0
      %1557 = vmatpush1.msra.mxu0 0.0
      %1558 = vmatprep.subr.mxu0 0.0
      %1559 = vmatpush1.msra.mxu0 0.0
      %1560 = vmatprep.subr.mxu0 0.0
      %1561 = vmatpush1.msra.mxu0 0.0
      %1562 = vmatprep.subr.mxu0 0.0
      %1563 = vmatpush1.msra.mxu0 0.0
      %1564 = vmatprep.subr.mxu0 0.0
      %1565 = vmatpush1.msra.mxu0 0.0
      %1566 = vmatprep.subr.mxu0 0.0
      %1567 = vmatpush1.msra.mxu0 0.0
      %1568 = vmatprep.subr.mxu0 0.0
      %1569 = vmatpush1.msra.mxu0 0.0
      %1570 = vmatprep.subr.mxu0 0.0
      %1571 = vmatpush1.msra.mxu0 %v1538
      %1572 = vmatprep.subr.mxu0 0.0
      %1573 = vmatpush2.msra.mxu0 0.0
      %1574 = vmatprep.subr.mxu0 0.0
      %1575 = vmatpush2.msra.mxu0 0.0
      %1576 = vmatprep.subr.mxu0 0.0
      %1577 = vmatpush2.msra.mxu0 0.0
      %1578 = vmatprep.subr.mxu0 0.0
      %1579 = vmatpush2.msra.mxu0 0.0
      %1580 = vmatprep.subr.mxu0 0.0
      %1581 = vmatpush2.msra.mxu0 0.0
      %1582 = vmatprep.subr.mxu0 0.0
      %1583 = vmatpush2.msra.mxu0 0.0
      %1584 = vmatprep.subr.mxu0 0.0
      %1585 = vmatpush2.msra.mxu0 0.0
      %1586 = vmatprep.subr.mxu0 0.0
      %1587 = vmatpush2.msra.mxu0 0.0
      %1588 = vmatprep.subr.mxu0 0.0
      %1589 = vmatpush2.msra.mxu0 0.0
      %1590 = vmatprep.subr.mxu0 0.0
      %1591 = vmatpush2.msra.mxu0 0.0
      %1592 = vmatprep.subr.mxu0 0.0
      %1593 = vmatpush2.msra.mxu0 0.0
      %1594 = vmatprep.subr.mxu0 0.0
      %1595 = vmatpush2.msra.mxu0 0.0
      %1596 = vmatprep.subr.mxu0 0.0
      %1597 = vmatpush2.msra.mxu0 0.0
      %1598 = vmatprep.subr.mxu0 0.0
      %1599 = vmatpush2.msra.mxu0 0.0
      %1600 = vmatprep.subr.mxu0 0.0
      %1601 = vmatpush2.msra.mxu0 0.0
      %1602 = vmatprep.subr.mxu0 0.0
      %1603 = vmatpush2.msra.mxu0 0.0
      %1604 = vmatprep.mubr.f32.mxu0 0.0
      %1605 = vmatmul.mubr.f32.gmra.mxu0 %v1442
      %v1606 = vpop.f32.mrf.mxu0
      %v1607 = vadd.f32 0.0, %v1606
      %v1608 = vpop.f32.mrf.mxu0
      %1609 = vmatprep.mubr.f32.mxu0 0.0
      %1610 = vmatmul.mubr.f32.gmra.mxu0 %v1445
      %v1611 = vpop.f32.mrf.mxu0
      %v1612 = vadd.f32 0.0, %v1611
      %v1613 = vpop.f32.mrf.mxu0
      %1614 = vmatprep.mubr.f32.mxu0 0.0
      %1615 = vmatmul.mubr.f32.gmra.mxu0 %v1448
      %v1616 = vpop.f32.mrf.mxu0
      %v1617 = vadd.f32 0.0, %v1616
      %v1618 = vpop.f32.mrf.mxu0
      %1619 = vmatprep.mubr.f32.mxu0 0.0
      %1620 = vmatmul.mubr.f32.gmra.mxu0 %v1451
      %v1621 = vpop.f32.mrf.mxu0
      %v1622 = vadd.f32 0.0, %v1621
      %v1623 = vpop.f32.mrf.mxu0
      %1624 = vmatprep.mubr.f32.mxu0 0.0
      %1625 = vmatmul.mubr.f32.gmra.mxu0 %v1454
      %v1626 = vpop.f32.mrf.mxu0
      %v1627 = vadd.f32 0.0, %v1626
      %v1628 = vpop.f32.mrf.mxu0
      %1629 = vmatprep.mubr.f32.mxu0 0.0
      %1630 = vmatmul.mubr.f32.gmra.mxu0 %v1457
      %v1631 = vpop.f32.mrf.mxu0
      %v1632 = vadd.f32 0.0, %v1631
      %v1633 = vpop.f32.mrf.mxu0
      %1634 = vmatprep.mubr.f32.mxu0 0.0
      %1635 = vmatmul.mubr.f32.gmra.mxu0 %v1460
      %v1636 = vpop.f32.mrf.mxu0
      %v1637 = vadd.f32 0.0, %v1636
      %v1638 = vpop.f32.mrf.mxu0
      %1639 = vmatprep.mubr.f32.mxu0 0.0
      %1640 = vmatmul.mubr.f32.gmra.mxu0 %v1463
      %v1641 = vpop.f32.mrf.mxu0
      %v1642 = vadd.f32 0.0, %v1641
      %v1643 = vpop.f32.mrf.mxu0
      %1644 = vmatprep.mubr.f32.mxu0 0.0
      %1645 = vmatmul.mubr.f32.gmra.mxu0 %v1466
      %v1646 = vpop.f32.mrf.mxu0
      %v1647 = vadd.f32 0.0, %v1646
      %v1648 = vpop.f32.mrf.mxu0
      %1649 = vmatprep.mubr.f32.mxu0 0.0
      %1650 = vmatmul.mubr.f32.gmra.mxu0 %v1469
      %v1651 = vpop.f32.mrf.mxu0
      %v1652 = vadd.f32 0.0, %v1651
      %v1653 = vpop.f32.mrf.mxu0
      %1654 = vmatprep.mubr.f32.mxu0 0.0
      %1655 = vmatmul.mubr.f32.gmra.mxu0 %v1472
      %v1656 = vpop.f32.mrf.mxu0
      %v1657 = vadd.f32 0.0, %v1656
      %v1658 = vpop.f32.mrf.mxu0
      %1659 = vmatprep.mubr.f32.mxu0 0.0
      %1660 = vmatmul.mubr.f32.gmra.mxu0 %v1475
      %v1661 = vpop.f32.mrf.mxu0
      %v1662 = vadd.f32 0.0, %v1661
      %v1663 = vpop.f32.mrf.mxu0
      %1664 = vmatprep.mubr.f32.mxu0 0.0
      %1665 = vmatmul.mubr.f32.gmra.mxu0 %v1478
      %v1666 = vpop.f32.mrf.mxu0
      %v1667 = vadd.f32 0.0, %v1666
      %v1668 = vpop.f32.mrf.mxu0
      %1669 = vmatprep.mubr.f32.mxu0 0.0
      %1670 = vmatmul.mubr.f32.gmra.mxu0 %v1481
      %v1671 = vpop.f32.mrf.mxu0
      %v1672 = vadd.f32 0.0, %v1671
      %v1673 = vpop.f32.mrf.mxu0
      %1674 = vmatprep.mubr.f32.mxu0 0.0
      %1675 = vmatmul.mubr.f32.gmra.mxu0 %v1484
      %v1676 = vpop.f32.mrf.mxu0
      %v1677 = vadd.f32 0.0, %v1676
      %v1678 = vpop.f32.mrf.mxu0
      %1679 = vmatprep.mubr.f32.mxu0 0.0
      %1680 = vmatmul.mubr.f32.gmra.mxu0 %v1487
      %v1681 = vpop.f32.mrf.mxu0
      %v1682 = vadd.f32 0.0, %v1681
      %v1683 = vpop.f32.mrf.mxu0
      %1684 = vmatprep.mubr.f32.mxu0 0.0
      %1685 = vmatmul.mubr.f32.gmra.mxu0 %v1490
      %v1686 = vpop.f32.mrf.mxu0
      %v1687 = vadd.f32 0.0, %v1686
      %v1688 = vpop.f32.mrf.mxu0
      %1689 = vmatprep.mubr.f32.mxu0 0.0
      %1690 = vmatmul.mubr.f32.gmra.mxu0 %v1493
      %v1691 = vpop.f32.mrf.mxu0
      %v1692 = vadd.f32 0.0, %v1691
      %v1693 = vpop.f32.mrf.mxu0
      %1694 = vmatprep.mubr.f32.mxu0 0.0
      %1695 = vmatmul.mubr.f32.gmra.mxu0 %v1496
      %v1696 = vpop.f32.mrf.mxu0
      %v1697 = vadd.f32 0.0, %v1696
      %v1698 = vpop.f32.mrf.mxu0
      %1699 = vmatprep.mubr.f32.mxu0 0.0
      %1700 = vmatmul.mubr.f32.gmra.mxu0 %v1499
      %v1701 = vpop.f32.mrf.mxu0
      %v1702 = vadd.f32 0.0, %v1701
      %v1703 = vpop.f32.mrf.mxu0
      %1704 = vmatprep.mubr.f32.mxu0 0.0
      %1705 = vmatmul.mubr.f32.gmra.mxu0 %v1502
      %v1706 = vpop.f32.mrf.mxu0
      %v1707 = vadd.f32 0.0, %v1706
      %v1708 = vpop.f32.mrf.mxu0
      %1709 = vmatprep.mubr.f32.mxu0 0.0
      %1710 = vmatmul.mubr.f32.gmra.mxu0 %v1505
      %v1711 = vpop.f32.mrf.mxu0
      %v1712 = vadd.f32 0.0, %v1711
      %v1713 = vpop.f32.mrf.mxu0
      %1714 = vmatprep.mubr.f32.mxu0 0.0
      %1715 = vmatmul.mubr.f32.gmra.mxu0 %v1508
      %v1716 = vpop.f32.mrf.mxu0
      %v1717 = vadd.f32 0.0, %v1716
      %v1718 = vpop.f32.mrf.mxu0
      %1719 = vmatprep.mubr.f32.mxu0 0.0
      %1720 = vmatmul.mubr.f32.gmra.mxu0 %v1511
      %v1721 = vpop.f32.mrf.mxu0
      %v1722 = vadd.f32 0.0, %v1721
      %v1723 = vpop.f32.mrf.mxu0
      %1724 = vmatprep.mubr.f32.mxu0 0.0
      %1725 = vmatmul.mubr.f32.gmra.mxu0 %v1514
      %v1726 = vpop.f32.mrf.mxu0
      %v1727 = vadd.f32 0.0, %v1726
      %v1728 = vpop.f32.mrf.mxu0
      %1729 = vmatprep.mubr.f32.mxu0 0.0
      %1730 = vmatmul.mubr.f32.gmra.mxu0 %v1517
      %v1731 = vpop.f32.mrf.mxu0
      %v1732 = vadd.f32 0.0, %v1731
      %v1733 = vpop.f32.mrf.mxu0
      %1734 = vmatprep.mubr.f32.mxu0 0.0
      %1735 = vmatmul.mubr.f32.gmra.mxu0 %v1520
      %v1736 = vpop.f32.mrf.mxu0
      %v1737 = vadd.f32 0.0, %v1736
      %v1738 = vpop.f32.mrf.mxu0
      %1739 = vmatprep.mubr.f32.mxu0 0.0
      %1740 = vmatmul.mubr.f32.gmra.mxu0 %v1523
      %v1741 = vpop.f32.mrf.mxu0
      %v1742 = vadd.f32 0.0, %v1741
      %v1743 = vpop.f32.mrf.mxu0
      %1744 = vmatprep.mubr.f32.mxu0 0.0
      %1745 = vmatmul.mubr.f32.gmra.mxu0 %v1526
      %v1746 = vpop.f32.mrf.mxu0
      %v1747 = vadd.f32 0.0, %v1746
      %v1748 = vpop.f32.mrf.mxu0
      %1749 = vmatprep.mubr.f32.mxu0 0.0
      %1750 = vmatmul.mubr.f32.gmra.mxu0 %v1529
      %v1751 = vpop.f32.mrf.mxu0
      %v1752 = vadd.f32 0.0, %v1751
      %v1753 = vpop.f32.mrf.mxu0
      %1754 = vmatprep.mubr.f32.mxu0 0.0
      %1755 = vmatmul.mubr.f32.gmra.mxu0 %v1532
      %v1756 = vpop.f32.mrf.mxu0
      %v1757 = vadd.f32 0.0, %v1756
      %v1758 = vpop.f32.mrf.mxu0
      %1759 = vmatprep.mubr.f32.mxu0 0.0
      %1760 = vmatmul.mubr.f32.gmra.mxu0 %v1535
      %v1761 = vpop.f32.mrf.mxu0
      %v1762 = vadd.f32 0.0, %v1761
      %v1763 = vpop.f32.mrf.mxu0
      %1764 = vdwg.mxu0
      %v1765 = vadd.f32 %v1342, %v1607
      %v1766 = vadd.f32 %v1343, %v1612
      %v1767 = vadd.f32 %v1344, %v1617
      %v1768 = vadd.f32 %v1345, %v1622
      %v1769 = vadd.f32 %v1346, %v1627
      %v1770 = vadd.f32 %v1347, %v1632
      %v1771 = vadd.f32 %v1348, %v1637
      %v1772 = vadd.f32 %v1349, %v1642
      %v1773 = vadd.f32 %v1350, %v1647
      %v1774 = vadd.f32 %v1351, %v1652
      %v1775 = vadd.f32 %v1352, %v1657
      %v1776 = vadd.f32 %v1353, %v1662
      %v1777 = vadd.f32 %v1354, %v1667
      %v1778 = vadd.f32 %v1355, %v1672
      %v1779 = vadd.f32 %v1356, %v1677
      %v1780 = vadd.f32 %v1357, %v1682
      %v1781 = vadd.f32 %v1358, %v1687
      %v1782 = vadd.f32 %v1359, %v1692
      %v1783 = vadd.f32 %v1360, %v1697
      %v1784 = vadd.f32 %v1361, %v1702
      %v1785 = vadd.f32 %v1362, %v1707
      %v1786 = vadd.f32 %v1363, %v1712
      %v1787 = vadd.f32 %v1364, %v1717
      %v1788 = vadd.f32 %v1365, %v1722
      %v1789 = vadd.f32 %v1366, %v1727
      %v1790 = vadd.f32 %v1367, %v1732
      %v1791 = vadd.f32 %v1368, %v1737
      %v1792 = vadd.f32 %v1369, %v1742
      %v1793 = vadd.f32 %v1370, %v1747
      %v1794 = vadd.f32 %v1371, %v1752
      %v1795 = vadd.f32 %v1372, %v1757
      %v1796 = vadd.f32 %v1373, %v1762
      %v1797 = vld [vmem:[%s1374 + $0x1] sm:$0xff]
      %v1798 = vld [vmem:[%s1374 + $0x9] sm:$0xff]
      %v1799 = vld [vmem:[%s1374 + $0x19] sm:$0xff]
      %v1800 = vld [vmem:[%s1374 + $0x21] sm:$0xff]
      %v1801 = vld [vmem:[%s1374 + $0x31] sm:$0xff]
      %v1802 = vld [vmem:[%s1374 + $0x39] sm:$0xff]
      %v1803 = vld [vmem:[%s1374 + $0x49] sm:$0xff]
      %v1804 = vld [vmem:[%s1374 + $0x51] sm:$0xff]
      %v1805 = vld [vmem:[%s1374 + $0x61] sm:$0xff]
      %v1806 = vld [vmem:[%s1374 + $0x69] sm:$0xff]
      %v1807 = vld [vmem:[%s1374 + $0x79] sm:$0xff]
      %v1808 = vld [vmem:[%s1374 + $0x81] sm:$0xff]
      %v1809 = vld [vmem:[%s1374 + $0x91] sm:$0xff]
      %v1810 = vld [vmem:[%s1374 + $0x99] sm:$0xff]
      %v1811 = vld [vmem:[%s1374 + $0xa9] sm:$0xff]
      %v1812 = vld [vmem:[%s1374 + $0xb1] sm:$0xff]
      %v1813 = vld [vmem:[%s1374 + $0xc1] sm:$0xff]
      %v1814 = vld [vmem:[%s1374 + $0xc9] sm:$0xff]
      %v1815 = vld [vmem:[%s1374 + $0xd9] sm:$0xff]
      %v1816 = vld [vmem:[%s1374 + $0xe1] sm:$0xff]
      %v1817 = vld [vmem:[%s1374 + $0xf1] sm:$0xff]
      %v1818 = vld [vmem:[%s1374 + $0xf9] sm:$0xff]
      %v1819 = vld [vmem:[%s1374 + $0x109] sm:$0xff]
      %v1820 = vld [vmem:[%s1374 + $0x111] sm:$0xff]
      %v1821 = vld [vmem:[%s1374 + $0x121] sm:$0xff]
      %v1822 = vld [vmem:[%s1374 + $0x129] sm:$0xff]
      %v1823 = vld [vmem:[%s1374 + $0x139] sm:$0xff]
      %v1824 = vld [vmem:[%s1374 + $0x141] sm:$0xff]
      %v1825 = vld [vmem:[%s1374 + $0x151] sm:$0xff]
      %v1826 = vld [vmem:[%s1374 + $0x159] sm:$0xff]
      %v1827 = vld [vmem:[%s1374 + $0x169] sm:$0xff]
      %v1828 = vld [vmem:[%s1374 + $0x171] sm:$0xff]
      %v1829 = vmax.f32 %v1797, 0.0
      %v1830 = vmax.f32 %v1798, 0.0
      %v1831 = vmax.f32 %v1799, 0.0
      %v1832 = vmax.f32 %v1800, 0.0
      %v1833 = vmax.f32 %v1801, 0.0
      %v1834 = vmax.f32 %v1802, 0.0
      %v1835 = vmax.f32 %v1803, 0.0
      %v1836 = vmax.f32 %v1804, 0.0
      %v1837 = vmax.f32 %v1805, 0.0
      %v1838 = vmax.f32 %v1806, 0.0
      %v1839 = vmax.f32 %v1807, 0.0
      %v1840 = vmax.f32 %v1808, 0.0
      %v1841 = vmax.f32 %v1809, 0.0
      %v1842 = vmax.f32 %v1810, 0.0
      %v1843 = vmax.f32 %v1811, 0.0
      %v1844 = vmax.f32 %v1812, 0.0
      %v1845 = vmax.f32 %v1813, 0.0
      %v1846 = vmax.f32 %v1814, 0.0
      %v1847 = vmax.f32 %v1815, 0.0
      %v1848 = vmax.f32 %v1816, 0.0
      %v1849 = vmax.f32 %v1817, 0.0
      %v1850 = vmax.f32 %v1818, 0.0
      %v1851 = vmax.f32 %v1819, 0.0
      %v1852 = vmax.f32 %v1820, 0.0
      %v1853 = vmax.f32 %v1821, 0.0
      %v1854 = vmax.f32 %v1822, 0.0
      %v1855 = vmax.f32 %v1823, 0.0
      %v1856 = vmax.f32 %v1824, 0.0
      %v1857 = vmax.f32 %v1825, 0.0
      %v1858 = vmax.f32 %v1826, 0.0
      %v1859 = vmax.f32 %v1827, 0.0
      %v1860 = vmax.f32 %v1828, 0.0
      %s1861 = scalar_lea.vmem %s1, 16
      %v1862 = vld [vmem:[%s1861] sm:$0xf]
      %v1864 = vsel %vm302, %v1829, 0
      %v1867 = vsel %vm302, %v1830, 0
      %v1870 = vsel %vm302, %v1831, 0
      %v1873 = vsel %vm302, %v1832, 0
      %v1876 = vsel %vm302, %v1833, 0
      %v1879 = vsel %vm302, %v1834, 0
      %v1882 = vsel %vm302, %v1835, 0
      %v1885 = vsel %vm302, %v1836, 0
      %v1888 = vsel %vm302, %v1837, 0
      %v1891 = vsel %vm302, %v1838, 0
      %v1894 = vsel %vm302, %v1839, 0
      %v1897 = vsel %vm302, %v1840, 0
      %v1900 = vsel %vm302, %v1841, 0
      %v1903 = vsel %vm302, %v1842, 0
      %v1906 = vsel %vm302, %v1843, 0
      %v1909 = vsel %vm302, %v1844, 0
      %v1912 = vsel %vm302, %v1845, 0
      %v1915 = vsel %vm302, %v1846, 0
      %v1918 = vsel %vm302, %v1847, 0
      %v1921 = vsel %vm302, %v1848, 0
      %v1924 = vsel %vm302, %v1849, 0
      %v1927 = vsel %vm302, %v1850, 0
      %v1930 = vsel %vm302, %v1851, 0
      %v1933 = vsel %vm302, %v1852, 0
      %v1936 = vsel %vm302, %v1853, 0
      %v1939 = vsel %vm302, %v1854, 0
      %v1942 = vsel %vm302, %v1855, 0
      %v1945 = vsel %vm302, %v1856, 0
      %v1948 = vsel %vm302, %v1857, 0
      %v1951 = vsel %vm302, %v1858, 0
      %v1954 = vsel %vm302, %v1859, 0
      %v1957 = vsel %vm302, %v1860, 0
      %v1960 = vsel %vm399, %v1862, 0
      %1962 = vmatprep.subr.mxu0 0.0
      %1963 = vmatpush1.msra.mxu0 0.0
      %1964 = vmatprep.subr.mxu0 0.0
      %1965 = vmatpush1.msra.mxu0 0.0
      %1966 = vmatprep.subr.mxu0 0.0
      %1967 = vmatpush1.msra.mxu0 0.0
      %1968 = vmatprep.subr.mxu0 0.0
      %1969 = vmatpush1.msra.mxu0 0.0
      %1970 = vmatprep.subr.mxu0 0.0
      %1971 = vmatpush1.msra.mxu0 0.0
      %1972 = vmatprep.subr.mxu0 0.0
      %1973 = vmatpush1.msra.mxu0 0.0
      %1974 = vmatprep.subr.mxu0 0.0
      %1975 = vmatpush1.msra.mxu0 0.0
      %1976 = vmatprep.subr.mxu0 0.0
      %1977 = vmatpush1.msra.mxu0 0.0
      %1978 = vmatprep.subr.mxu0 0.0
      %1979 = vmatpush1.msra.mxu0 0.0
      %1980 = vmatprep.subr.mxu0 0.0
      %1981 = vmatpush1.msra.mxu0 0.0
      %1982 = vmatprep.subr.mxu0 0.0
      %1983 = vmatpush1.msra.mxu0 0.0
      %1984 = vmatprep.subr.mxu0 0.0
      %1985 = vmatpush1.msra.mxu0 0.0
      %1986 = vmatprep.subr.mxu0 0.0
      %1987 = vmatpush1.msra.mxu0 0.0
      %1988 = vmatprep.subr.mxu0 0.0
      %1989 = vmatpush1.msra.mxu0 0.0
      %1990 = vmatprep.subr.mxu0 0.0
      %1991 = vmatpush1.msra.mxu0 0.0
      %1992 = vmatprep.subr.mxu0 0.0
      %1993 = vmatpush1.msra.mxu0 %v1960
      %1994 = vmatprep.subr.mxu0 0.0
      %1995 = vmatpush2.msra.mxu0 0.0
      %1996 = vmatprep.subr.mxu0 0.0
      %1997 = vmatpush2.msra.mxu0 0.0
      %1998 = vmatprep.subr.mxu0 0.0
      %1999 = vmatpush2.msra.mxu0 0.0
      %2000 = vmatprep.subr.mxu0 0.0
      %2001 = vmatpush2.msra.mxu0 0.0
      %2002 = vmatprep.subr.mxu0 0.0
      %2003 = vmatpush2.msra.mxu0 0.0
      %2004 = vmatprep.subr.mxu0 0.0
      %2005 = vmatpush2.msra.mxu0 0.0
      %2006 = vmatprep.subr.mxu0 0.0
      %2007 = vmatpush2.msra.mxu0 0.0
      %2008 = vmatprep.subr.mxu0 0.0
      %2009 = vmatpush2.msra.mxu0 0.0
      %2010 = vmatprep.subr.mxu0 0.0
      %2011 = vmatpush2.msra.mxu0 0.0
      %2012 = vmatprep.subr.mxu0 0.0
      %2013 = vmatpush2.msra.mxu0 0.0
      %2014 = vmatprep.subr.mxu0 0.0
      %2015 = vmatpush2.msra.mxu0 0.0
      %2016 = vmatprep.subr.mxu0 0.0
      %2017 = vmatpush2.msra.mxu0 0.0
      %2018 = vmatprep.subr.mxu0 0.0
      %2019 = vmatpush2.msra.mxu0 0.0
      %2020 = vmatprep.subr.mxu0 0.0
      %2021 = vmatpush2.msra.mxu0 0.0
      %2022 = vmatprep.subr.mxu0 0.0
      %2023 = vmatpush2.msra.mxu0 0.0
      %2024 = vmatprep.subr.mxu0 0.0
      %2025 = vmatpush2.msra.mxu0 0.0
      %2026 = vmatprep.mubr.f32.mxu0 0.0
      %2027 = vmatmul.mubr.f32.gmra.mxu0 %v1864
      %v2028 = vpop.f32.mrf.mxu0
      %v2029 = vadd.f32 0.0, %v2028
      %v2030 = vpop.f32.mrf.mxu0
      %2031 = vmatprep.mubr.f32.mxu0 0.0
      %2032 = vmatmul.mubr.f32.gmra.mxu0 %v1867
      %v2033 = vpop.f32.mrf.mxu0
      %v2034 = vadd.f32 0.0, %v2033
      %v2035 = vpop.f32.mrf.mxu0
      %2036 = vmatprep.mubr.f32.mxu0 0.0
      %2037 = vmatmul.mubr.f32.gmra.mxu0 %v1870
      %v2038 = vpop.f32.mrf.mxu0
      %v2039 = vadd.f32 0.0, %v2038
      %v2040 = vpop.f32.mrf.mxu0
      %2041 = vmatprep.mubr.f32.mxu0 0.0
      %2042 = vmatmul.mubr.f32.gmra.mxu0 %v1873
      %v2043 = vpop.f32.mrf.mxu0
      %v2044 = vadd.f32 0.0, %v2043
      %v2045 = vpop.f32.mrf.mxu0
      %2046 = vmatprep.mubr.f32.mxu0 0.0
      %2047 = vmatmul.mubr.f32.gmra.mxu0 %v1876
      %v2048 = vpop.f32.mrf.mxu0
      %v2049 = vadd.f32 0.0, %v2048
      %v2050 = vpop.f32.mrf.mxu0
      %2051 = vmatprep.mubr.f32.mxu0 0.0
      %2052 = vmatmul.mubr.f32.gmra.mxu0 %v1879
      %v2053 = vpop.f32.mrf.mxu0
      %v2054 = vadd.f32 0.0, %v2053
      %v2055 = vpop.f32.mrf.mxu0
      %2056 = vmatprep.mubr.f32.mxu0 0.0
      %2057 = vmatmul.mubr.f32.gmra.mxu0 %v1882
      %v2058 = vpop.f32.mrf.mxu0
      %v2059 = vadd.f32 0.0, %v2058
      %v2060 = vpop.f32.mrf.mxu0
      %2061 = vmatprep.mubr.f32.mxu0 0.0
      %2062 = vmatmul.mubr.f32.gmra.mxu0 %v1885
      %v2063 = vpop.f32.mrf.mxu0
      %v2064 = vadd.f32 0.0, %v2063
      %v2065 = vpop.f32.mrf.mxu0
      %2066 = vmatprep.mubr.f32.mxu0 0.0
      %2067 = vmatmul.mubr.f32.gmra.mxu0 %v1888
      %v2068 = vpop.f32.mrf.mxu0
      %v2069 = vadd.f32 0.0, %v2068
      %v2070 = vpop.f32.mrf.mxu0
      %2071 = vmatprep.mubr.f32.mxu0 0.0
      %2072 = vmatmul.mubr.f32.gmra.mxu0 %v1891
      %v2073 = vpop.f32.mrf.mxu0
      %v2074 = vadd.f32 0.0, %v2073
      %v2075 = vpop.f32.mrf.mxu0
      %2076 = vmatprep.mubr.f32.mxu0 0.0
      %2077 = vmatmul.mubr.f32.gmra.mxu0 %v1894
      %v2078 = vpop.f32.mrf.mxu0
      %v2079 = vadd.f32 0.0, %v2078
      %v2080 = vpop.f32.mrf.mxu0
      %2081 = vmatprep.mubr.f32.mxu0 0.0
      %2082 = vmatmul.mubr.f32.gmra.mxu0 %v1897
      %v2083 = vpop.f32.mrf.mxu0
      %v2084 = vadd.f32 0.0, %v2083
      %v2085 = vpop.f32.mrf.mxu0
      %2086 = vmatprep.mubr.f32.mxu0 0.0
      %2087 = vmatmul.mubr.f32.gmra.mxu0 %v1900
      %v2088 = vpop.f32.mrf.mxu0
      %v2089 = vadd.f32 0.0, %v2088
      %v2090 = vpop.f32.mrf.mxu0
      %2091 = vmatprep.mubr.f32.mxu0 0.0
      %2092 = vmatmul.mubr.f32.gmra.mxu0 %v1903
      %v2093 = vpop.f32.mrf.mxu0
      %v2094 = vadd.f32 0.0, %v2093
      %v2095 = vpop.f32.mrf.mxu0
      %2096 = vmatprep.mubr.f32.mxu0 0.0
      %2097 = vmatmul.mubr.f32.gmra.mxu0 %v1906
      %v2098 = vpop.f32.mrf.mxu0
      %v2099 = vadd.f32 0.0, %v2098
      %v2100 = vpop.f32.mrf.mxu0
      %2101 = vmatprep.mubr.f32.mxu0 0.0
      %2102 = vmatmul.mubr.f32.gmra.mxu0 %v1909
      %v2103 = vpop.f32.mrf.mxu0
      %v2104 = vadd.f32 0.0, %v2103
      %v2105 = vpop.f32.mrf.mxu0
      %2106 = vmatprep.mubr.f32.mxu0 0.0
      %2107 = vmatmul.mubr.f32.gmra.mxu0 %v1912
      %v2108 = vpop.f32.mrf.mxu0
      %v2109 = vadd.f32 0.0, %v2108
      %v2110 = vpop.f32.mrf.mxu0
      %2111 = vmatprep.mubr.f32.mxu0 0.0
      %2112 = vmatmul.mubr.f32.gmra.mxu0 %v1915
      %v2113 = vpop.f32.mrf.mxu0
      %v2114 = vadd.f32 0.0, %v2113
      %v2115 = vpop.f32.mrf.mxu0
      %2116 = vmatprep.mubr.f32.mxu0 0.0
      %2117 = vmatmul.mubr.f32.gmra.mxu0 %v1918
      %v2118 = vpop.f32.mrf.mxu0
      %v2119 = vadd.f32 0.0, %v2118
      %v2120 = vpop.f32.mrf.mxu0
      %2121 = vmatprep.mubr.f32.mxu0 0.0
      %2122 = vmatmul.mubr.f32.gmra.mxu0 %v1921
      %v2123 = vpop.f32.mrf.mxu0
      %v2124 = vadd.f32 0.0, %v2123
      %v2125 = vpop.f32.mrf.mxu0
      %2126 = vmatprep.mubr.f32.mxu0 0.0
      %2127 = vmatmul.mubr.f32.gmra.mxu0 %v1924
      %v2128 = vpop.f32.mrf.mxu0
      %v2129 = vadd.f32 0.0, %v2128
      %v2130 = vpop.f32.mrf.mxu0
      %2131 = vmatprep.mubr.f32.mxu0 0.0
      %2132 = vmatmul.mubr.f32.gmra.mxu0 %v1927
      %v2133 = vpop.f32.mrf.mxu0
      %v2134 = vadd.f32 0.0, %v2133
      %v2135 = vpop.f32.mrf.mxu0
      %2136 = vmatprep.mubr.f32.mxu0 0.0
      %2137 = vmatmul.mubr.f32.gmra.mxu0 %v1930
      %v2138 = vpop.f32.mrf.mxu0
      %v2139 = vadd.f32 0.0, %v2138
      %v2140 = vpop.f32.mrf.mxu0
      %2141 = vmatprep.mubr.f32.mxu0 0.0
      %2142 = vmatmul.mubr.f32.gmra.mxu0 %v1933
      %v2143 = vpop.f32.mrf.mxu0
      %v2144 = vadd.f32 0.0, %v2143
      %v2145 = vpop.f32.mrf.mxu0
      %2146 = vmatprep.mubr.f32.mxu0 0.0
      %2147 = vmatmul.mubr.f32.gmra.mxu0 %v1936
      %v2148 = vpop.f32.mrf.mxu0
      %v2149 = vadd.f32 0.0, %v2148
      %v2150 = vpop.f32.mrf.mxu0
      %2151 = vmatprep.mubr.f32.mxu0 0.0
      %2152 = vmatmul.mubr.f32.gmra.mxu0 %v1939
      %v2153 = vpop.f32.mrf.mxu0
      %v2154 = vadd.f32 0.0, %v2153
      %v2155 = vpop.f32.mrf.mxu0
      %2156 = vmatprep.mubr.f32.mxu0 0.0
      %2157 = vmatmul.mubr.f32.gmra.mxu0 %v1942
      %v2158 = vpop.f32.mrf.mxu0
      %v2159 = vadd.f32 0.0, %v2158
      %v2160 = vpop.f32.mrf.mxu0
      %2161 = vmatprep.mubr.f32.mxu0 0.0
      %2162 = vmatmul.mubr.f32.gmra.mxu0 %v1945
      %v2163 = vpop.f32.mrf.mxu0
      %v2164 = vadd.f32 0.0, %v2163
      %v2165 = vpop.f32.mrf.mxu0
      %2166 = vmatprep.mubr.f32.mxu0 0.0
      %2167 = vmatmul.mubr.f32.gmra.mxu0 %v1948
      %v2168 = vpop.f32.mrf.mxu0
      %v2169 = vadd.f32 0.0, %v2168
      %v2170 = vpop.f32.mrf.mxu0
      %2171 = vmatprep.mubr.f32.mxu0 0.0
      %2172 = vmatmul.mubr.f32.gmra.mxu0 %v1951
      %v2173 = vpop.f32.mrf.mxu0
      %v2174 = vadd.f32 0.0, %v2173
      %v2175 = vpop.f32.mrf.mxu0
      %2176 = vmatprep.mubr.f32.mxu0 0.0
      %2177 = vmatmul.mubr.f32.gmra.mxu0 %v1954
      %v2178 = vpop.f32.mrf.mxu0
      %v2179 = vadd.f32 0.0, %v2178
      %v2180 = vpop.f32.mrf.mxu0
      %2181 = vmatprep.mubr.f32.mxu0 0.0
      %2182 = vmatmul.mubr.f32.gmra.mxu0 %v1957
      %v2183 = vpop.f32.mrf.mxu0
      %v2184 = vadd.f32 0.0, %v2183
      %v2185 = vpop.f32.mrf.mxu0
      %2186 = vdwg.mxu0
      %v2187 = vadd.f32 %v1765, %v2029
      %v2188 = vadd.f32 %v1766, %v2034
      %v2189 = vadd.f32 %v1767, %v2039
      %v2190 = vadd.f32 %v1768, %v2044
      %v2191 = vadd.f32 %v1769, %v2049
      %v2192 = vadd.f32 %v1770, %v2054
      %v2193 = vadd.f32 %v1771, %v2059
      %v2194 = vadd.f32 %v1772, %v2064
      %v2195 = vadd.f32 %v1773, %v2069
      %v2196 = vadd.f32 %v1774, %v2074
      %v2197 = vadd.f32 %v1775, %v2079
      %v2198 = vadd.f32 %v1776, %v2084
      %v2199 = vadd.f32 %v1777, %v2089
      %v2200 = vadd.f32 %v1778, %v2094
      %v2201 = vadd.f32 %v1779, %v2099
      %v2202 = vadd.f32 %v1780, %v2104
      %v2203 = vadd.f32 %v1781, %v2109
      %v2204 = vadd.f32 %v1782, %v2114
      %v2205 = vadd.f32 %v1783, %v2119
      %v2206 = vadd.f32 %v1784, %v2124
      %v2207 = vadd.f32 %v1785, %v2129
      %v2208 = vadd.f32 %v1786, %v2134
      %v2209 = vadd.f32 %v1787, %v2139
      %v2210 = vadd.f32 %v1788, %v2144
      %v2211 = vadd.f32 %v1789, %v2149
      %v2212 = vadd.f32 %v1790, %v2154
      %v2213 = vadd.f32 %v1791, %v2159
      %v2214 = vadd.f32 %v1792, %v2164
      %v2215 = vadd.f32 %v1793, %v2169
      %v2216 = vadd.f32 %v1794, %v2174
      %v2217 = vadd.f32 %v1795, %v2179
      %v2218 = vadd.f32 %v1796, %v2184
      %v2219 = vld [vmem:[%s1374 + $0x2] sm:$0xff]
      %v2220 = vld [vmem:[%s1374 + $0xa] sm:$0xff]
      %v2221 = vld [vmem:[%s1374 + $0x1a] sm:$0xff]
      %v2222 = vld [vmem:[%s1374 + $0x22] sm:$0xff]
      %v2223 = vld [vmem:[%s1374 + $0x32] sm:$0xff]
      %v2224 = vld [vmem:[%s1374 + $0x3a] sm:$0xff]
      %v2225 = vld [vmem:[%s1374 + $0x4a] sm:$0xff]
      %v2226 = vld [vmem:[%s1374 + $0x52] sm:$0xff]
      %v2227 = vld [vmem:[%s1374 + $0x62] sm:$0xff]
      %v2228 = vld [vmem:[%s1374 + $0x6a] sm:$0xff]
      %v2229 = vld [vmem:[%s1374 + $0x7a] sm:$0xff]
      %v2230 = vld [vmem:[%s1374 + $0x82] sm:$0xff]
      %v2231 = vld [vmem:[%s1374 + $0x92] sm:$0xff]
      %v2232 = vld [vmem:[%s1374 + $0x9a] sm:$0xff]
      %v2233 = vld [vmem:[%s1374 + $0xaa] sm:$0xff]
      %v2234 = vld [vmem:[%s1374 + $0xb2] sm:$0xff]
      %v2235 = vld [vmem:[%s1374 + $0xc2] sm:$0xff]
      %v2236 = vld [vmem:[%s1374 + $0xca] sm:$0xff]
      %v2237 = vld [vmem:[%s1374 + $0xda] sm:$0xff]
      %v2238 = vld [vmem:[%s1374 + $0xe2] sm:$0xff]
      %v2239 = vld [vmem:[%s1374 + $0xf2] sm:$0xff]
      %v2240 = vld [vmem:[%s1374 + $0xfa] sm:$0xff]
      %v2241 = vld [vmem:[%s1374 + $0x10a] sm:$0xff]
      %v2242 = vld [vmem:[%s1374 + $0x112] sm:$0xff]
      %v2243 = vld [vmem:[%s1374 + $0x122] sm:$0xff]
      %v2244 = vld [vmem:[%s1374 + $0x12a] sm:$0xff]
      %v2245 = vld [vmem:[%s1374 + $0x13a] sm:$0xff]
      %v2246 = vld [vmem:[%s1374 + $0x142] sm:$0xff]
      %v2247 = vld [vmem:[%s1374 + $0x152] sm:$0xff]
      %v2248 = vld [vmem:[%s1374 + $0x15a] sm:$0xff]
      %v2249 = vld [vmem:[%s1374 + $0x16a] sm:$0xff]
      %v2250 = vld [vmem:[%s1374 + $0x172] sm:$0xff]
      %v2251 = vmax.f32 %v2219, 0.0
      %v2252 = vmax.f32 %v2220, 0.0
      %v2253 = vmax.f32 %v2221, 0.0
      %v2254 = vmax.f32 %v2222, 0.0
      %v2255 = vmax.f32 %v2223, 0.0
      %v2256 = vmax.f32 %v2224, 0.0
      %v2257 = vmax.f32 %v2225, 0.0
      %v2258 = vmax.f32 %v2226, 0.0
      %v2259 = vmax.f32 %v2227, 0.0
      %v2260 = vmax.f32 %v2228, 0.0
      %v2261 = vmax.f32 %v2229, 0.0
      %v2262 = vmax.f32 %v2230, 0.0
      %v2263 = vmax.f32 %v2231, 0.0
      %v2264 = vmax.f32 %v2232, 0.0
      %v2265 = vmax.f32 %v2233, 0.0
      %v2266 = vmax.f32 %v2234, 0.0
      %v2267 = vmax.f32 %v2235, 0.0
      %v2268 = vmax.f32 %v2236, 0.0
      %v2269 = vmax.f32 %v2237, 0.0
      %v2270 = vmax.f32 %v2238, 0.0
      %v2271 = vmax.f32 %v2239, 0.0
      %v2272 = vmax.f32 %v2240, 0.0
      %v2273 = vmax.f32 %v2241, 0.0
      %v2274 = vmax.f32 %v2242, 0.0
      %v2275 = vmax.f32 %v2243, 0.0
      %v2276 = vmax.f32 %v2244, 0.0
      %v2277 = vmax.f32 %v2245, 0.0
      %v2278 = vmax.f32 %v2246, 0.0
      %v2279 = vmax.f32 %v2247, 0.0
      %v2280 = vmax.f32 %v2248, 0.0
      %v2281 = vmax.f32 %v2249, 0.0
      %v2282 = vmax.f32 %v2250, 0.0
      %s2283 = scalar_lea.vmem %s1, 20
      %v2284 = vld [vmem:[%s2283] sm:$0xf]
      %v2286 = vsel %vm302, %v2251, 0
      %v2289 = vsel %vm302, %v2252, 0
      %v2292 = vsel %vm302, %v2253, 0
      %v2295 = vsel %vm302, %v2254, 0
      %v2298 = vsel %vm302, %v2255, 0
      %v2301 = vsel %vm302, %v2256, 0
      %v2304 = vsel %vm302, %v2257, 0
      %v2307 = vsel %vm302, %v2258, 0
      %v2310 = vsel %vm302, %v2259, 0
      %v2313 = vsel %vm302, %v2260, 0
      %v2316 = vsel %vm302, %v2261, 0
      %v2319 = vsel %vm302, %v2262, 0
      %v2322 = vsel %vm302, %v2263, 0
      %v2325 = vsel %vm302, %v2264, 0
      %v2328 = vsel %vm302, %v2265, 0
      %v2331 = vsel %vm302, %v2266, 0
      %v2334 = vsel %vm302, %v2267, 0
      %v2337 = vsel %vm302, %v2268, 0
      %v2340 = vsel %vm302, %v2269, 0
      %v2343 = vsel %vm302, %v2270, 0
      %v2346 = vsel %vm302, %v2271, 0
      %v2349 = vsel %vm302, %v2272, 0
      %v2352 = vsel %vm302, %v2273, 0
      %v2355 = vsel %vm302, %v2274, 0
      %v2358 = vsel %vm302, %v2275, 0
      %v2361 = vsel %vm302, %v2276, 0
      %v2364 = vsel %vm302, %v2277, 0
      %v2367 = vsel %vm302, %v2278, 0
      %v2370 = vsel %vm302, %v2279, 0
      %v2373 = vsel %vm302, %v2280, 0
      %v2376 = vsel %vm302, %v2281, 0
      %v2379 = vsel %vm302, %v2282, 0
      %v2382 = vsel %vm399, %v2284, 0
      %2384 = vmatprep.subr.mxu0 0.0
      %2385 = vmatpush1.msra.mxu0 0.0
      %2386 = vmatprep.subr.mxu0 0.0
      %2387 = vmatpush1.msra.mxu0 0.0
      %2388 = vmatprep.subr.mxu0 0.0
      %2389 = vmatpush1.msra.mxu0 0.0
      %2390 = vmatprep.subr.mxu0 0.0
      %2391 = vmatpush1.msra.mxu0 0.0
      %2392 = vmatprep.subr.mxu0 0.0
      %2393 = vmatpush1.msra.mxu0 0.0
      %2394 = vmatprep.subr.mxu0 0.0
      %2395 = vmatpush1.msra.mxu0 0.0
      %2396 = vmatprep.subr.mxu0 0.0
      %2397 = vmatpush1.msra.mxu0 0.0
      %2398 = vmatprep.subr.mxu0 0.0
      %2399 = vmatpush1.msra.mxu0 0.0
      %2400 = vmatprep.subr.mxu0 0.0
      %2401 = vmatpush1.msra.mxu0 0.0
      %2402 = vmatprep.subr.mxu0 0.0
      %2403 = vmatpush1.msra.mxu0 0.0
      %2404 = vmatprep.subr.mxu0 0.0
      %2405 = vmatpush1.msra.mxu0 0.0
      %2406 = vmatprep.subr.mxu0 0.0
      %2407 = vmatpush1.msra.mxu0 0.0
      %2408 = vmatprep.subr.mxu0 0.0
      %2409 = vmatpush1.msra.mxu0 0.0
      %2410 = vmatprep.subr.mxu0 0.0
      %2411 = vmatpush1.msra.mxu0 0.0
      %2412 = vmatprep.subr.mxu0 0.0
      %2413 = vmatpush1.msra.mxu0 0.0
      %2414 = vmatprep.subr.mxu0 0.0
      %2415 = vmatpush1.msra.mxu0 %v2382
      %2416 = vmatprep.subr.mxu0 0.0
      %2417 = vmatpush2.msra.mxu0 0.0
      %2418 = vmatprep.subr.mxu0 0.0
      %2419 = vmatpush2.msra.mxu0 0.0
      %2420 = vmatprep.subr.mxu0 0.0
      %2421 = vmatpush2.msra.mxu0 0.0
      %2422 = vmatprep.subr.mxu0 0.0
      %2423 = vmatpush2.msra.mxu0 0.0
      %2424 = vmatprep.subr.mxu0 0.0
      %2425 = vmatpush2.msra.mxu0 0.0
      %2426 = vmatprep.subr.mxu0 0.0
      %2427 = vmatpush2.msra.mxu0 0.0
      %2428 = vmatprep.subr.mxu0 0.0
      %2429 = vmatpush2.msra.mxu0 0.0
      %2430 = vmatprep.subr.mxu0 0.0
      %2431 = vmatpush2.msra.mxu0 0.0
      %2432 = vmatprep.subr.mxu0 0.0
      %2433 = vmatpush2.msra.mxu0 0.0
      %2434 = vmatprep.subr.mxu0 0.0
      %2435 = vmatpush2.msra.mxu0 0.0
      %2436 = vmatprep.subr.mxu0 0.0
      %2437 = vmatpush2.msra.mxu0 0.0
      %2438 = vmatprep.subr.mxu0 0.0
      %2439 = vmatpush2.msra.mxu0 0.0
      %2440 = vmatprep.subr.mxu0 0.0
      %2441 = vmatpush2.msra.mxu0 0.0
      %2442 = vmatprep.subr.mxu0 0.0
      %2443 = vmatpush2.msra.mxu0 0.0
      %2444 = vmatprep.subr.mxu0 0.0
      %2445 = vmatpush2.msra.mxu0 0.0
      %2446 = vmatprep.subr.mxu0 0.0
      %2447 = vmatpush2.msra.mxu0 0.0
      %2448 = vmatprep.mubr.f32.mxu0 0.0
      %2449 = vmatmul.mubr.f32.gmra.mxu0 %v2286
      %v2450 = vpop.f32.mrf.mxu0
      %v2451 = vadd.f32 0.0, %v2450
      %v2452 = vpop.f32.mrf.mxu0
      %2453 = vmatprep.mubr.f32.mxu0 0.0
      %2454 = vmatmul.mubr.f32.gmra.mxu0 %v2289
      %v2455 = vpop.f32.mrf.mxu0
      %v2456 = vadd.f32 0.0, %v2455
      %v2457 = vpop.f32.mrf.mxu0
      %2458 = vmatprep.mubr.f32.mxu0 0.0
      %2459 = vmatmul.mubr.f32.gmra.mxu0 %v2292
      %v2460 = vpop.f32.mrf.mxu0
      %v2461 = vadd.f32 0.0, %v2460
      %v2462 = vpop.f32.mrf.mxu0
      %2463 = vmatprep.mubr.f32.mxu0 0.0
      %2464 = vmatmul.mubr.f32.gmra.mxu0 %v2295
      %v2465 = vpop.f32.mrf.mxu0
      %v2466 = vadd.f32 0.0, %v2465
      %v2467 = vpop.f32.mrf.mxu0
      %2468 = vmatprep.mubr.f32.mxu0 0.0
      %2469 = vmatmul.mubr.f32.gmra.mxu0 %v2298
      %v2470 = vpop.f32.mrf.mxu0
      %v2471 = vadd.f32 0.0, %v2470
      %v2472 = vpop.f32.mrf.mxu0
      %2473 = vmatprep.mubr.f32.mxu0 0.0
      %2474 = vmatmul.mubr.f32.gmra.mxu0 %v2301
      %v2475 = vpop.f32.mrf.mxu0
      %v2476 = vadd.f32 0.0, %v2475
      %v2477 = vpop.f32.mrf.mxu0
      %2478 = vmatprep.mubr.f32.mxu0 0.0
      %2479 = vmatmul.mubr.f32.gmra.mxu0 %v2304
      %v2480 = vpop.f32.mrf.mxu0
      %v2481 = vadd.f32 0.0, %v2480
      %v2482 = vpop.f32.mrf.mxu0
      %2483 = vmatprep.mubr.f32.mxu0 0.0
      %2484 = vmatmul.mubr.f32.gmra.mxu0 %v2307
      %v2485 = vpop.f32.mrf.mxu0
      %v2486 = vadd.f32 0.0, %v2485
      %v2487 = vpop.f32.mrf.mxu0
      %2488 = vmatprep.mubr.f32.mxu0 0.0
      %2489 = vmatmul.mubr.f32.gmra.mxu0 %v2310
      %v2490 = vpop.f32.mrf.mxu0
      %v2491 = vadd.f32 0.0, %v2490
      %v2492 = vpop.f32.mrf.mxu0
      %2493 = vmatprep.mubr.f32.mxu0 0.0
      %2494 = vmatmul.mubr.f32.gmra.mxu0 %v2313
      %v2495 = vpop.f32.mrf.mxu0
      %v2496 = vadd.f32 0.0, %v2495
      %v2497 = vpop.f32.mrf.mxu0
      %2498 = vmatprep.mubr.f32.mxu0 0.0
      %2499 = vmatmul.mubr.f32.gmra.mxu0 %v2316
      %v2500 = vpop.f32.mrf.mxu0
      %v2501 = vadd.f32 0.0, %v2500
      %v2502 = vpop.f32.mrf.mxu0
      %2503 = vmatprep.mubr.f32.mxu0 0.0
      %2504 = vmatmul.mubr.f32.gmra.mxu0 %v2319
      %v2505 = vpop.f32.mrf.mxu0
      %v2506 = vadd.f32 0.0, %v2505
      %v2507 = vpop.f32.mrf.mxu0
      %2508 = vmatprep.mubr.f32.mxu0 0.0
      %2509 = vmatmul.mubr.f32.gmra.mxu0 %v2322
      %v2510 = vpop.f32.mrf.mxu0
      %v2511 = vadd.f32 0.0, %v2510
      %v2512 = vpop.f32.mrf.mxu0
      %2513 = vmatprep.mubr.f32.mxu0 0.0
      %2514 = vmatmul.mubr.f32.gmra.mxu0 %v2325
      %v2515 = vpop.f32.mrf.mxu0
      %v2516 = vadd.f32 0.0, %v2515
      %v2517 = vpop.f32.mrf.mxu0
      %2518 = vmatprep.mubr.f32.mxu0 0.0
      %2519 = vmatmul.mubr.f32.gmra.mxu0 %v2328
      %v2520 = vpop.f32.mrf.mxu0
      %v2521 = vadd.f32 0.0, %v2520
      %v2522 = vpop.f32.mrf.mxu0
      %2523 = vmatprep.mubr.f32.mxu0 0.0
      %2524 = vmatmul.mubr.f32.gmra.mxu0 %v2331
      %v2525 = vpop.f32.mrf.mxu0
      %v2526 = vadd.f32 0.0, %v2525
      %v2527 = vpop.f32.mrf.mxu0
      %2528 = vmatprep.mubr.f32.mxu0 0.0
      %2529 = vmatmul.mubr.f32.gmra.mxu0 %v2334
      %v2530 = vpop.f32.mrf.mxu0
      %v2531 = vadd.f32 0.0, %v2530
      %v2532 = vpop.f32.mrf.mxu0
      %2533 = vmatprep.mubr.f32.mxu0 0.0
      %2534 = vmatmul.mubr.f32.gmra.mxu0 %v2337
      %v2535 = vpop.f32.mrf.mxu0
      %v2536 = vadd.f32 0.0, %v2535
      %v2537 = vpop.f32.mrf.mxu0
      %2538 = vmatprep.mubr.f32.mxu0 0.0
      %2539 = vmatmul.mubr.f32.gmra.mxu0 %v2340
      %v2540 = vpop.f32.mrf.mxu0
      %v2541 = vadd.f32 0.0, %v2540
      %v2542 = vpop.f32.mrf.mxu0
      %2543 = vmatprep.mubr.f32.mxu0 0.0
      %2544 = vmatmul.mubr.f32.gmra.mxu0 %v2343
      %v2545 = vpop.f32.mrf.mxu0
      %v2546 = vadd.f32 0.0, %v2545
      %v2547 = vpop.f32.mrf.mxu0
      %2548 = vmatprep.mubr.f32.mxu0 0.0
      %2549 = vmatmul.mubr.f32.gmra.mxu0 %v2346
      %v2550 = vpop.f32.mrf.mxu0
      %v2551 = vadd.f32 0.0, %v2550
      %v2552 = vpop.f32.mrf.mxu0
      %2553 = vmatprep.mubr.f32.mxu0 0.0
      %2554 = vmatmul.mubr.f32.gmra.mxu0 %v2349
      %v2555 = vpop.f32.mrf.mxu0
      %v2556 = vadd.f32 0.0, %v2555
      %v2557 = vpop.f32.mrf.mxu0
      %2558 = vmatprep.mubr.f32.mxu0 0.0
      %2559 = vmatmul.mubr.f32.gmra.mxu0 %v2352
      %v2560 = vpop.f32.mrf.mxu0
      %v2561 = vadd.f32 0.0, %v2560
      %v2562 = vpop.f32.mrf.mxu0
      %2563 = vmatprep.mubr.f32.mxu0 0.0
      %2564 = vmatmul.mubr.f32.gmra.mxu0 %v2355
      %v2565 = vpop.f32.mrf.mxu0
      %v2566 = vadd.f32 0.0, %v2565
      %v2567 = vpop.f32.mrf.mxu0
      %2568 = vmatprep.mubr.f32.mxu0 0.0
      %2569 = vmatmul.mubr.f32.gmra.mxu0 %v2358
      %v2570 = vpop.f32.mrf.mxu0
      %v2571 = vadd.f32 0.0, %v2570
      %v2572 = vpop.f32.mrf.mxu0
      %2573 = vmatprep.mubr.f32.mxu0 0.0
      %2574 = vmatmul.mubr.f32.gmra.mxu0 %v2361
      %v2575 = vpop.f32.mrf.mxu0
      %v2576 = vadd.f32 0.0, %v2575
      %v2577 = vpop.f32.mrf.mxu0
      %2578 = vmatprep.mubr.f32.mxu0 0.0
      %2579 = vmatmul.mubr.f32.gmra.mxu0 %v2364
      %v2580 = vpop.f32.mrf.mxu0
      %v2581 = vadd.f32 0.0, %v2580
      %v2582 = vpop.f32.mrf.mxu0
      %2583 = vmatprep.mubr.f32.mxu0 0.0
      %2584 = vmatmul.mubr.f32.gmra.mxu0 %v2367
      %v2585 = vpop.f32.mrf.mxu0
      %v2586 = vadd.f32 0.0, %v2585
      %v2587 = vpop.f32.mrf.mxu0
      %2588 = vmatprep.mubr.f32.mxu0 0.0
      %2589 = vmatmul.mubr.f32.gmra.mxu0 %v2370
      %v2590 = vpop.f32.mrf.mxu0
      %v2591 = vadd.f32 0.0, %v2590
      %v2592 = vpop.f32.mrf.mxu0
      %2593 = vmatprep.mubr.f32.mxu0 0.0
      %2594 = vmatmul.mubr.f32.gmra.mxu0 %v2373
      %v2595 = vpop.f32.mrf.mxu0
      %v2596 = vadd.f32 0.0, %v2595
      %v2597 = vpop.f32.mrf.mxu0
      %2598 = vmatprep.mubr.f32.mxu0 0.0
      %2599 = vmatmul.mubr.f32.gmra.mxu0 %v2376
      %v2600 = vpop.f32.mrf.mxu0
      %v2601 = vadd.f32 0.0, %v2600
      %v2602 = vpop.f32.mrf.mxu0
      %2603 = vmatprep.mubr.f32.mxu0 0.0
      %2604 = vmatmul.mubr.f32.gmra.mxu0 %v2379
      %v2605 = vpop.f32.mrf.mxu0
      %v2606 = vadd.f32 0.0, %v2605
      %v2607 = vpop.f32.mrf.mxu0
      %2608 = vdwg.mxu0
      %v2609 = vadd.f32 %v2187, %v2451
      %v2610 = vadd.f32 %v2188, %v2456
      %v2611 = vadd.f32 %v2189, %v2461
      %v2612 = vadd.f32 %v2190, %v2466
      %v2613 = vadd.f32 %v2191, %v2471
      %v2614 = vadd.f32 %v2192, %v2476
      %v2615 = vadd.f32 %v2193, %v2481
      %v2616 = vadd.f32 %v2194, %v2486
      %v2617 = vadd.f32 %v2195, %v2491
      %v2618 = vadd.f32 %v2196, %v2496
      %v2619 = vadd.f32 %v2197, %v2501
      %v2620 = vadd.f32 %v2198, %v2506
      %v2621 = vadd.f32 %v2199, %v2511
      %v2622 = vadd.f32 %v2200, %v2516
      %v2623 = vadd.f32 %v2201, %v2521
      %v2624 = vadd.f32 %v2202, %v2526
      %v2625 = vadd.f32 %v2203, %v2531
      %v2626 = vadd.f32 %v2204, %v2536
      %v2627 = vadd.f32 %v2205, %v2541
      %v2628 = vadd.f32 %v2206, %v2546
      %v2629 = vadd.f32 %v2207, %v2551
      %v2630 = vadd.f32 %v2208, %v2556
      %v2631 = vadd.f32 %v2209, %v2561
      %v2632 = vadd.f32 %v2210, %v2566
      %v2633 = vadd.f32 %v2211, %v2571
      %v2634 = vadd.f32 %v2212, %v2576
      %v2635 = vadd.f32 %v2213, %v2581
      %v2636 = vadd.f32 %v2214, %v2586
      %v2637 = vadd.f32 %v2215, %v2591
      %v2638 = vadd.f32 %v2216, %v2596
      %v2639 = vadd.f32 %v2217, %v2601
      %v2640 = vadd.f32 %v2218, %v2606
      %s2641 = scalar_lea.vmem %s165, 48
      %v2642 = vld [vmem:[%s2641] sm:$0xff]
      %v2643 = vld [vmem:[%s2641 + $0x8] sm:$0xff]
      %v2644 = vld [vmem:[%s2641 + $0x18] sm:$0xff]
      %v2645 = vld [vmem:[%s2641 + $0x20] sm:$0xff]
      %v2646 = vld [vmem:[%s2641 + $0x30] sm:$0xff]
      %v2647 = vld [vmem:[%s2641 + $0x38] sm:$0xff]
      %v2648 = vld [vmem:[%s2641 + $0x48] sm:$0xff]
      %v2649 = vld [vmem:[%s2641 + $0x50] sm:$0xff]
      %v2650 = vld [vmem:[%s2641 + $0x60] sm:$0xff]
      %v2651 = vld [vmem:[%s2641 + $0x68] sm:$0xff]
      %v2652 = vld [vmem:[%s2641 + $0x78] sm:$0xff]
      %v2653 = vld [vmem:[%s2641 + $0x80] sm:$0xff]
      %v2654 = vld [vmem:[%s2641 + $0x90] sm:$0xff]
      %v2655 = vld [vmem:[%s2641 + $0x98] sm:$0xff]
      %v2656 = vld [vmem:[%s2641 + $0xa8] sm:$0xff]
      %v2657 = vld [vmem:[%s2641 + $0xb0] sm:$0xff]
      %v2658 = vld [vmem:[%s2641 + $0xc0] sm:$0xff]
      %v2659 = vld [vmem:[%s2641 + $0xc8] sm:$0xff]
      %v2660 = vld [vmem:[%s2641 + $0xd8] sm:$0xff]
      %v2661 = vld [vmem:[%s2641 + $0xe0] sm:$0xff]
      %v2662 = vld [vmem:[%s2641 + $0xf0] sm:$0xff]
      %v2663 = vld [vmem:[%s2641 + $0xf8] sm:$0xff]
      %v2664 = vld [vmem:[%s2641 + $0x108] sm:$0xff]
      %v2665 = vld [vmem:[%s2641 + $0x110] sm:$0xff]
      %v2666 = vld [vmem:[%s2641 + $0x120] sm:$0xff]
      %v2667 = vld [vmem:[%s2641 + $0x128] sm:$0xff]
      %v2668 = vld [vmem:[%s2641 + $0x138] sm:$0xff]
      %v2669 = vld [vmem:[%s2641 + $0x140] sm:$0xff]
      %v2670 = vld [vmem:[%s2641 + $0x150] sm:$0xff]
      %v2671 = vld [vmem:[%s2641 + $0x158] sm:$0xff]
      %v2672 = vld [vmem:[%s2641 + $0x168] sm:$0xff]
      %v2673 = vld [vmem:[%s2641 + $0x170] sm:$0xff]
      %v2674 = vmax.f32 %v2642, 0.0
      %v2675 = vmax.f32 %v2643, 0.0
      %v2676 = vmax.f32 %v2644, 0.0
      %v2677 = vmax.f32 %v2645, 0.0
      %v2678 = vmax.f32 %v2646, 0.0
      %v2679 = vmax.f32 %v2647, 0.0
      %v2680 = vmax.f32 %v2648, 0.0
      %v2681 = vmax.f32 %v2649, 0.0
      %v2682 = vmax.f32 %v2650, 0.0
      %v2683 = vmax.f32 %v2651, 0.0
      %v2684 = vmax.f32 %v2652, 0.0
      %v2685 = vmax.f32 %v2653, 0.0
      %v2686 = vmax.f32 %v2654, 0.0
      %v2687 = vmax.f32 %v2655, 0.0
      %v2688 = vmax.f32 %v2656, 0.0
      %v2689 = vmax.f32 %v2657, 0.0
      %v2690 = vmax.f32 %v2658, 0.0
      %v2691 = vmax.f32 %v2659, 0.0
      %v2692 = vmax.f32 %v2660, 0.0
      %v2693 = vmax.f32 %v2661, 0.0
      %v2694 = vmax.f32 %v2662, 0.0
      %v2695 = vmax.f32 %v2663, 0.0
      %v2696 = vmax.f32 %v2664, 0.0
      %v2697 = vmax.f32 %v2665, 0.0
      %v2698 = vmax.f32 %v2666, 0.0
      %v2699 = vmax.f32 %v2667, 0.0
      %v2700 = vmax.f32 %v2668, 0.0
      %v2701 = vmax.f32 %v2669, 0.0
      %v2702 = vmax.f32 %v2670, 0.0
      %v2703 = vmax.f32 %v2671, 0.0
      %v2704 = vmax.f32 %v2672, 0.0
      %v2705 = vmax.f32 %v2673, 0.0
      %s2706 = scalar_lea.vmem %s1, 24
      %v2707 = vld [vmem:[%s2706] sm:$0xf]
      %v2709 = vsel %vm302, %v2674, 0
      %v2712 = vsel %vm302, %v2675, 0
      %v2715 = vsel %vm302, %v2676, 0
      %v2718 = vsel %vm302, %v2677, 0
      %v2721 = vsel %vm302, %v2678, 0
      %v2724 = vsel %vm302, %v2679, 0
      %v2727 = vsel %vm302, %v2680, 0
      %v2730 = vsel %vm302, %v2681, 0
      %v2733 = vsel %vm302, %v2682, 0
      %v2736 = vsel %vm302, %v2683, 0
      %v2739 = vsel %vm302, %v2684, 0
      %v2742 = vsel %vm302, %v2685, 0
      %v2745 = vsel %vm302, %v2686, 0
      %v2748 = vsel %vm302, %v2687, 0
      %v2751 = vsel %vm302, %v2688, 0
      %v2754 = vsel %vm302, %v2689, 0
      %v2757 = vsel %vm302, %v2690, 0
      %v2760 = vsel %vm302, %v2691, 0
      %v2763 = vsel %vm302, %v2692, 0
      %v2766 = vsel %vm302, %v2693, 0
      %v2769 = vsel %vm302, %v2694, 0
      %v2772 = vsel %vm302, %v2695, 0
      %v2775 = vsel %vm302, %v2696, 0
      %v2778 = vsel %vm302, %v2697, 0
      %v2781 = vsel %vm302, %v2698, 0
      %v2784 = vsel %vm302, %v2699, 0
      %v2787 = vsel %vm302, %v2700, 0
      %v2790 = vsel %vm302, %v2701, 0
      %v2793 = vsel %vm302, %v2702, 0
      %v2796 = vsel %vm302, %v2703, 0
      %v2799 = vsel %vm302, %v2704, 0
      %v2802 = vsel %vm302, %v2705, 0
      %v2805 = vsel %vm399, %v2707, 0
      %2807 = vmatprep.subr.mxu0 0.0
      %2808 = vmatpush1.msra.mxu0 0.0
      %2809 = vmatprep.subr.mxu0 0.0
      %2810 = vmatpush1.msra.mxu0 0.0
      %2811 = vmatprep.subr.mxu0 0.0
      %2812 = vmatpush1.msra.mxu0 0.0
      %2813 = vmatprep.subr.mxu0 0.0
      %2814 = vmatpush1.msra.mxu0 0.0
      %2815 = vmatprep.subr.mxu0 0.0
      %2816 = vmatpush1.msra.mxu0 0.0
      %2817 = vmatprep.subr.mxu0 0.0
      %2818 = vmatpush1.msra.mxu0 0.0
      %2819 = vmatprep.subr.mxu0 0.0
      %2820 = vmatpush1.msra.mxu0 0.0
      %2821 = vmatprep.subr.mxu0 0.0
      %2822 = vmatpush1.msra.mxu0 0.0
      %2823 = vmatprep.subr.mxu0 0.0
      %2824 = vmatpush1.msra.mxu0 0.0
      %2825 = vmatprep.subr.mxu0 0.0
      %2826 = vmatpush1.msra.mxu0 0.0
      %2827 = vmatprep.subr.mxu0 0.0
      %2828 = vmatpush1.msra.mxu0 0.0
      %2829 = vmatprep.subr.mxu0 0.0
      %2830 = vmatpush1.msra.mxu0 0.0
      %2831 = vmatprep.subr.mxu0 0.0
      %2832 = vmatpush1.msra.mxu0 0.0
      %2833 = vmatprep.subr.mxu0 0.0
      %2834 = vmatpush1.msra.mxu0 0.0
      %2835 = vmatprep.subr.mxu0 0.0
      %2836 = vmatpush1.msra.mxu0 0.0
      %2837 = vmatprep.subr.mxu0 0.0
      %2838 = vmatpush1.msra.mxu0 %v2805
      %2839 = vmatprep.subr.mxu0 0.0
      %2840 = vmatpush2.msra.mxu0 0.0
      %2841 = vmatprep.subr.mxu0 0.0
      %2842 = vmatpush2.msra.mxu0 0.0
      %2843 = vmatprep.subr.mxu0 0.0
      %2844 = vmatpush2.msra.mxu0 0.0
      %2845 = vmatprep.subr.mxu0 0.0
      %2846 = vmatpush2.msra.mxu0 0.0
      %2847 = vmatprep.subr.mxu0 0.0
      %2848 = vmatpush2.msra.mxu0 0.0
      %2849 = vmatprep.subr.mxu0 0.0
      %2850 = vmatpush2.msra.mxu0 0.0
      %2851 = vmatprep.subr.mxu0 0.0
      %2852 = vmatpush2.msra.mxu0 0.0
      %2853 = vmatprep.subr.mxu0 0.0
      %2854 = vmatpush2.msra.mxu0 0.0
      %2855 = vmatprep.subr.mxu0 0.0
      %2856 = vmatpush2.msra.mxu0 0.0
      %2857 = vmatprep.subr.mxu0 0.0
      %2858 = vmatpush2.msra.mxu0 0.0
      %2859 = vmatprep.subr.mxu0 0.0
      %2860 = vmatpush2.msra.mxu0 0.0
      %2861 = vmatprep.subr.mxu0 0.0
      %2862 = vmatpush2.msra.mxu0 0.0
      %2863 = vmatprep.subr.mxu0 0.0
      %2864 = vmatpush2.msra.mxu0 0.0
      %2865 = vmatprep.subr.mxu0 0.0
      %2866 = vmatpush2.msra.mxu0 0.0
      %2867 = vmatprep.subr.mxu0 0.0
      %2868 = vmatpush2.msra.mxu0 0.0
      %2869 = vmatprep.subr.mxu0 0.0
      %2870 = vmatpush2.msra.mxu0 0.0
      %2871 = vmatprep.mubr.f32.mxu0 0.0
      %2872 = vmatmul.mubr.f32.gmra.mxu0 %v2709
      %v2873 = vpop.f32.mrf.mxu0
      %v2874 = vadd.f32 0.0, %v2873
      %v2875 = vpop.f32.mrf.mxu0
      %2876 = vmatprep.mubr.f32.mxu0 0.0
      %2877 = vmatmul.mubr.f32.gmra.mxu0 %v2712
      %v2878 = vpop.f32.mrf.mxu0
      %v2879 = vadd.f32 0.0, %v2878
      %v2880 = vpop.f32.mrf.mxu0
      %2881 = vmatprep.mubr.f32.mxu0 0.0
      %2882 = vmatmul.mubr.f32.gmra.mxu0 %v2715
      %v2883 = vpop.f32.mrf.mxu0
      %v2884 = vadd.f32 0.0, %v2883
      %v2885 = vpop.f32.mrf.mxu0
      %2886 = vmatprep.mubr.f32.mxu0 0.0
      %2887 = vmatmul.mubr.f32.gmra.mxu0 %v2718
      %v2888 = vpop.f32.mrf.mxu0
      %v2889 = vadd.f32 0.0, %v2888
      %v2890 = vpop.f32.mrf.mxu0
      %2891 = vmatprep.mubr.f32.mxu0 0.0
      %2892 = vmatmul.mubr.f32.gmra.mxu0 %v2721
      %v2893 = vpop.f32.mrf.mxu0
      %v2894 = vadd.f32 0.0, %v2893
      %v2895 = vpop.f32.mrf.mxu0
      %2896 = vmatprep.mubr.f32.mxu0 0.0
      %2897 = vmatmul.mubr.f32.gmra.mxu0 %v2724
      %v2898 = vpop.f32.mrf.mxu0
      %v2899 = vadd.f32 0.0, %v2898
      %v2900 = vpop.f32.mrf.mxu0
      %2901 = vmatprep.mubr.f32.mxu0 0.0
      %2902 = vmatmul.mubr.f32.gmra.mxu0 %v2727
      %v2903 = vpop.f32.mrf.mxu0
      %v2904 = vadd.f32 0.0, %v2903
      %v2905 = vpop.f32.mrf.mxu0
      %2906 = vmatprep.mubr.f32.mxu0 0.0
      %2907 = vmatmul.mubr.f32.gmra.mxu0 %v2730
      %v2908 = vpop.f32.mrf.mxu0
      %v2909 = vadd.f32 0.0, %v2908
      %v2910 = vpop.f32.mrf.mxu0
      %2911 = vmatprep.mubr.f32.mxu0 0.0
      %2912 = vmatmul.mubr.f32.gmra.mxu0 %v2733
      %v2913 = vpop.f32.mrf.mxu0
      %v2914 = vadd.f32 0.0, %v2913
      %v2915 = vpop.f32.mrf.mxu0
      %2916 = vmatprep.mubr.f32.mxu0 0.0
      %2917 = vmatmul.mubr.f32.gmra.mxu0 %v2736
      %v2918 = vpop.f32.mrf.mxu0
      %v2919 = vadd.f32 0.0, %v2918
      %v2920 = vpop.f32.mrf.mxu0
      %2921 = vmatprep.mubr.f32.mxu0 0.0
      %2922 = vmatmul.mubr.f32.gmra.mxu0 %v2739
      %v2923 = vpop.f32.mrf.mxu0
      %v2924 = vadd.f32 0.0, %v2923
      %v2925 = vpop.f32.mrf.mxu0
      %2926 = vmatprep.mubr.f32.mxu0 0.0
      %2927 = vmatmul.mubr.f32.gmra.mxu0 %v2742
      %v2928 = vpop.f32.mrf.mxu0
      %v2929 = vadd.f32 0.0, %v2928
      %v2930 = vpop.f32.mrf.mxu0
      %2931 = vmatprep.mubr.f32.mxu0 0.0
      %2932 = vmatmul.mubr.f32.gmra.mxu0 %v2745
      %v2933 = vpop.f32.mrf.mxu0
      %v2934 = vadd.f32 0.0, %v2933
      %v2935 = vpop.f32.mrf.mxu0
      %2936 = vmatprep.mubr.f32.mxu0 0.0
      %2937 = vmatmul.mubr.f32.gmra.mxu0 %v2748
      %v2938 = vpop.f32.mrf.mxu0
      %v2939 = vadd.f32 0.0, %v2938
      %v2940 = vpop.f32.mrf.mxu0
      %2941 = vmatprep.mubr.f32.mxu0 0.0
      %2942 = vmatmul.mubr.f32.gmra.mxu0 %v2751
      %v2943 = vpop.f32.mrf.mxu0
      %v2944 = vadd.f32 0.0, %v2943
      %v2945 = vpop.f32.mrf.mxu0
      %2946 = vmatprep.mubr.f32.mxu0 0.0
      %2947 = vmatmul.mubr.f32.gmra.mxu0 %v2754
      %v2948 = vpop.f32.mrf.mxu0
      %v2949 = vadd.f32 0.0, %v2948
      %v2950 = vpop.f32.mrf.mxu0
      %2951 = vmatprep.mubr.f32.mxu0 0.0
      %2952 = vmatmul.mubr.f32.gmra.mxu0 %v2757
      %v2953 = vpop.f32.mrf.mxu0
      %v2954 = vadd.f32 0.0, %v2953
      %v2955 = vpop.f32.mrf.mxu0
      %2956 = vmatprep.mubr.f32.mxu0 0.0
      %2957 = vmatmul.mubr.f32.gmra.mxu0 %v2760
      %v2958 = vpop.f32.mrf.mxu0
      %v2959 = vadd.f32 0.0, %v2958
      %v2960 = vpop.f32.mrf.mxu0
      %2961 = vmatprep.mubr.f32.mxu0 0.0
      %2962 = vmatmul.mubr.f32.gmra.mxu0 %v2763
      %v2963 = vpop.f32.mrf.mxu0
      %v2964 = vadd.f32 0.0, %v2963
      %v2965 = vpop.f32.mrf.mxu0
      %2966 = vmatprep.mubr.f32.mxu0 0.0
      %2967 = vmatmul.mubr.f32.gmra.mxu0 %v2766
      %v2968 = vpop.f32.mrf.mxu0
      %v2969 = vadd.f32 0.0, %v2968
      %v2970 = vpop.f32.mrf.mxu0
      %2971 = vmatprep.mubr.f32.mxu0 0.0
      %2972 = vmatmul.mubr.f32.gmra.mxu0 %v2769
      %v2973 = vpop.f32.mrf.mxu0
      %v2974 = vadd.f32 0.0, %v2973
      %v2975 = vpop.f32.mrf.mxu0
      %2976 = vmatprep.mubr.f32.mxu0 0.0
      %2977 = vmatmul.mubr.f32.gmra.mxu0 %v2772
      %v2978 = vpop.f32.mrf.mxu0
      %v2979 = vadd.f32 0.0, %v2978
      %v2980 = vpop.f32.mrf.mxu0
      %2981 = vmatprep.mubr.f32.mxu0 0.0
      %2982 = vmatmul.mubr.f32.gmra.mxu0 %v2775
      %v2983 = vpop.f32.mrf.mxu0
      %v2984 = vadd.f32 0.0, %v2983
      %v2985 = vpop.f32.mrf.mxu0
      %2986 = vmatprep.mubr.f32.mxu0 0.0
      %2987 = vmatmul.mubr.f32.gmra.mxu0 %v2778
      %v2988 = vpop.f32.mrf.mxu0
      %v2989 = vadd.f32 0.0, %v2988
      %v2990 = vpop.f32.mrf.mxu0
      %2991 = vmatprep.mubr.f32.mxu0 0.0
      %2992 = vmatmul.mubr.f32.gmra.mxu0 %v2781
      %v2993 = vpop.f32.mrf.mxu0
      %v2994 = vadd.f32 0.0, %v2993
      %v2995 = vpop.f32.mrf.mxu0
      %2996 = vmatprep.mubr.f32.mxu0 0.0
      %2997 = vmatmul.mubr.f32.gmra.mxu0 %v2784
      %v2998 = vpop.f32.mrf.mxu0
      %v2999 = vadd.f32 0.0, %v2998
      %v3000 = vpop.f32.mrf.mxu0
      %3001 = vmatprep.mubr.f32.mxu0 0.0
      %3002 = vmatmul.mubr.f32.gmra.mxu0 %v2787
      %v3003 = vpop.f32.mrf.mxu0
      %v3004 = vadd.f32 0.0, %v3003
      %v3005 = vpop.f32.mrf.mxu0
      %3006 = vmatprep.mubr.f32.mxu0 0.0
      %3007 = vmatmul.mubr.f32.gmra.mxu0 %v2790
      %v3008 = vpop.f32.mrf.mxu0
      %v3009 = vadd.f32 0.0, %v3008
      %v3010 = vpop.f32.mrf.mxu0
      %3011 = vmatprep.mubr.f32.mxu0 0.0
      %3012 = vmatmul.mubr.f32.gmra.mxu0 %v2793
      %v3013 = vpop.f32.mrf.mxu0
      %v3014 = vadd.f32 0.0, %v3013
      %v3015 = vpop.f32.mrf.mxu0
      %3016 = vmatprep.mubr.f32.mxu0 0.0
      %3017 = vmatmul.mubr.f32.gmra.mxu0 %v2796
      %v3018 = vpop.f32.mrf.mxu0
      %v3019 = vadd.f32 0.0, %v3018
      %v3020 = vpop.f32.mrf.mxu0
      %3021 = vmatprep.mubr.f32.mxu0 0.0
      %3022 = vmatmul.mubr.f32.gmra.mxu0 %v2799
      %v3023 = vpop.f32.mrf.mxu0
      %v3024 = vadd.f32 0.0, %v3023
      %v3025 = vpop.f32.mrf.mxu0
      %3026 = vmatprep.mubr.f32.mxu0 0.0
      %3027 = vmatmul.mubr.f32.gmra.mxu0 %v2802
      %v3028 = vpop.f32.mrf.mxu0
      %v3029 = vadd.f32 0.0, %v3028
      %v3030 = vpop.f32.mrf.mxu0
      %3031 = vdwg.mxu0
      %v3032 = vadd.f32 %v2609, %v2874
      %v3033 = vadd.f32 %v2610, %v2879
      %v3034 = vadd.f32 %v2611, %v2884
      %v3035 = vadd.f32 %v2612, %v2889
      %v3036 = vadd.f32 %v2613, %v2894
      %v3037 = vadd.f32 %v2614, %v2899
      %v3038 = vadd.f32 %v2615, %v2904
      %v3039 = vadd.f32 %v2616, %v2909
      %v3040 = vadd.f32 %v2617, %v2914
      %v3041 = vadd.f32 %v2618, %v2919
      %v3042 = vadd.f32 %v2619, %v2924
      %v3043 = vadd.f32 %v2620, %v2929
      %v3044 = vadd.f32 %v2621, %v2934
      %v3045 = vadd.f32 %v2622, %v2939
      %v3046 = vadd.f32 %v2623, %v2944
      %v3047 = vadd.f32 %v2624, %v2949
      %v3048 = vadd.f32 %v2625, %v2954
      %v3049 = vadd.f32 %v2626, %v2959
      %v3050 = vadd.f32 %v2627, %v2964
      %v3051 = vadd.f32 %v2628, %v2969
      %v3052 = vadd.f32 %v2629, %v2974
      %v3053 = vadd.f32 %v2630, %v2979
      %v3054 = vadd.f32 %v2631, %v2984
      %v3055 = vadd.f32 %v2632, %v2989
      %v3056 = vadd.f32 %v2633, %v2994
      %v3057 = vadd.f32 %v2634, %v2999
      %v3058 = vadd.f32 %v2635, %v3004
      %v3059 = vadd.f32 %v2636, %v3009
      %v3060 = vadd.f32 %v2637, %v3014
      %v3061 = vadd.f32 %v2638, %v3019
      %v3062 = vadd.f32 %v2639, %v3024
      %v3063 = vadd.f32 %v2640, %v3029
      %v3064 = vld [vmem:[%s2641 + $0x1] sm:$0xff]
      %v3065 = vld [vmem:[%s2641 + $0x9] sm:$0xff]
      %v3066 = vld [vmem:[%s2641 + $0x19] sm:$0xff]
      %v3067 = vld [vmem:[%s2641 + $0x21] sm:$0xff]
      %v3068 = vld [vmem:[%s2641 + $0x31] sm:$0xff]
      %v3069 = vld [vmem:[%s2641 + $0x39] sm:$0xff]
      %v3070 = vld [vmem:[%s2641 + $0x49] sm:$0xff]
      %v3071 = vld [vmem:[%s2641 + $0x51] sm:$0xff]
      %v3072 = vld [vmem:[%s2641 + $0x61] sm:$0xff]
      %v3073 = vld [vmem:[%s2641 + $0x69] sm:$0xff]
      %v3074 = vld [vmem:[%s2641 + $0x79] sm:$0xff]
      %v3075 = vld [vmem:[%s2641 + $0x81] sm:$0xff]
      %v3076 = vld [vmem:[%s2641 + $0x91] sm:$0xff]
      %v3077 = vld [vmem:[%s2641 + $0x99] sm:$0xff]
      %v3078 = vld [vmem:[%s2641 + $0xa9] sm:$0xff]
      %v3079 = vld [vmem:[%s2641 + $0xb1] sm:$0xff]
      %v3080 = vld [vmem:[%s2641 + $0xc1] sm:$0xff]
      %v3081 = vld [vmem:[%s2641 + $0xc9] sm:$0xff]
      %v3082 = vld [vmem:[%s2641 + $0xd9] sm:$0xff]
      %v3083 = vld [vmem:[%s2641 + $0xe1] sm:$0xff]
      %v3084 = vld [vmem:[%s2641 + $0xf1] sm:$0xff]
      %v3085 = vld [vmem:[%s2641 + $0xf9] sm:$0xff]
      %v3086 = vld [vmem:[%s2641 + $0x109] sm:$0xff]
      %v3087 = vld [vmem:[%s2641 + $0x111] sm:$0xff]
      %v3088 = vld [vmem:[%s2641 + $0x121] sm:$0xff]
      %v3089 = vld [vmem:[%s2641 + $0x129] sm:$0xff]
      %v3090 = vld [vmem:[%s2641 + $0x139] sm:$0xff]
      %v3091 = vld [vmem:[%s2641 + $0x141] sm:$0xff]
      %v3092 = vld [vmem:[%s2641 + $0x151] sm:$0xff]
      %v3093 = vld [vmem:[%s2641 + $0x159] sm:$0xff]
      %v3094 = vld [vmem:[%s2641 + $0x169] sm:$0xff]
      %v3095 = vld [vmem:[%s2641 + $0x171] sm:$0xff]
      %v3096 = vmax.f32 %v3064, 0.0
      %v3097 = vmax.f32 %v3065, 0.0
      %v3098 = vmax.f32 %v3066, 0.0
      %v3099 = vmax.f32 %v3067, 0.0
      %v3100 = vmax.f32 %v3068, 0.0
      %v3101 = vmax.f32 %v3069, 0.0
      %v3102 = vmax.f32 %v3070, 0.0
      %v3103 = vmax.f32 %v3071, 0.0
      %v3104 = vmax.f32 %v3072, 0.0
      %v3105 = vmax.f32 %v3073, 0.0
      %v3106 = vmax.f32 %v3074, 0.0
      %v3107 = vmax.f32 %v3075, 0.0
      %v3108 = vmax.f32 %v3076, 0.0
      %v3109 = vmax.f32 %v3077, 0.0
      %v3110 = vmax.f32 %v3078, 0.0
      %v3111 = vmax.f32 %v3079, 0.0
      %v3112 = vmax.f32 %v3080, 0.0
      %v3113 = vmax.f32 %v3081, 0.0
      %v3114 = vmax.f32 %v3082, 0.0
      %v3115 = vmax.f32 %v3083, 0.0
      %v3116 = vmax.f32 %v3084, 0.0
      %v3117 = vmax.f32 %v3085, 0.0
      %v3118 = vmax.f32 %v3086, 0.0
      %v3119 = vmax.f32 %v3087, 0.0
      %v3120 = vmax.f32 %v3088, 0.0
      %v3121 = vmax.f32 %v3089, 0.0
      %v3122 = vmax.f32 %v3090, 0.0
      %v3123 = vmax.f32 %v3091, 0.0
      %v3124 = vmax.f32 %v3092, 0.0
      %v3125 = vmax.f32 %v3093, 0.0
      %v3126 = vmax.f32 %v3094, 0.0
      %v3127 = vmax.f32 %v3095, 0.0
      %s3128 = scalar_lea.vmem %s1, 28
      %v3129 = vld [vmem:[%s3128] sm:$0xf]
      %v3131 = vsel %vm302, %v3096, 0
      %v3134 = vsel %vm302, %v3097, 0
      %v3137 = vsel %vm302, %v3098, 0
      %v3140 = vsel %vm302, %v3099, 0
      %v3143 = vsel %vm302, %v3100, 0
      %v3146 = vsel %vm302, %v3101, 0
      %v3149 = vsel %vm302, %v3102, 0
      %v3152 = vsel %vm302, %v3103, 0
      %v3155 = vsel %vm302, %v3104, 0
      %v3158 = vsel %vm302, %v3105, 0
      %v3161 = vsel %vm302, %v3106, 0
      %v3164 = vsel %vm302, %v3107, 0
      %v3167 = vsel %vm302, %v3108, 0
      %v3170 = vsel %vm302, %v3109, 0
      %v3173 = vsel %vm302, %v3110, 0
      %v3176 = vsel %vm302, %v3111, 0
      %v3179 = vsel %vm302, %v3112, 0
      %v3182 = vsel %vm302, %v3113, 0
      %v3185 = vsel %vm302, %v3114, 0
      %v3188 = vsel %vm302, %v3115, 0
      %v3191 = vsel %vm302, %v3116, 0
      %v3194 = vsel %vm302, %v3117, 0
      %v3197 = vsel %vm302, %v3118, 0
      %v3200 = vsel %vm302, %v3119, 0
      %v3203 = vsel %vm302, %v3120, 0
      %v3206 = vsel %vm302, %v3121, 0
      %v3209 = vsel %vm302, %v3122, 0
      %v3212 = vsel %vm302, %v3123, 0
      %v3215 = vsel %vm302, %v3124, 0
      %v3218 = vsel %vm302, %v3125, 0
      %v3221 = vsel %vm302, %v3126, 0
      %v3224 = vsel %vm302, %v3127, 0
      %v3227 = vsel %vm399, %v3129, 0
      %3229 = vmatprep.subr.mxu0 0.0
      %3230 = vmatpush1.msra.mxu0 0.0
      %3231 = vmatprep.subr.mxu0 0.0
      %3232 = vmatpush1.msra.mxu0 0.0
      %3233 = vmatprep.subr.mxu0 0.0
      %3234 = vmatpush1.msra.mxu0 0.0
      %3235 = vmatprep.subr.mxu0 0.0
      %3236 = vmatpush1.msra.mxu0 0.0
      %3237 = vmatprep.subr.mxu0 0.0
      %3238 = vmatpush1.msra.mxu0 0.0
      %3239 = vmatprep.subr.mxu0 0.0
      %3240 = vmatpush1.msra.mxu0 0.0
      %3241 = vmatprep.subr.mxu0 0.0
      %3242 = vmatpush1.msra.mxu0 0.0
      %3243 = vmatprep.subr.mxu0 0.0
      %3244 = vmatpush1.msra.mxu0 0.0
      %3245 = vmatprep.subr.mxu0 0.0
      %3246 = vmatpush1.msra.mxu0 0.0
      %3247 = vmatprep.subr.mxu0 0.0
      %3248 = vmatpush1.msra.mxu0 0.0
      %3249 = vmatprep.subr.mxu0 0.0
      %3250 = vmatpush1.msra.mxu0 0.0
      %3251 = vmatprep.subr.mxu0 0.0
      %3252 = vmatpush1.msra.mxu0 0.0
      %3253 = vmatprep.subr.mxu0 0.0
      %3254 = vmatpush1.msra.mxu0 0.0
      %3255 = vmatprep.subr.mxu0 0.0
      %3256 = vmatpush1.msra.mxu0 0.0
      %3257 = vmatprep.subr.mxu0 0.0
      %3258 = vmatpush1.msra.mxu0 0.0
      %3259 = vmatprep.subr.mxu0 0.0
      %3260 = vmatpush1.msra.mxu0 %v3227
      %3261 = vmatprep.subr.mxu0 0.0
      %3262 = vmatpush2.msra.mxu0 0.0
      %3263 = vmatprep.subr.mxu0 0.0
      %3264 = vmatpush2.msra.mxu0 0.0
      %3265 = vmatprep.subr.mxu0 0.0
      %3266 = vmatpush2.msra.mxu0 0.0
      %3267 = vmatprep.subr.mxu0 0.0
      %3268 = vmatpush2.msra.mxu0 0.0
      %3269 = vmatprep.subr.mxu0 0.0
      %3270 = vmatpush2.msra.mxu0 0.0
      %3271 = vmatprep.subr.mxu0 0.0
      %3272 = vmatpush2.msra.mxu0 0.0
      %3273 = vmatprep.subr.mxu0 0.0
      %3274 = vmatpush2.msra.mxu0 0.0
      %3275 = vmatprep.subr.mxu0 0.0
      %3276 = vmatpush2.msra.mxu0 0.0
      %3277 = vmatprep.subr.mxu0 0.0
      %3278 = vmatpush2.msra.mxu0 0.0
      %3279 = vmatprep.subr.mxu0 0.0
      %3280 = vmatpush2.msra.mxu0 0.0
      %3281 = vmatprep.subr.mxu0 0.0
      %3282 = vmatpush2.msra.mxu0 0.0
      %3283 = vmatprep.subr.mxu0 0.0
      %3284 = vmatpush2.msra.mxu0 0.0
      %3285 = vmatprep.subr.mxu0 0.0
      %3286 = vmatpush2.msra.mxu0 0.0
      %3287 = vmatprep.subr.mxu0 0.0
      %3288 = vmatpush2.msra.mxu0 0.0
      %3289 = vmatprep.subr.mxu0 0.0
      %3290 = vmatpush2.msra.mxu0 0.0
      %3291 = vmatprep.subr.mxu0 0.0
      %3292 = vmatpush2.msra.mxu0 0.0
      %3293 = vmatprep.mubr.f32.mxu0 0.0
      %3294 = vmatmul.mubr.f32.gmra.mxu0 %v3131
      %v3295 = vpop.f32.mrf.mxu0
      %v3296 = vadd.f32 0.0, %v3295
      %v3297 = vpop.f32.mrf.mxu0
      %3298 = vmatprep.mubr.f32.mxu0 0.0
      %3299 = vmatmul.mubr.f32.gmra.mxu0 %v3134
      %v3300 = vpop.f32.mrf.mxu0
      %v3301 = vadd.f32 0.0, %v3300
      %v3302 = vpop.f32.mrf.mxu0
      %3303 = vmatprep.mubr.f32.mxu0 0.0
      %3304 = vmatmul.mubr.f32.gmra.mxu0 %v3137
      %v3305 = vpop.f32.mrf.mxu0
      %v3306 = vadd.f32 0.0, %v3305
      %v3307 = vpop.f32.mrf.mxu0
      %3308 = vmatprep.mubr.f32.mxu0 0.0
      %3309 = vmatmul.mubr.f32.gmra.mxu0 %v3140
      %v3310 = vpop.f32.mrf.mxu0
      %v3311 = vadd.f32 0.0, %v3310
      %v3312 = vpop.f32.mrf.mxu0
      %3313 = vmatprep.mubr.f32.mxu0 0.0
      %3314 = vmatmul.mubr.f32.gmra.mxu0 %v3143
      %v3315 = vpop.f32.mrf.mxu0
      %v3316 = vadd.f32 0.0, %v3315
      %v3317 = vpop.f32.mrf.mxu0
      %3318 = vmatprep.mubr.f32.mxu0 0.0
      %3319 = vmatmul.mubr.f32.gmra.mxu0 %v3146
      %v3320 = vpop.f32.mrf.mxu0
      %v3321 = vadd.f32 0.0, %v3320
      %v3322 = vpop.f32.mrf.mxu0
      %3323 = vmatprep.mubr.f32.mxu0 0.0
      %3324 = vmatmul.mubr.f32.gmra.mxu0 %v3149
      %v3325 = vpop.f32.mrf.mxu0
      %v3326 = vadd.f32 0.0, %v3325
      %v3327 = vpop.f32.mrf.mxu0
      %3328 = vmatprep.mubr.f32.mxu0 0.0
      %3329 = vmatmul.mubr.f32.gmra.mxu0 %v3152
      %v3330 = vpop.f32.mrf.mxu0
      %v3331 = vadd.f32 0.0, %v3330
      %v3332 = vpop.f32.mrf.mxu0
      %3333 = vmatprep.mubr.f32.mxu0 0.0
      %3334 = vmatmul.mubr.f32.gmra.mxu0 %v3155
      %v3335 = vpop.f32.mrf.mxu0
      %v3336 = vadd.f32 0.0, %v3335
      %v3337 = vpop.f32.mrf.mxu0
      %3338 = vmatprep.mubr.f32.mxu0 0.0
      %3339 = vmatmul.mubr.f32.gmra.mxu0 %v3158
      %v3340 = vpop.f32.mrf.mxu0
      %v3341 = vadd.f32 0.0, %v3340
      %v3342 = vpop.f32.mrf.mxu0
      %3343 = vmatprep.mubr.f32.mxu0 0.0
      %3344 = vmatmul.mubr.f32.gmra.mxu0 %v3161
      %v3345 = vpop.f32.mrf.mxu0
      %v3346 = vadd.f32 0.0, %v3345
      %v3347 = vpop.f32.mrf.mxu0
      %3348 = vmatprep.mubr.f32.mxu0 0.0
      %3349 = vmatmul.mubr.f32.gmra.mxu0 %v3164
      %v3350 = vpop.f32.mrf.mxu0
      %v3351 = vadd.f32 0.0, %v3350
      %v3352 = vpop.f32.mrf.mxu0
      %3353 = vmatprep.mubr.f32.mxu0 0.0
      %3354 = vmatmul.mubr.f32.gmra.mxu0 %v3167
      %v3355 = vpop.f32.mrf.mxu0
      %v3356 = vadd.f32 0.0, %v3355
      %v3357 = vpop.f32.mrf.mxu0
      %3358 = vmatprep.mubr.f32.mxu0 0.0
      %3359 = vmatmul.mubr.f32.gmra.mxu0 %v3170
      %v3360 = vpop.f32.mrf.mxu0
      %v3361 = vadd.f32 0.0, %v3360
      %v3362 = vpop.f32.mrf.mxu0
      %3363 = vmatprep.mubr.f32.mxu0 0.0
      %3364 = vmatmul.mubr.f32.gmra.mxu0 %v3173
      %v3365 = vpop.f32.mrf.mxu0
      %v3366 = vadd.f32 0.0, %v3365
      %v3367 = vpop.f32.mrf.mxu0
      %3368 = vmatprep.mubr.f32.mxu0 0.0
      %3369 = vmatmul.mubr.f32.gmra.mxu0 %v3176
      %v3370 = vpop.f32.mrf.mxu0
      %v3371 = vadd.f32 0.0, %v3370
      %v3372 = vpop.f32.mrf.mxu0
      %3373 = vmatprep.mubr.f32.mxu0 0.0
      %3374 = vmatmul.mubr.f32.gmra.mxu0 %v3179
      %v3375 = vpop.f32.mrf.mxu0
      %v3376 = vadd.f32 0.0, %v3375
      %v3377 = vpop.f32.mrf.mxu0
      %3378 = vmatprep.mubr.f32.mxu0 0.0
      %3379 = vmatmul.mubr.f32.gmra.mxu0 %v3182
      %v3380 = vpop.f32.mrf.mxu0
      %v3381 = vadd.f32 0.0, %v3380
      %v3382 = vpop.f32.mrf.mxu0
      %3383 = vmatprep.mubr.f32.mxu0 0.0
      %3384 = vmatmul.mubr.f32.gmra.mxu0 %v3185
      %v3385 = vpop.f32.mrf.mxu0
      %v3386 = vadd.f32 0.0, %v3385
      %v3387 = vpop.f32.mrf.mxu0
      %3388 = vmatprep.mubr.f32.mxu0 0.0
      %3389 = vmatmul.mubr.f32.gmra.mxu0 %v3188
      %v3390 = vpop.f32.mrf.mxu0
      %v3391 = vadd.f32 0.0, %v3390
      %v3392 = vpop.f32.mrf.mxu0
      %3393 = vmatprep.mubr.f32.mxu0 0.0
      %3394 = vmatmul.mubr.f32.gmra.mxu0 %v3191
      %v3395 = vpop.f32.mrf.mxu0
      %v3396 = vadd.f32 0.0, %v3395
      %v3397 = vpop.f32.mrf.mxu0
      %3398 = vmatprep.mubr.f32.mxu0 0.0
      %3399 = vmatmul.mubr.f32.gmra.mxu0 %v3194
      %v3400 = vpop.f32.mrf.mxu0
      %v3401 = vadd.f32 0.0, %v3400
      %v3402 = vpop.f32.mrf.mxu0
      %3403 = vmatprep.mubr.f32.mxu0 0.0
      %3404 = vmatmul.mubr.f32.gmra.mxu0 %v3197
      %v3405 = vpop.f32.mrf.mxu0
      %v3406 = vadd.f32 0.0, %v3405
      %v3407 = vpop.f32.mrf.mxu0
      %3408 = vmatprep.mubr.f32.mxu0 0.0
      %3409 = vmatmul.mubr.f32.gmra.mxu0 %v3200
      %v3410 = vpop.f32.mrf.mxu0
      %v3411 = vadd.f32 0.0, %v3410
      %v3412 = vpop.f32.mrf.mxu0
      %3413 = vmatprep.mubr.f32.mxu0 0.0
      %3414 = vmatmul.mubr.f32.gmra.mxu0 %v3203
      %v3415 = vpop.f32.mrf.mxu0
      %v3416 = vadd.f32 0.0, %v3415
      %v3417 = vpop.f32.mrf.mxu0
      %3418 = vmatprep.mubr.f32.mxu0 0.0
      %3419 = vmatmul.mubr.f32.gmra.mxu0 %v3206
      %v3420 = vpop.f32.mrf.mxu0
      %v3421 = vadd.f32 0.0, %v3420
      %v3422 = vpop.f32.mrf.mxu0
      %3423 = vmatprep.mubr.f32.mxu0 0.0
      %3424 = vmatmul.mubr.f32.gmra.mxu0 %v3209
      %v3425 = vpop.f32.mrf.mxu0
      %v3426 = vadd.f32 0.0, %v3425
      %v3427 = vpop.f32.mrf.mxu0
      %3428 = vmatprep.mubr.f32.mxu0 0.0
      %3429 = vmatmul.mubr.f32.gmra.mxu0 %v3212
      %v3430 = vpop.f32.mrf.mxu0
      %v3431 = vadd.f32 0.0, %v3430
      %v3432 = vpop.f32.mrf.mxu0
      %3433 = vmatprep.mubr.f32.mxu0 0.0
      %3434 = vmatmul.mubr.f32.gmra.mxu0 %v3215
      %v3435 = vpop.f32.mrf.mxu0
      %v3436 = vadd.f32 0.0, %v3435
      %v3437 = vpop.f32.mrf.mxu0
      %3438 = vmatprep.mubr.f32.mxu0 0.0
      %3439 = vmatmul.mubr.f32.gmra.mxu0 %v3218
      %v3440 = vpop.f32.mrf.mxu0
      %v3441 = vadd.f32 0.0, %v3440
      %v3442 = vpop.f32.mrf.mxu0
      %3443 = vmatprep.mubr.f32.mxu0 0.0
      %3444 = vmatmul.mubr.f32.gmra.mxu0 %v3221
      %v3445 = vpop.f32.mrf.mxu0
      %v3446 = vadd.f32 0.0, %v3445
      %v3447 = vpop.f32.mrf.mxu0
      %3448 = vmatprep.mubr.f32.mxu0 0.0
      %3449 = vmatmul.mubr.f32.gmra.mxu0 %v3224
      %v3450 = vpop.f32.mrf.mxu0
      %v3451 = vadd.f32 0.0, %v3450
      %v3452 = vpop.f32.mrf.mxu0
      %3453 = vdwg.mxu0
      %v3454 = vadd.f32 %v3032, %v3296
      %v3455 = vadd.f32 %v3033, %v3301
      %v3456 = vadd.f32 %v3034, %v3306
      %v3457 = vadd.f32 %v3035, %v3311
      %v3458 = vadd.f32 %v3036, %v3316
      %v3459 = vadd.f32 %v3037, %v3321
      %v3460 = vadd.f32 %v3038, %v3326
      %v3461 = vadd.f32 %v3039, %v3331
      %v3462 = vadd.f32 %v3040, %v3336
      %v3463 = vadd.f32 %v3041, %v3341
      %v3464 = vadd.f32 %v3042, %v3346
      %v3465 = vadd.f32 %v3043, %v3351
      %v3466 = vadd.f32 %v3044, %v3356
      %v3467 = vadd.f32 %v3045, %v3361
      %v3468 = vadd.f32 %v3046, %v3366
      %v3469 = vadd.f32 %v3047, %v3371
      %v3470 = vadd.f32 %v3048, %v3376
      %v3471 = vadd.f32 %v3049, %v3381
      %v3472 = vadd.f32 %v3050, %v3386
      %v3473 = vadd.f32 %v3051, %v3391
      %v3474 = vadd.f32 %v3052, %v3396
      %v3475 = vadd.f32 %v3053, %v3401
      %v3476 = vadd.f32 %v3054, %v3406
      %v3477 = vadd.f32 %v3055, %v3411
      %v3478 = vadd.f32 %v3056, %v3416
      %v3479 = vadd.f32 %v3057, %v3421
      %v3480 = vadd.f32 %v3058, %v3426
      %v3481 = vadd.f32 %v3059, %v3431
      %v3482 = vadd.f32 %v3060, %v3436
      %v3483 = vadd.f32 %v3061, %v3441
      %v3484 = vadd.f32 %v3062, %v3446
      %v3485 = vadd.f32 %v3063, %v3451
      %v3486 = vld [vmem:[%s2641 + $0x2] sm:$0xff]
      %v3487 = vld [vmem:[%s2641 + $0xa] sm:$0xff]
      %v3488 = vld [vmem:[%s2641 + $0x1a] sm:$0xff]
      %v3489 = vld [vmem:[%s2641 + $0x22] sm:$0xff]
      %v3490 = vld [vmem:[%s2641 + $0x32] sm:$0xff]
      %v3491 = vld [vmem:[%s2641 + $0x3a] sm:$0xff]
      %v3492 = vld [vmem:[%s2641 + $0x4a] sm:$0xff]
      %v3493 = vld [vmem:[%s2641 + $0x52] sm:$0xff]
      %v3494 = vld [vmem:[%s2641 + $0x62] sm:$0xff]
      %v3495 = vld [vmem:[%s2641 + $0x6a] sm:$0xff]
      %v3496 = vld [vmem:[%s2641 + $0x7a] sm:$0xff]
      %v3497 = vld [vmem:[%s2641 + $0x82] sm:$0xff]
      %v3498 = vld [vmem:[%s2641 + $0x92] sm:$0xff]
      %v3499 = vld [vmem:[%s2641 + $0x9a] sm:$0xff]
      %v3500 = vld [vmem:[%s2641 + $0xaa] sm:$0xff]
      %v3501 = vld [vmem:[%s2641 + $0xb2] sm:$0xff]
      %v3502 = vld [vmem:[%s2641 + $0xc2] sm:$0xff]
      %v3503 = vld [vmem:[%s2641 + $0xca] sm:$0xff]
      %v3504 = vld [vmem:[%s2641 + $0xda] sm:$0xff]
      %v3505 = vld [vmem:[%s2641 + $0xe2] sm:$0xff]
      %v3506 = vld [vmem:[%s2641 + $0xf2] sm:$0xff]
      %v3507 = vld [vmem:[%s2641 + $0xfa] sm:$0xff]
      %v3508 = vld [vmem:[%s2641 + $0x10a] sm:$0xff]
      %v3509 = vld [vmem:[%s2641 + $0x112] sm:$0xff]
      %v3510 = vld [vmem:[%s2641 + $0x122] sm:$0xff]
      %v3511 = vld [vmem:[%s2641 + $0x12a] sm:$0xff]
      %v3512 = vld [vmem:[%s2641 + $0x13a] sm:$0xff]
      %v3513 = vld [vmem:[%s2641 + $0x142] sm:$0xff]
      %v3514 = vld [vmem:[%s2641 + $0x152] sm:$0xff]
      %v3515 = vld [vmem:[%s2641 + $0x15a] sm:$0xff]
      %v3516 = vld [vmem:[%s2641 + $0x16a] sm:$0xff]
      %v3517 = vld [vmem:[%s2641 + $0x172] sm:$0xff]
      %v3518 = vmax.f32 %v3486, 0.0
      %v3519 = vmax.f32 %v3487, 0.0
      %v3520 = vmax.f32 %v3488, 0.0
      %v3521 = vmax.f32 %v3489, 0.0
      %v3522 = vmax.f32 %v3490, 0.0
      %v3523 = vmax.f32 %v3491, 0.0
      %v3524 = vmax.f32 %v3492, 0.0
      %v3525 = vmax.f32 %v3493, 0.0
      %v3526 = vmax.f32 %v3494, 0.0
      %v3527 = vmax.f32 %v3495, 0.0
      %v3528 = vmax.f32 %v3496, 0.0
      %v3529 = vmax.f32 %v3497, 0.0
      %v3530 = vmax.f32 %v3498, 0.0
      %v3531 = vmax.f32 %v3499, 0.0
      %v3532 = vmax.f32 %v3500, 0.0
      %v3533 = vmax.f32 %v3501, 0.0
      %v3534 = vmax.f32 %v3502, 0.0
      %v3535 = vmax.f32 %v3503, 0.0
      %v3536 = vmax.f32 %v3504, 0.0
      %v3537 = vmax.f32 %v3505, 0.0
      %v3538 = vmax.f32 %v3506, 0.0
      %v3539 = vmax.f32 %v3507, 0.0
      %v3540 = vmax.f32 %v3508, 0.0
      %v3541 = vmax.f32 %v3509, 0.0
      %v3542 = vmax.f32 %v3510, 0.0
      %v3543 = vmax.f32 %v3511, 0.0
      %v3544 = vmax.f32 %v3512, 0.0
      %v3545 = vmax.f32 %v3513, 0.0
      %v3546 = vmax.f32 %v3514, 0.0
      %v3547 = vmax.f32 %v3515, 0.0
      %v3548 = vmax.f32 %v3516, 0.0
      %v3549 = vmax.f32 %v3517, 0.0
      %s3550 = scalar_lea.vmem %s1, 32
      %v3551 = vld [vmem:[%s3550] sm:$0xf]
      %v3553 = vsel %vm302, %v3518, 0
      %v3556 = vsel %vm302, %v3519, 0
      %v3559 = vsel %vm302, %v3520, 0
      %v3562 = vsel %vm302, %v3521, 0
      %v3565 = vsel %vm302, %v3522, 0
      %v3568 = vsel %vm302, %v3523, 0
      %v3571 = vsel %vm302, %v3524, 0
      %v3574 = vsel %vm302, %v3525, 0
      %v3577 = vsel %vm302, %v3526, 0
      %v3580 = vsel %vm302, %v3527, 0
      %v3583 = vsel %vm302, %v3528, 0
      %v3586 = vsel %vm302, %v3529, 0
      %v3589 = vsel %vm302, %v3530, 0
      %v3592 = vsel %vm302, %v3531, 0
      %v3595 = vsel %vm302, %v3532, 0
      %v3598 = vsel %vm302, %v3533, 0
      %v3601 = vsel %vm302, %v3534, 0
      %v3604 = vsel %vm302, %v3535, 0
      %v3607 = vsel %vm302, %v3536, 0
      %v3610 = vsel %vm302, %v3537, 0
      %v3613 = vsel %vm302, %v3538, 0
      %v3616 = vsel %vm302, %v3539, 0
      %v3619 = vsel %vm302, %v3540, 0
      %v3622 = vsel %vm302, %v3541, 0
      %v3625 = vsel %vm302, %v3542, 0
      %v3628 = vsel %vm302, %v3543, 0
      %v3631 = vsel %vm302, %v3544, 0
      %v3634 = vsel %vm302, %v3545, 0
      %v3637 = vsel %vm302, %v3546, 0
      %v3640 = vsel %vm302, %v3547, 0
      %v3643 = vsel %vm302, %v3548, 0
      %v3646 = vsel %vm302, %v3549, 0
      %v3649 = vsel %vm399, %v3551, 0
      %3651 = vmatprep.subr.mxu0 0.0
      %3652 = vmatpush1.msra.mxu0 0.0
      %3653 = vmatprep.subr.mxu0 0.0
      %3654 = vmatpush1.msra.mxu0 0.0
      %3655 = vmatprep.subr.mxu0 0.0
      %3656 = vmatpush1.msra.mxu0 0.0
      %3657 = vmatprep.subr.mxu0 0.0
      %3658 = vmatpush1.msra.mxu0 0.0
      %3659 = vmatprep.subr.mxu0 0.0
      %3660 = vmatpush1.msra.mxu0 0.0
      %3661 = vmatprep.subr.mxu0 0.0
      %3662 = vmatpush1.msra.mxu0 0.0
      %3663 = vmatprep.subr.mxu0 0.0
      %3664 = vmatpush1.msra.mxu0 0.0
      %3665 = vmatprep.subr.mxu0 0.0
      %3666 = vmatpush1.msra.mxu0 0.0
      %3667 = vmatprep.subr.mxu0 0.0
      %3668 = vmatpush1.msra.mxu0 0.0
      %3669 = vmatprep.subr.mxu0 0.0
      %3670 = vmatpush1.msra.mxu0 0.0
      %3671 = vmatprep.subr.mxu0 0.0
      %3672 = vmatpush1.msra.mxu0 0.0
      %3673 = vmatprep.subr.mxu0 0.0
      %3674 = vmatpush1.msra.mxu0 0.0
      %3675 = vmatprep.subr.mxu0 0.0
      %3676 = vmatpush1.msra.mxu0 0.0
      %3677 = vmatprep.subr.mxu0 0.0
      %3678 = vmatpush1.msra.mxu0 0.0
      %3679 = vmatprep.subr.mxu0 0.0
      %3680 = vmatpush1.msra.mxu0 0.0
      %3681 = vmatprep.subr.mxu0 0.0
      %3682 = vmatpush1.msra.mxu0 %v3649
      %3683 = vmatprep.subr.mxu0 0.0
      %3684 = vmatpush2.msra.mxu0 0.0
      %3685 = vmatprep.subr.mxu0 0.0
      %3686 = vmatpush2.msra.mxu0 0.0
      %3687 = vmatprep.subr.mxu0 0.0
      %3688 = vmatpush2.msra.mxu0 0.0
      %3689 = vmatprep.subr.mxu0 0.0
      %3690 = vmatpush2.msra.mxu0 0.0
      %3691 = vmatprep.subr.mxu0 0.0
      %3692 = vmatpush2.msra.mxu0 0.0
      %3693 = vmatprep.subr.mxu0 0.0
      %3694 = vmatpush2.msra.mxu0 0.0
      %3695 = vmatprep.subr.mxu0 0.0
      %3696 = vmatpush2.msra.mxu0 0.0
      %3697 = vmatprep.subr.mxu0 0.0
      %3698 = vmatpush2.msra.mxu0 0.0
      %3699 = vmatprep.subr.mxu0 0.0
      %3700 = vmatpush2.msra.mxu0 0.0
      %3701 = vmatprep.subr.mxu0 0.0
      %3702 = vmatpush2.msra.mxu0 0.0
      %3703 = vmatprep.subr.mxu0 0.0
      %3704 = vmatpush2.msra.mxu0 0.0
      %3705 = vmatprep.subr.mxu0 0.0
      %3706 = vmatpush2.msra.mxu0 0.0
      %3707 = vmatprep.subr.mxu0 0.0
      %3708 = vmatpush2.msra.mxu0 0.0
      %3709 = vmatprep.subr.mxu0 0.0
      %3710 = vmatpush2.msra.mxu0 0.0
      %3711 = vmatprep.subr.mxu0 0.0
      %3712 = vmatpush2.msra.mxu0 0.0
      %3713 = vmatprep.subr.mxu0 0.0
      %3714 = vmatpush2.msra.mxu0 0.0
      %3715 = vmatprep.mubr.f32.mxu0 0.0
      %3716 = vmatmul.mubr.f32.gmra.mxu0 %v3553
      %v3717 = vpop.f32.mrf.mxu0
      %v3718 = vadd.f32 0.0, %v3717
      %v3719 = vpop.f32.mrf.mxu0
      %3720 = vmatprep.mubr.f32.mxu0 0.0
      %3721 = vmatmul.mubr.f32.gmra.mxu0 %v3556
      %v3722 = vpop.f32.mrf.mxu0
      %v3723 = vadd.f32 0.0, %v3722
      %v3724 = vpop.f32.mrf.mxu0
      %3725 = vmatprep.mubr.f32.mxu0 0.0
      %3726 = vmatmul.mubr.f32.gmra.mxu0 %v3559
      %v3727 = vpop.f32.mrf.mxu0
      %v3728 = vadd.f32 0.0, %v3727
      %v3729 = vpop.f32.mrf.mxu0
      %3730 = vmatprep.mubr.f32.mxu0 0.0
      %3731 = vmatmul.mubr.f32.gmra.mxu0 %v3562
      %v3732 = vpop.f32.mrf.mxu0
      %v3733 = vadd.f32 0.0, %v3732
      %v3734 = vpop.f32.mrf.mxu0
      %3735 = vmatprep.mubr.f32.mxu0 0.0
      %3736 = vmatmul.mubr.f32.gmra.mxu0 %v3565
      %v3737 = vpop.f32.mrf.mxu0
      %v3738 = vadd.f32 0.0, %v3737
      %v3739 = vpop.f32.mrf.mxu0
      %3740 = vmatprep.mubr.f32.mxu0 0.0
      %3741 = vmatmul.mubr.f32.gmra.mxu0 %v3568
      %v3742 = vpop.f32.mrf.mxu0
      %v3743 = vadd.f32 0.0, %v3742
      %v3744 = vpop.f32.mrf.mxu0
      %3745 = vmatprep.mubr.f32.mxu0 0.0
      %3746 = vmatmul.mubr.f32.gmra.mxu0 %v3571
      %v3747 = vpop.f32.mrf.mxu0
      %v3748 = vadd.f32 0.0, %v3747
      %v3749 = vpop.f32.mrf.mxu0
      %3750 = vmatprep.mubr.f32.mxu0 0.0
      %3751 = vmatmul.mubr.f32.gmra.mxu0 %v3574
      %v3752 = vpop.f32.mrf.mxu0
      %v3753 = vadd.f32 0.0, %v3752
      %v3754 = vpop.f32.mrf.mxu0
      %3755 = vmatprep.mubr.f32.mxu0 0.0
      %3756 = vmatmul.mubr.f32.gmra.mxu0 %v3577
      %v3757 = vpop.f32.mrf.mxu0
      %v3758 = vadd.f32 0.0, %v3757
      %v3759 = vpop.f32.mrf.mxu0
      %3760 = vmatprep.mubr.f32.mxu0 0.0
      %3761 = vmatmul.mubr.f32.gmra.mxu0 %v3580
      %v3762 = vpop.f32.mrf.mxu0
      %v3763 = vadd.f32 0.0, %v3762
      %v3764 = vpop.f32.mrf.mxu0
      %3765 = vmatprep.mubr.f32.mxu0 0.0
      %3766 = vmatmul.mubr.f32.gmra.mxu0 %v3583
      %v3767 = vpop.f32.mrf.mxu0
      %v3768 = vadd.f32 0.0, %v3767
      %v3769 = vpop.f32.mrf.mxu0
      %3770 = vmatprep.mubr.f32.mxu0 0.0
      %3771 = vmatmul.mubr.f32.gmra.mxu0 %v3586
      %v3772 = vpop.f32.mrf.mxu0
      %v3773 = vadd.f32 0.0, %v3772
      %v3774 = vpop.f32.mrf.mxu0
      %3775 = vmatprep.mubr.f32.mxu0 0.0
      %3776 = vmatmul.mubr.f32.gmra.mxu0 %v3589
      %v3777 = vpop.f32.mrf.mxu0
      %v3778 = vadd.f32 0.0, %v3777
      %v3779 = vpop.f32.mrf.mxu0
      %3780 = vmatprep.mubr.f32.mxu0 0.0
      %3781 = vmatmul.mubr.f32.gmra.mxu0 %v3592
      %v3782 = vpop.f32.mrf.mxu0
      %v3783 = vadd.f32 0.0, %v3782
      %v3784 = vpop.f32.mrf.mxu0
      %3785 = vmatprep.mubr.f32.mxu0 0.0
      %3786 = vmatmul.mubr.f32.gmra.mxu0 %v3595
      %v3787 = vpop.f32.mrf.mxu0
      %v3788 = vadd.f32 0.0, %v3787
      %v3789 = vpop.f32.mrf.mxu0
      %3790 = vmatprep.mubr.f32.mxu0 0.0
      %3791 = vmatmul.mubr.f32.gmra.mxu0 %v3598
      %v3792 = vpop.f32.mrf.mxu0
      %v3793 = vadd.f32 0.0, %v3792
      %v3794 = vpop.f32.mrf.mxu0
      %3795 = vmatprep.mubr.f32.mxu0 0.0
      %3796 = vmatmul.mubr.f32.gmra.mxu0 %v3601
      %v3797 = vpop.f32.mrf.mxu0
      %v3798 = vadd.f32 0.0, %v3797
      %v3799 = vpop.f32.mrf.mxu0
      %3800 = vmatprep.mubr.f32.mxu0 0.0
      %3801 = vmatmul.mubr.f32.gmra.mxu0 %v3604
      %v3802 = vpop.f32.mrf.mxu0
      %v3803 = vadd.f32 0.0, %v3802
      %v3804 = vpop.f32.mrf.mxu0
      %3805 = vmatprep.mubr.f32.mxu0 0.0
      %3806 = vmatmul.mubr.f32.gmra.mxu0 %v3607
      %v3807 = vpop.f32.mrf.mxu0
      %v3808 = vadd.f32 0.0, %v3807
      %v3809 = vpop.f32.mrf.mxu0
      %3810 = vmatprep.mubr.f32.mxu0 0.0
      %3811 = vmatmul.mubr.f32.gmra.mxu0 %v3610
      %v3812 = vpop.f32.mrf.mxu0
      %v3813 = vadd.f32 0.0, %v3812
      %v3814 = vpop.f32.mrf.mxu0
      %3815 = vmatprep.mubr.f32.mxu0 0.0
      %3816 = vmatmul.mubr.f32.gmra.mxu0 %v3613
      %v3817 = vpop.f32.mrf.mxu0
      %v3818 = vadd.f32 0.0, %v3817
      %v3819 = vpop.f32.mrf.mxu0
      %3820 = vmatprep.mubr.f32.mxu0 0.0
      %3821 = vmatmul.mubr.f32.gmra.mxu0 %v3616
      %v3822 = vpop.f32.mrf.mxu0
      %v3823 = vadd.f32 0.0, %v3822
      %v3824 = vpop.f32.mrf.mxu0
      %3825 = vmatprep.mubr.f32.mxu0 0.0
      %3826 = vmatmul.mubr.f32.gmra.mxu0 %v3619
      %v3827 = vpop.f32.mrf.mxu0
      %v3828 = vadd.f32 0.0, %v3827
      %v3829 = vpop.f32.mrf.mxu0
      %3830 = vmatprep.mubr.f32.mxu0 0.0
      %3831 = vmatmul.mubr.f32.gmra.mxu0 %v3622
      %v3832 = vpop.f32.mrf.mxu0
      %v3833 = vadd.f32 0.0, %v3832
      %v3834 = vpop.f32.mrf.mxu0
      %3835 = vmatprep.mubr.f32.mxu0 0.0
      %3836 = vmatmul.mubr.f32.gmra.mxu0 %v3625
      %v3837 = vpop.f32.mrf.mxu0
      %v3838 = vadd.f32 0.0, %v3837
      %v3839 = vpop.f32.mrf.mxu0
      %3840 = vmatprep.mubr.f32.mxu0 0.0
      %3841 = vmatmul.mubr.f32.gmra.mxu0 %v3628
      %v3842 = vpop.f32.mrf.mxu0
      %v3843 = vadd.f32 0.0, %v3842
      %v3844 = vpop.f32.mrf.mxu0
      %3845 = vmatprep.mubr.f32.mxu0 0.0
      %3846 = vmatmul.mubr.f32.gmra.mxu0 %v3631
      %v3847 = vpop.f32.mrf.mxu0
      %v3848 = vadd.f32 0.0, %v3847
      %v3849 = vpop.f32.mrf.mxu0
      %3850 = vmatprep.mubr.f32.mxu0 0.0
      %3851 = vmatmul.mubr.f32.gmra.mxu0 %v3634
      %v3852 = vpop.f32.mrf.mxu0
      %v3853 = vadd.f32 0.0, %v3852
      %v3854 = vpop.f32.mrf.mxu0
      %3855 = vmatprep.mubr.f32.mxu0 0.0
      %3856 = vmatmul.mubr.f32.gmra.mxu0 %v3637
      %v3857 = vpop.f32.mrf.mxu0
      %v3858 = vadd.f32 0.0, %v3857
      %v3859 = vpop.f32.mrf.mxu0
      %3860 = vmatprep.mubr.f32.mxu0 0.0
      %3861 = vmatmul.mubr.f32.gmra.mxu0 %v3640
      %v3862 = vpop.f32.mrf.mxu0
      %v3863 = vadd.f32 0.0, %v3862
      %v3864 = vpop.f32.mrf.mxu0
      %3865 = vmatprep.mubr.f32.mxu0 0.0
      %3866 = vmatmul.mubr.f32.gmra.mxu0 %v3643
      %v3867 = vpop.f32.mrf.mxu0
      %v3868 = vadd.f32 0.0, %v3867
      %v3869 = vpop.f32.mrf.mxu0
      %3870 = vmatprep.mubr.f32.mxu0 0.0
      %3871 = vmatmul.mubr.f32.gmra.mxu0 %v3646
      %v3872 = vpop.f32.mrf.mxu0
      %v3873 = vadd.f32 0.0, %v3872
      %v3874 = vpop.f32.mrf.mxu0
      %3875 = vdwg.mxu0
      %v3876 = vadd.f32 %v3454, %v3718
      %v3877 = vadd.f32 %v3455, %v3723
      %v3878 = vadd.f32 %v3456, %v3728
      %v3879 = vadd.f32 %v3457, %v3733
      %v3880 = vadd.f32 %v3458, %v3738
      %v3881 = vadd.f32 %v3459, %v3743
      %v3882 = vadd.f32 %v3460, %v3748
      %v3883 = vadd.f32 %v3461, %v3753
      %v3884 = vadd.f32 %v3462, %v3758
      %v3885 = vadd.f32 %v3463, %v3763
      %v3886 = vadd.f32 %v3464, %v3768
      %v3887 = vadd.f32 %v3465, %v3773
      %v3888 = vadd.f32 %v3466, %v3778
      %v3889 = vadd.f32 %v3467, %v3783
      %v3890 = vadd.f32 %v3468, %v3788
      %v3891 = vadd.f32 %v3469, %v3793
      %v3892 = vadd.f32 %v3470, %v3798
      %v3893 = vadd.f32 %v3471, %v3803
      %v3894 = vadd.f32 %v3472, %v3808
      %v3895 = vadd.f32 %v3473, %v3813
      %v3896 = vadd.f32 %v3474, %v3818
      %v3897 = vadd.f32 %v3475, %v3823
      %v3898 = vadd.f32 %v3476, %v3828
      %v3899 = vadd.f32 %v3477, %v3833
      %v3900 = vadd.f32 %v3478, %v3838
      %v3901 = vadd.f32 %v3479, %v3843
      %v3902 = vadd.f32 %v3480, %v3848
      %v3903 = vadd.f32 %v3481, %v3853
      %v3904 = vadd.f32 %v3482, %v3858
      %v3905 = vadd.f32 %v3483, %v3863
      %v3906 = vadd.f32 %v3484, %v3868
      %v3907 = vadd.f32 %v3485, %v3873
      %v3908 = vld [vmem:[%s2] sm:$0x1]
      %v3910 = vlaneseq
      %v3911 = vshrl.u32 %v3910, 7
      %v3912 = vsub.s32 0, %v3911
      %v3913 = vrot.slane %v3908, %v3912
      %v3915 = vadd.f32 %v3876, %v3913
      %v3916 = vadd.f32 %v3877, %v3913
      %v3917 = vadd.f32 %v3878, %v3913
      %v3918 = vadd.f32 %v3879, %v3913
      %v3919 = vadd.f32 %v3880, %v3913
      %v3920 = vadd.f32 %v3881, %v3913
      %v3921 = vadd.f32 %v3882, %v3913
      %v3922 = vadd.f32 %v3883, %v3913
      %v3923 = vadd.f32 %v3884, %v3913
      %v3924 = vadd.f32 %v3885, %v3913
      %v3925 = vadd.f32 %v3886, %v3913
      %v3926 = vadd.f32 %v3887, %v3913
      %v3927 = vadd.f32 %v3888, %v3913
      %v3928 = vadd.f32 %v3889, %v3913
      %v3929 = vadd.f32 %v3890, %v3913
      %v3930 = vadd.f32 %v3891, %v3913
      %v3931 = vadd.f32 %v3892, %v3913
      %v3932 = vadd.f32 %v3893, %v3913
      %v3933 = vadd.f32 %v3894, %v3913
      %v3934 = vadd.f32 %v3895, %v3913
      %v3935 = vadd.f32 %v3896, %v3913
      %v3936 = vadd.f32 %v3897, %v3913
      %v3937 = vadd.f32 %v3898, %v3913
      %v3938 = vadd.f32 %v3899, %v3913
      %v3939 = vadd.f32 %v3900, %v3913
      %v3940 = vadd.f32 %v3901, %v3913
      %v3941 = vadd.f32 %v3902, %v3913
      %v3942 = vadd.f32 %v3903, %v3913
      %v3943 = vadd.f32 %v3904, %v3913
      %v3944 = vadd.f32 %v3905, %v3913
      %v3945 = vadd.f32 %v3906, %v3913
      %v3946 = vadd.f32 %v3907, %v3913
      %vm3947 = vcmask 261120
      %3948 = vst.msk [vmem:[%s170] sm:$0xff] %vm3947, %v3915
      %3949 = vst.msk [vmem:[%s170 + $0x8] sm:$0xff] %vm3947, %v3916
      %3950 = vst.msk [vmem:[%s170 + $0x10] sm:$0xff] %vm3947, %v3917
      %3951 = vst.msk [vmem:[%s170 + $0x18] sm:$0xff] %vm3947, %v3918
      %3952 = vst.msk [vmem:[%s170 + $0x20] sm:$0xff] %vm3947, %v3919
      %3953 = vst.msk [vmem:[%s170 + $0x28] sm:$0xff] %vm3947, %v3920
      %3954 = vst.msk [vmem:[%s170 + $0x30] sm:$0xff] %vm3947, %v3921
      %3955 = vst.msk [vmem:[%s170 + $0x38] sm:$0xff] %vm3947, %v3922
      %3956 = vst.msk [vmem:[%s170 + $0x40] sm:$0xff] %vm3947, %v3923
      %3957 = vst.msk [vmem:[%s170 + $0x48] sm:$0xff] %vm3947, %v3924
      %3958 = vst.msk [vmem:[%s170 + $0x50] sm:$0xff] %vm3947, %v3925
      %3959 = vst.msk [vmem:[%s170 + $0x58] sm:$0xff] %vm3947, %v3926
      %3960 = vst.msk [vmem:[%s170 + $0x60] sm:$0xff] %vm3947, %v3927
      %3961 = vst.msk [vmem:[%s170 + $0x68] sm:$0xff] %vm3947, %v3928
      %3962 = vst.msk [vmem:[%s170 + $0x70] sm:$0xff] %vm3947, %v3929
      %3963 = vst.msk [vmem:[%s170 + $0x78] sm:$0xff] %vm3947, %v3930
      %3964 = vst.msk [vmem:[%s170 + $0x80] sm:$0xff] %vm3947, %v3931
      %3965 = vst.msk [vmem:[%s170 + $0x88] sm:$0xff] %vm3947, %v3932
      %3966 = vst.msk [vmem:[%s170 + $0x90] sm:$0xff] %vm3947, %v3933
      %3967 = vst.msk [vmem:[%s170 + $0x98] sm:$0xff] %vm3947, %v3934
      %3968 = vst.msk [vmem:[%s170 + $0xa0] sm:$0xff] %vm3947, %v3935
      %3969 = vst.msk [vmem:[%s170 + $0xa8] sm:$0xff] %vm3947, %v3936
      %3970 = vst.msk [vmem:[%s170 + $0xb0] sm:$0xff] %vm3947, %v3937
      %3971 = vst.msk [vmem:[%s170 + $0xb8] sm:$0xff] %vm3947, %v3938
      %3972 = vst.msk [vmem:[%s170 + $0xc0] sm:$0xff] %vm3947, %v3939
      %3973 = vst.msk [vmem:[%s170 + $0xc8] sm:$0xff] %vm3947, %v3940
      %3974 = vst.msk [vmem:[%s170 + $0xd0] sm:$0xff] %vm3947, %v3941
      %3975 = vst.msk [vmem:[%s170 + $0xd8] sm:$0xff] %vm3947, %v3942
      %3976 = vst.msk [vmem:[%s170 + $0xe0] sm:$0xff] %vm3947, %v3943
      %3977 = vst.msk [vmem:[%s170 + $0xe8] sm:$0xff] %vm3947, %v3944
      %3978 = vst.msk [vmem:[%s170 + $0xf0] sm:$0xff] %vm3947, %v3945
      %3979 = vst.msk [vmem:[%s170 + $0xf8] sm:$0xff] %vm3947, %v3946
      %p3980 = scmp.lt.s32.totalorder %s14, 1
      %s3981 = scalar_select %p3980, %s14, 1
      %s3982 = smul.addr %s3981, 32
      %s3983 = smul.addr %s3982, 8
      %s3984 = scalar_lea.vmem %s3, %s3983
      // Predicated region
      $region33: #{deconv_block_forward.1} parent=31 // pred_check
        %p3985 = pneg %p100
      $region34: #{deconv_block_forward.1} parent=31 // pred_check_branch
        %3987 = sbr.rel (%p3985) target = $region36
      $region35: #{deconv_block_forward.1} parent=31 // pred_region
        _
      $region36: #{deconv_block_forward.1} parent=31 // pred_fallthru
        _
    $region32: #{deconv_block_forward.1} parent=5 // pred_fallthru
      _
    %p3988 = scmp.le.s32.totalorder 2, %s9
    // Predicated region
    $region37: #{deconv_block_forward.1} parent=5 // pred_check
      %p3989 = pneg %p3988
    $region38: #{deconv_block_forward.1} parent=5 // pred_check_branch
      %3991 = sbr.rel (%p3989) target = $region40
    $region39: #{deconv_block_forward.1} parent=5 // pred_region
      %s3992 = ssub.s32 %s9, 2
      // Predicated region
      $region41: #{deconv_block_forward.1} parent=39 // pred_check
        %p3993 = pneg %p106
      $region42: #{deconv_block_forward.1} parent=39 // pred_check_branch
        %3995 = sbr.rel (%p3993) target = $region44
      $region43: #{deconv_block_forward.1} parent=39 // pred_region
        %p3996 = scmp.lt.s32.totalorder %s15, 1
        %s3997 = scalar_select %p3996, %s15, 1
        %s3998 = smul.addr %s3997, 32
        %s3999 = smul.addr %s3998, 8
        %s4000 = scalar_lea.vmem %s3, %s3999
      $region44: #{deconv_block_forward.1} parent=39 // pred_fallthru
        _
    $region40: #{deconv_block_forward.1} parent=5 // pred_fallthru
      _
  $region6: #{deconv_block_forward.1} parent=0 // loop_footer
    %s13 = sadd.s32 1, %s9
  $region7: #{deconv_block_forward.1} parent=0 // loop_footer_branch
    %8 = sbr.rel target = $region3
  $region8: #{deconv_block_forward.1} parent=0 // loop_exit
    _

</llo_original>
